<compile_context>
chip_gen: v6e
topology: v6e:2x2x1
jax: 0.10.0
libtpu: 0.0.40
codegen_flags: <defaults>
</compile_context>

<pallas_src>
import functools
import math

import jax
import jax.numpy as jnp
from jax.experimental import pallas as pl
from jax.experimental.pallas import tpu as pltpu  # noqa: F401 (no TPU-specific params needed at this size)

# ----------------------------- tiny BERT config -----------------------------
VOCAB = 50
TYPE_VOCAB = 2
MAX_POS = 16
HIDDEN = 32
N_HEADS = 4
HEAD_DIM = HIDDEN // N_HEADS
INTERMEDIATE = 64
N_LAYERS = 2
LN_EPS = 1e-12
BATCH = 2
SEQ = 8

EMB_ROWS = VOCAB + MAX_POS + TYPE_VOCAB          # 68 logical embedding rows
EMB_ROWS_PAD = 128                               # pad to a full lane width (aligned K)
BIAS_ROWS = -(-(1 + 3 * N_LAYERS) // 8) * 8      # bias-slab rows, padded to multiple of 8


# ------------------------------- fused kernel --------------------------------
def _layernorm(x, g, b, eps):
    mean = jnp.mean(x, axis=-1, keepdims=True)
    var = jnp.mean((x - mean) ** 2, axis=-1, keepdims=True)
    return (x - mean) * jax.lax.rsqrt(var + eps) * g + b


def _fused_bert_kernel(idx_ref, amask_ref, emb_tab_ref, bias_ref,
                       qkv_w, ao_w, i_w, o_w, pool_w,
                       hidden_ref, pooled_ref, *,
                       n_layers, n_heads, head_dim, batch, seq, hidden,
                       intermediate, eps):
    f32 = jnp.float32
    bf16 = jnp.bfloat16
    bs = batch * seq

    # ---- embeddings: word + pos + type gather as ONE one-hot MXU matmul ----------
    idx = idx_ref[...]                                      # [bs, 3] int32
    wid = idx[:, 0:1]                                       # word id  -> rows [0, VOCAB)
    pid = idx[:, 1:2] + VOCAB                               # pos  id  -> rows [VOCAB, VOCAB+MAX_POS)
    tid = idx[:, 2:3] + (VOCAB + MAX_POS)                   # type id  -> next TYPE_VOCAB rows
    lane = jax.lax.broadcasted_iota(jnp.int32, (bs, EMB_ROWS_PAD), 1)
    onehot = ((lane == wid) | (lane == pid) | (lane == tid)).astype(f32)
    emb = jnp.dot(onehot, emb_tab_ref[...], preferred_element_type=f32)   # [bs, H]
    x = _layernorm(emb, bias_ref[0:1, 0:hidden], bias_ref[0:1, hidden:2 * hidden], eps)

    # ---- HF-style extended additive attention mask, built in-kernel --------------
    add_mask = (1.0 - amask_ref[...]) * jnp.finfo(f32).min   # [B, 1, S]

    scale = 1.0 / math.sqrt(head_dim)
    for l in range(n_layers):
        r = 1 + 3 * l

        # fused Q/K/V projection (bf16 operands, f32 accumulation)
        qkv = jnp.dot(x.astype(bf16), qkv_w[l],
                      preferred_element_type=f32) + bias_ref[r:r + 1, 0:3 * hidden]
        q = qkv[:, 0:hidden].reshape(batch, seq, hidden)
        k = qkv[:, hidden:2 * hidden].reshape(batch, seq, hidden)
        v = qkv[:, 2 * hidden:3 * hidden].reshape(batch, seq, hidden)

        # static head loop with single-batch-dim einsums (see header note)
        ctx_heads = []
        for h in range(n_heads):
            c0 = h * head_dim
            s_h = jnp.einsum("bqd,bkd->bqk",
                             q[:, :, c0:c0 + head_dim], k[:, :, c0:c0 + head_dim],
                             preferred_element_type=f32) * scale
            s_h = s_h + add_mask
            s_h = s_h - jnp.max(s_h, axis=-1, keepdims=True)
            p_h = jnp.exp(s_h)
            p_h = p_h * pl.reciprocal(jnp.sum(p_h, axis=-1, keepdims=True), approx=True)
            ctx_h = jnp.einsum("bqk,bkd->bqd", p_h, v[:, :, c0:c0 + head_dim],
                               preferred_element_type=f32)
            ctx_heads.append(ctx_h.reshape(bs, head_dim))
        ctx = jnp.concatenate(ctx_heads, axis=1)             # [bs, H]

        # single attention-output projection
        attn = jnp.dot(ctx.astype(bf16), ao_w[l],
                       preferred_element_type=f32) + bias_ref[r:r + 1, 3 * hidden:4 * hidden]
        x = _layernorm(attn + x,
                       bias_ref[r + 1:r + 2, 0:hidden],
                       bias_ref[r + 1:r + 2, hidden:2 * hidden], eps)

        # FFN
        inter = jnp.dot(x.astype(bf16), i_w[l],
                        preferred_element_type=f32) + bias_ref[r + 2:r + 3, 0:intermediate]
        # exact (erf) GELU, matching HF "gelu"
        inter = 0.5 * inter * (1.0 + jax.lax.erf(inter * (1.0 / math.sqrt(2.0))))
        ffn = jnp.dot(inter.astype(bf16), o_w[l],
                      preferred_element_type=f32) + bias_ref[r + 2:r + 3,
                                                             intermediate:intermediate + hidden]
        x = _layernorm(ffn + x,
                       bias_ref[r + 1:r + 2, 2 * hidden:3 * hidden],
                       bias_ref[r + 1:r + 2, 3 * hidden:4 * hidden], eps)

    hidden_ref[...] = x                                       # [bs, H]

    # pooler: dense + tanh on the [CLS] token of each batch row
    cls = x.reshape(batch, seq, hidden)[:, 0, :]               # [B, H]
    pooled_ref[...] = jnp.tanh(
        jnp.dot(cls.astype(bf16), pool_w[...], preferred_element_type=f32)
        + bias_ref[0:1, 2 * hidden:3 * hidden])


def _vmem_spec(shape):
    nd = len(shape)
    return pl.BlockSpec(shape, lambda *_, _nd=nd: (0,) * _nd)


# ------------------------------- model wrapper --------------------------------
def custom_bert_forward(packed, input_ids, attention_mask, token_type_ids=None,
                        gabriel_mask=None):
    # TODO(synk): gabriel_mask score-multiply is dead code in the reference module —
    # BertLayer never forwards it into the swapped CustomBertSelfAttention (the multiply
    # only triggers on the *argument*, which is always None), so the effective forward
    # is standard BERT attention and gabriel_mask is accepted but ignored here.
    del gabriel_mask
    b, s = input_ids.shape
    if token_type_ids is None:
        token_type_ids = jnp.zeros_like(input_ids)

    pos_ids = jnp.broadcast_to(jnp.arange(s, dtype=jnp.int32)[None, :], (b, s))
    idx = jnp.stack([input_ids.astype(jnp.int32).reshape(-1),
                     pos_ids.reshape(-1),
                     token_type_ids.astype(jnp.int32).reshape(-1)], axis=1)   # [b*s, 3]
    amask = attention_mask.astype(jnp.float32).reshape(b, 1, s)               # [b, 1, s]

    ins = [idx, amask,
           packed["emb_table"], packed["bias_slab"],
           packed["qkv_w"], packed["ao_w"], packed["i_w"], packed["o_w"],
           packed["pool_w"]]

    kernel = functools.partial(
        _fused_bert_kernel,
        n_layers=N_LAYERS, n_heads=N_HEADS, head_dim=HEAD_DIM,
        batch=b, seq=s, hidden=HIDDEN, intermediate=INTERMEDIATE, eps=LN_EPS)

    hidden_flat, pooled = pl.pallas_call(
        kernel,
        in_specs=[_vmem_spec(a.shape) for a in ins],
        out_specs=(_vmem_spec((b * s, HIDDEN)), _vmem_spec((b, HIDDEN))),
        out_shape=(jax.ShapeDtypeStruct((b * s, HIDDEN), jnp.float32),
                   jax.ShapeDtypeStruct((b, HIDDEN), jnp.float32)),
    )(*ins)

    return hidden_flat.reshape(b, s, HIDDEN), pooled


# --------------------------- deterministic parameters --------------------------
def init_params(key):
    keys = iter(jax.random.split(key, 32))

    def w(shape):
        return jax.random.normal(next(keys), shape, jnp.float32) * 0.02

    params = {
        "word_emb": w((VOCAB, HIDDEN)),
        "pos_emb": w((MAX_POS, HIDDEN)),
        "type_emb": w((TYPE_VOCAB, HIDDEN)),
        "emb_ln_g": jnp.ones((HIDDEN,), jnp.float32),
        "emb_ln_b": jnp.zeros((HIDDEN,), jnp.float32),
        "pool_w": w((HIDDEN, HIDDEN)),
        "pool_b": jnp.zeros((HIDDEN,), jnp.float32),
        "layers": [],
    }
    for _ in range(N_LAYERS):
        params["layers"].append({
            "q_w": w((HIDDEN, HIDDEN)), "q_b": jnp.zeros((HIDDEN,), jnp.float32),
            "k_w": w((HIDDEN, HIDDEN)), "k_b": jnp.zeros((HIDDEN,), jnp.float32),
            "v_w": w((HIDDEN, HIDDEN)), "v_b": jnp.zeros((HIDDEN,), jnp.float32),
            "ao_w": w((HIDDEN, HIDDEN)), "ao_b": jnp.zeros((HIDDEN,), jnp.float32),
            "ao_ln_g": jnp.ones((HIDDEN,), jnp.float32),
            "ao_ln_b": jnp.zeros((HIDDEN,), jnp.float32),
            "i_w": w((HIDDEN, INTERMEDIATE)), "i_b": jnp.zeros((INTERMEDIATE,), jnp.float32),
            "o_w": w((INTERMEDIATE, HIDDEN)), "o_b": jnp.zeros((HIDDEN,), jnp.float32),
            "o_ln_g": jnp.ones((HIDDEN,), jnp.float32),
            "o_ln_b": jnp.zeros((HIDDEN,), jnp.float32),
        })
    return params


def pack_params(p):
    """One-time prep: fuse Q/K/V, stack per-layer weights (bf16), pack the embedding
    tables into one [128,H] slab and every bias / LayerNorm vector into one [R,128]
    slab so the kernel needs only 7 parameter DMAs total."""
    f32, bf16 = jnp.float32, jnp.bfloat16

    # embedding table: word | pos | type, zero-padded to 128 rows (exact f32 gather)
    emb_table = jnp.concatenate([p["word_emb"], p["pos_emb"], p["type_emb"]], axis=0)
    emb_table = jnp.concatenate(
        [emb_table, jnp.zeros((EMB_ROWS_PAD - EMB_ROWS, HIDDEN), f32)], axis=0)

    # bias / LayerNorm slab: one 128-lane row per parameter group
    def row(*parts):
        v = jnp.concatenate([a.reshape(-1).astype(f32) for a in parts])
        return jnp.pad(v, (0, 128 - v.shape[0]))

    rows = [row(p["emb_ln_g"], p["emb_ln_b"], p["pool_b"])]            # row 0
    for lp in p["layers"]:
        rows.append(row(lp["q_b"], lp["k_b"], lp["v_b"], lp["ao_b"]))   # row 1+3l
        rows.append(row(lp["ao_ln_g"], lp["ao_ln_b"],
                        lp["o_ln_g"], lp["o_ln_b"]))                    # row 2+3l
        rows.append(row(lp["i_b"], lp["o_b"]))                          # row 3+3l
    while len(rows) < BIAS_ROWS:
        rows.append(jnp.zeros((128,), f32))
    bias_slab = jnp.stack(rows)                                         # [BIAS_ROWS, 128]

    def stack(name):
        return jnp.stack([lp[name] for lp in p["layers"]])

    return {
        "emb_table": emb_table,                                         # [128, H]  f32
        "bias_slab": bias_slab,                                         # [8, 128]  f32
        "qkv_w": jnp.stack([jnp.concatenate([lp["q_w"], lp["k_w"], lp["v_w"]], axis=1)
                            for lp in p["layers"]]).astype(bf16),       # [L, H, 3H] bf16
        "ao_w": stack("ao_w").astype(bf16),                             # [L, H, H]  bf16
        "i_w": stack("i_w").astype(bf16),                               # [L, H, I]  bf16
        "o_w": stack("o_w").astype(bf16),                               # [L, I, H]  bf16
        "pool_w": p["pool_w"].astype(bf16),                             # [H, H]     bf16
    }


if __name__ == "__main__":
    key = jax.random.PRNGKey(0)
    k_param, k_ids = jax.random.split(key)
    packed = pack_params(init_params(k_param))

    input_ids = jax.random.randint(k_ids, (BATCH, SEQ), 0, VOCAB, dtype=jnp.int32)
    attention_mask = jnp.array([[1, 1, 1, 1, 1, 1, 1, 1],
                                [1, 1, 1, 1, 1, 1, 0, 0]], dtype=jnp.int32)
    token_type_ids = jnp.zeros((BATCH, SEQ), dtype=jnp.int32)

    fwd = jax.jit(custom_bert_forward)
    last_hidden, pooled = fwd(packed, input_ids, attention_mask, token_type_ids)
    jax.block_until_ready((last_hidden, pooled))
    assert last_hidden.shape == (BATCH, SEQ, HIDDEN)
    assert pooled.shape == (BATCH, HIDDEN)
    assert bool(jnp.all(jnp.isfinite(last_hidden))) and bool(jnp.all(jnp.isfinite(pooled)))
    print("KERNEL_OK")
</pallas_src>

<mosaic_0001>
module attributes {stable_mosaic.version = 11 : i64} {
  func.func @_fused_bert_kernel(%arg0: memref<16x3xi32, #tpu.memory_space<vmem>>, %arg1: memref<2x1x8xf32, #tpu.memory_space<vmem>>, %arg2: memref<128x32xf32, #tpu.memory_space<vmem>>, %arg3: memref<8x128xf32, #tpu.memory_space<vmem>>, %arg4: memref<2x32x96xbf16, #tpu.memory_space<vmem>>, %arg5: memref<2x32x32xbf16, #tpu.memory_space<vmem>>, %arg6: memref<2x32x64xbf16, #tpu.memory_space<vmem>>, %arg7: memref<2x64x32xbf16, #tpu.memory_space<vmem>>, %arg8: memref<32x32xbf16, #tpu.memory_space<vmem>>, %arg9: memref<16x32xf32, #tpu.memory_space<vmem>>, %arg10: memref<2x32xf32, #tpu.memory_space<vmem>>) attributes {dimension_semantics = [], scalar_prefetch = 0 : i64, scratch_operands = 0 : i64, tpu.core_type = #tpu.core_type<tc>} {
    %c0 = arith.constant 0 : index
    %c0_0 = arith.constant 0 : index
    %0 = vector.load %arg0[%c0, %c0_0] : memref<16x3xi32, #tpu.memory_space<vmem>>, vector<16x3xi32>
    %1 = vector.extract_strided_slice %0 {offsets = [0, 0], sizes = [16, 1], strides = [1, 1]} : vector<16x3xi32> to vector<16x1xi32>
    %2 = vector.extract_strided_slice %0 {offsets = [0, 1], sizes = [16, 1], strides = [1, 1]} : vector<16x3xi32> to vector<16x1xi32>
    %c50_i32 = arith.constant 50 : i32
    %3 = vector.broadcast %c50_i32 : i32 to vector<16x1xi32>
    %4 = arith.addi %2, %3 : vector<16x1xi32>
    %5 = vector.extract_strided_slice %0 {offsets = [0, 2], sizes = [16, 1], strides = [1, 1]} : vector<16x3xi32> to vector<16x1xi32>
    %c66_i32 = arith.constant 66 : i32
    %6 = vector.broadcast %c66_i32 : i32 to vector<16x1xi32>
    %7 = arith.addi %5, %6 : vector<16x1xi32>
    %8 = tpu.iota {dimensions = array<i32: 1>} : vector<16x128xi32>
    %9 = vector.broadcast %1 : vector<16x1xi32> to vector<16x128xi32>
    %10 = arith.cmpi eq, %8, %9 : vector<16x128xi32>
    %11 = vector.broadcast %4 : vector<16x1xi32> to vector<16x128xi32>
    %12 = arith.cmpi eq, %8, %11 : vector<16x128xi32>
    %13 = arith.ori %10, %12 : vector<16x128xi1>
    %14 = vector.broadcast %7 : vector<16x1xi32> to vector<16x128xi32>
    %15 = arith.cmpi eq, %8, %14 : vector<16x128xi32>
    %16 = arith.ori %13, %15 : vector<16x128xi1>
    %17 = arith.extui %16 : vector<16x128xi1> to vector<16x128xi32>
    %18 = arith.sitofp %17 : vector<16x128xi32> to vector<16x128xf32>
    %c0_1 = arith.constant 0 : index
    %c0_2 = arith.constant 0 : index
    %19 = vector.load %arg2[%c0_1, %c0_2] : memref<128x32xf32, #tpu.memory_space<vmem>>, vector<128x32xf32>
    %cst = arith.constant dense<0.000000e+00> : vector<16x32xf32>
    %20 = tpu.matmul %18, %19, %cst {dimension_numbers = #tpu.dot_dimension_numbers<[1], [0], [0], [1], [0, 0, 1, 1], [], []>} : vector<16x128xf32>, vector<128x32xf32>, vector<16x32xf32> -> vector<16x32xf32>
    %c0_3 = arith.constant 0 : index
    %c0_4 = arith.constant 0 : index
    %21 = vector.load %arg3[%c0_3, %c0_4] : memref<8x128xf32, #tpu.memory_space<vmem>>, vector<1x32xf32>
    %c0_5 = arith.constant 0 : index
    %c32 = arith.constant 32 : index
    %22 = vector.load %arg3[%c0_5, %c32] : memref<8x128xf32, #tpu.memory_space<vmem>>, vector<1x32xf32>
    %cst_6 = arith.constant dense<0.000000e+00> : vector<16xf32>
    %23 = vector.multi_reduction <add>, %20, %cst_6 [1] : vector<16x32xf32> to vector<16xf32>
    %24 = vector.shape_cast %23 : vector<16xf32> to vector<16x1xf32>
    %cst_7 = arith.constant 3.200000e+01 : f32
    %25 = vector.broadcast %cst_7 : f32 to vector<16x1xf32>
    %26 = arith.divf %24, %25 : vector<16x1xf32>
    %27 = vector.broadcast %26 : vector<16x1xf32> to vector<16x32xf32>
    %28 = arith.subf %20, %27 : vector<16x32xf32>
    %29 = arith.mulf %28, %28 : vector<16x32xf32>
    %cst_8 = arith.constant dense<0.000000e+00> : vector<16xf32>
    %30 = vector.multi_reduction <add>, %29, %cst_8 [1] : vector<16x32xf32> to vector<16xf32>
    %31 = vector.shape_cast %30 : vector<16xf32> to vector<16x1xf32>
    %cst_9 = arith.constant 3.200000e+01 : f32
    %32 = vector.broadcast %cst_9 : f32 to vector<16x1xf32>
    %33 = arith.divf %31, %32 : vector<16x1xf32>
    %34 = vector.broadcast %26 : vector<16x1xf32> to vector<16x32xf32>
    %35 = arith.subf %20, %34 : vector<16x32xf32>
    %cst_10 = arith.constant 9.99999996E-13 : f32
    %36 = vector.broadcast %cst_10 : f32 to vector<16x1xf32>
    %37 = arith.addf %33, %36 : vector<16x1xf32>
    %38 = math.rsqrt %37 : vector<16x1xf32>
    %39 = vector.broadcast %38 : vector<16x1xf32> to vector<16x32xf32>
    %40 = arith.mulf %35, %39 : vector<16x32xf32>
    %41 = vector.broadcast %21 : vector<1x32xf32> to vector<16x32xf32>
    %42 = arith.mulf %40, %41 : vector<16x32xf32>
    %43 = vector.broadcast %22 : vector<1x32xf32> to vector<16x32xf32>
    %44 = arith.addf %42, %43 : vector<16x32xf32>
    %c0_11 = arith.constant 0 : index
    %c0_12 = arith.constant 0 : index
    %c0_13 = arith.constant 0 : index
    %45 = vector.load %arg1[%c0_11, %c0_12, %c0_13] : memref<2x1x8xf32, #tpu.memory_space<vmem>>, vector<2x1x8xf32>
    %cst_14 = arith.constant 1.000000e+00 : f32
    %46 = vector.broadcast %cst_14 : f32 to vector<2x1x8xf32>
    %47 = arith.subf %46, %45 : vector<2x1x8xf32>
    %cst_15 = arith.constant -3.40282347E+38 : f32
    %48 = vector.broadcast %cst_15 : f32 to vector<2x1x8xf32>
    %49 = arith.mulf %47, %48 : vector<2x1x8xf32>
    %50 = arith.truncf %44 : vector<16x32xf32> to vector<16x32xbf16>
    %c0_16 = arith.constant 0 : index
    %c0_17 = arith.constant 0 : index
    %c0_18 = arith.constant 0 : index
    %51 = vector.load %arg4[%c0_16, %c0_17, %c0_18] : memref<2x32x96xbf16, #tpu.memory_space<vmem>>, vector<1x32x96xbf16>
    %52 = vector.shape_cast %51 : vector<1x32x96xbf16> to vector<32x96xbf16>
    %cst_19 = arith.constant dense<0.000000e+00> : vector<16x96xf32>
    %53 = tpu.matmul %50, %52, %cst_19 {dimension_numbers = #tpu.dot_dimension_numbers<[1], [0], [0], [1], [0, 0, 1, 1], [], []>} : vector<16x32xbf16>, vector<32x96xbf16>, vector<16x96xf32> -> vector<16x96xf32>
    %c1 = arith.constant 1 : index
    %c0_20 = arith.constant 0 : index
    %54 = vector.load %arg3[%c1, %c0_20] : memref<8x128xf32, #tpu.memory_space<vmem>>, vector<1x96xf32>
    %55 = vector.broadcast %54 : vector<1x96xf32> to vector<16x96xf32>
    %56 = arith.addf %53, %55 : vector<16x96xf32>
    %57 = vector.extract_strided_slice %56 {offsets = [0, 0], sizes = [16, 32], strides = [1, 1]} : vector<16x96xf32> to vector<16x32xf32>
    %58 = vector.shape_cast %57 : vector<16x32xf32> to vector<2x8x32xf32>
    %59 = vector.extract_strided_slice %56 {offsets = [0, 32], sizes = [16, 32], strides = [1, 1]} : vector<16x96xf32> to vector<16x32xf32>
    %60 = vector.shape_cast %59 : vector<16x32xf32> to vector<2x8x32xf32>
    %61 = vector.extract_strided_slice %56 {offsets = [0, 64], sizes = [16, 32], strides = [1, 1]} : vector<16x96xf32> to vector<16x32xf32>
    %62 = vector.shape_cast %61 : vector<16x32xf32> to vector<2x8x32xf32>
    %63 = vector.extract_strided_slice %58 {offsets = [0, 0, 0], sizes = [2, 8, 8], strides = [1, 1, 1]} : vector<2x8x32xf32> to vector<2x8x8xf32>
    %64 = vector.extract_strided_slice %60 {offsets = [0, 0, 0], sizes = [2, 8, 8], strides = [1, 1, 1]} : vector<2x8x32xf32> to vector<2x8x8xf32>
    "tpu.trace_start"() <{level = 10 : i32, message = "bqd,bkd->bqk"}> : () -> ()
    %cst_21 = arith.constant dense<0.000000e+00> : vector<2x8x8xf32>
    %65 = tpu.matmul %63, %64, %cst_21 {dimension_numbers = #tpu.dot_dimension_numbers<[2], [2], [1], [1], [0, 0, 0, 1, 1, 1], [0], [0]>} : vector<2x8x8xf32>, vector<2x8x8xf32>, vector<2x8x8xf32> -> vector<2x8x8xf32>
    "tpu.trace_stop"() : () -> ()
    %cst_22 = arith.constant 0.353553385 : f32
    %66 = vector.broadcast %cst_22 : f32 to vector<2x8x8xf32>
    %67 = arith.mulf %65, %66 : vector<2x8x8xf32>
    %68 = vector.broadcast %49 : vector<2x1x8xf32> to vector<2x8x8xf32>
    %69 = arith.addf %67, %68 : vector<2x8x8xf32>
    %cst_23 = arith.constant dense<0xFF800000> : vector<2x8xf32>
    %70 = vector.multi_reduction <maximumf>, %69, %cst_23 [2] : vector<2x8x8xf32> to vector<2x8xf32>
    %71 = vector.shape_cast %70 : vector<2x8xf32> to vector<2x8x1xf32>
    %72 = vector.broadcast %71 : vector<2x8x1xf32> to vector<2x8x8xf32>
    %73 = arith.subf %69, %72 : vector<2x8x8xf32>
    %74 = math.exp %73 : vector<2x8x8xf32>
    %cst_24 = arith.constant dense<0.000000e+00> : vector<2x8xf32>
    %75 = vector.multi_reduction <add>, %74, %cst_24 [2] : vector<2x8x8xf32> to vector<2x8xf32>
    %76 = vector.shape_cast %75 : vector<2x8xf32> to vector<2x8x1xf32>
    %77 = tpu.reciprocal %76 {approx = true} : vector<2x8x1xf32> -> vector<2x8x1xf32>
    %78 = vector.broadcast %77 : vector<2x8x1xf32> to vector<2x8x8xf32>
    %79 = arith.mulf %74, %78 : vector<2x8x8xf32>
    %80 = vector.extract_strided_slice %62 {offsets = [0, 0, 0], sizes = [2, 8, 8], strides = [1, 1, 1]} : vector<2x8x32xf32> to vector<2x8x8xf32>
    "tpu.trace_start"() <{level = 10 : i32, message = "bqk,bkd->bqd"}> : () -> ()
    %cst_25 = arith.constant dense<0.000000e+00> : vector<2x8x8xf32>
    %81 = tpu.matmul %79, %80, %cst_25 {dimension_numbers = #tpu.dot_dimension_numbers<[2], [1], [1], [2], [0, 0, 0, 1, 1, 2], [0], [0]>} : vector<2x8x8xf32>, vector<2x8x8xf32>, vector<2x8x8xf32> -> vector<2x8x8xf32>
    "tpu.trace_stop"() : () -> ()
    %82 = vector.shape_cast %81 : vector<2x8x8xf32> to vector<16x8xf32>
    %83 = vector.extract_strided_slice %58 {offsets = [0, 0, 8], sizes = [2, 8, 8], strides = [1, 1, 1]} : vector<2x8x32xf32> to vector<2x8x8xf32>
    %84 = vector.extract_strided_slice %60 {offsets = [0, 0, 8], sizes = [2, 8, 8], strides = [1, 1, 1]} : vector<2x8x32xf32> to vector<2x8x8xf32>
    "tpu.trace_start"() <{level = 10 : i32, message = "bqd,bkd->bqk"}> : () -> ()
    %cst_26 = arith.constant dense<0.000000e+00> : vector<2x8x8xf32>
    %85 = tpu.matmul %83, %84, %cst_26 {dimension_numbers = #tpu.dot_dimension_numbers<[2], [2], [1], [1], [0, 0, 0, 1, 1, 1], [0], [0]>} : vector<2x8x8xf32>, vector<2x8x8xf32>, vector<2x8x8xf32> -> vector<2x8x8xf32>
    "tpu.trace_stop"() : () -> ()
    %cst_27 = arith.constant 0.353553385 : f32
    %86 = vector.broadcast %cst_27 : f32 to vector<2x8x8xf32>
    %87 = arith.mulf %85, %86 : vector<2x8x8xf32>
    %88 = vector.broadcast %49 : vector<2x1x8xf32> to vector<2x8x8xf32>
    %89 = arith.addf %87, %88 : vector<2x8x8xf32>
    %cst_28 = arith.constant dense<0xFF800000> : vector<2x8xf32>
    %90 = vector.multi_reduction <maximumf>, %89, %cst_28 [2] : vector<2x8x8xf32> to vector<2x8xf32>
    %91 = vector.shape_cast %90 : vector<2x8xf32> to vector<2x8x1xf32>
    %92 = vector.broadcast %91 : vector<2x8x1xf32> to vector<2x8x8xf32>
    %93 = arith.subf %89, %92 : vector<2x8x8xf32>
    %94 = math.exp %93 : vector<2x8x8xf32>
    %cst_29 = arith.constant dense<0.000000e+00> : vector<2x8xf32>
    %95 = vector.multi_reduction <add>, %94, %cst_29 [2] : vector<2x8x8xf32> to vector<2x8xf32>
    %96 = vector.shape_cast %95 : vector<2x8xf32> to vector<2x8x1xf32>
    %97 = tpu.reciprocal %96 {approx = true} : vector<2x8x1xf32> -> vector<2x8x1xf32>
    %98 = vector.broadcast %97 : vector<2x8x1xf32> to vector<2x8x8xf32>
    %99 = arith.mulf %94, %98 : vector<2x8x8xf32>
    %100 = vector.extract_strided_slice %62 {offsets = [0, 0, 8], sizes = [2, 8, 8], strides = [1, 1, 1]} : vector<2x8x32xf32> to vector<2x8x8xf32>
    "tpu.trace_start"() <{level = 10 : i32, message = "bqk,bkd->bqd"}> : () -> ()
    %cst_30 = arith.constant dense<0.000000e+00> : vector<2x8x8xf32>
    %101 = tpu.matmul %99, %100, %cst_30 {dimension_numbers = #tpu.dot_dimension_numbers<[2], [1], [1], [2], [0, 0, 0, 1, 1, 2], [0], [0]>} : vector<2x8x8xf32>, vector<2x8x8xf32>, vector<2x8x8xf32> -> vector<2x8x8xf32>
    "tpu.trace_stop"() : () -> ()
    %102 = vector.shape_cast %101 : vector<2x8x8xf32> to vector<16x8xf32>
    %103 = vector.extract_strided_slice %58 {offsets = [0, 0, 16], sizes = [2, 8, 8], strides = [1, 1, 1]} : vector<2x8x32xf32> to vector<2x8x8xf32>
    %104 = vector.extract_strided_slice %60 {offsets = [0, 0, 16], sizes = [2, 8, 8], strides = [1, 1, 1]} : vector<2x8x32xf32> to vector<2x8x8xf32>
    "tpu.trace_start"() <{level = 10 : i32, message = "bqd,bkd->bqk"}> : () -> ()
    %cst_31 = arith.constant dense<0.000000e+00> : vector<2x8x8xf32>
    %105 = tpu.matmul %103, %104, %cst_31 {dimension_numbers = #tpu.dot_dimension_numbers<[2], [2], [1], [1], [0, 0, 0, 1, 1, 1], [0], [0]>} : vector<2x8x8xf32>, vector<2x8x8xf32>, vector<2x8x8xf32> -> vector<2x8x8xf32>
    "tpu.trace_stop"() : () -> ()
    %cst_32 = arith.constant 0.353553385 : f32
    %106 = vector.broadcast %cst_32 : f32 to vector<2x8x8xf32>
    %107 = arith.mulf %105, %106 : vector<2x8x8xf32>
    %108 = vector.broadcast %49 : vector<2x1x8xf32> to vector<2x8x8xf32>
    %109 = arith.addf %107, %108 : vector<2x8x8xf32>
    %cst_33 = arith.constant dense<0xFF800000> : vector<2x8xf32>
    %110 = vector.multi_reduction <maximumf>, %109, %cst_33 [2] : vector<2x8x8xf32> to vector<2x8xf32>
    %111 = vector.shape_cast %110 : vector<2x8xf32> to vector<2x8x1xf32>
    %112 = vector.broadcast %111 : vector<2x8x1xf32> to vector<2x8x8xf32>
    %113 = arith.subf %109, %112 : vector<2x8x8xf32>
    %114 = math.exp %113 : vector<2x8x8xf32>
    %cst_34 = arith.constant dense<0.000000e+00> : vector<2x8xf32>
    %115 = vector.multi_reduction <add>, %114, %cst_34 [2] : vector<2x8x8xf32> to vector<2x8xf32>
    %116 = vector.shape_cast %115 : vector<2x8xf32> to vector<2x8x1xf32>
    %117 = tpu.reciprocal %116 {approx = true} : vector<2x8x1xf32> -> vector<2x8x1xf32>
    %118 = vector.broadcast %117 : vector<2x8x1xf32> to vector<2x8x8xf32>
    %119 = arith.mulf %114, %118 : vector<2x8x8xf32>
    %120 = vector.extract_strided_slice %62 {offsets = [0, 0, 16], sizes = [2, 8, 8], strides = [1, 1, 1]} : vector<2x8x32xf32> to vector<2x8x8xf32>
    "tpu.trace_start"() <{level = 10 : i32, message = "bqk,bkd->bqd"}> : () -> ()
    %cst_35 = arith.constant dense<0.000000e+00> : vector<2x8x8xf32>
    %121 = tpu.matmul %119, %120, %cst_35 {dimension_numbers = #tpu.dot_dimension_numbers<[2], [1], [1], [2], [0, 0, 0, 1, 1, 2], [0], [0]>} : vector<2x8x8xf32>, vector<2x8x8xf32>, vector<2x8x8xf32> -> vector<2x8x8xf32>
    "tpu.trace_stop"() : () -> ()
    %122 = vector.shape_cast %121 : vector<2x8x8xf32> to vector<16x8xf32>
    %123 = vector.extract_strided_slice %58 {offsets = [0, 0, 24], sizes = [2, 8, 8], strides = [1, 1, 1]} : vector<2x8x32xf32> to vector<2x8x8xf32>
    %124 = vector.extract_strided_slice %60 {offsets = [0, 0, 24], sizes = [2, 8, 8], strides = [1, 1, 1]} : vector<2x8x32xf32> to vector<2x8x8xf32>
    "tpu.trace_start"() <{level = 10 : i32, message = "bqd,bkd->bqk"}> : () -> ()
    %cst_36 = arith.constant dense<0.000000e+00> : vector<2x8x8xf32>
    %125 = tpu.matmul %123, %124, %cst_36 {dimension_numbers = #tpu.dot_dimension_numbers<[2], [2], [1], [1], [0, 0, 0, 1, 1, 1], [0], [0]>} : vector<2x8x8xf32>, vector<2x8x8xf32>, vector<2x8x8xf32> -> vector<2x8x8xf32>
    "tpu.trace_stop"() : () -> ()
    %cst_37 = arith.constant 0.353553385 : f32
    %126 = vector.broadcast %cst_37 : f32 to vector<2x8x8xf32>
    %127 = arith.mulf %125, %126 : vector<2x8x8xf32>
    %128 = vector.broadcast %49 : vector<2x1x8xf32> to vector<2x8x8xf32>
    %129 = arith.addf %127, %128 : vector<2x8x8xf32>
    %cst_38 = arith.constant dense<0xFF800000> : vector<2x8xf32>
    %130 = vector.multi_reduction <maximumf>, %129, %cst_38 [2] : vector<2x8x8xf32> to vector<2x8xf32>
    %131 = vector.shape_cast %130 : vector<2x8xf32> to vector<2x8x1xf32>
    %132 = vector.broadcast %131 : vector<2x8x1xf32> to vector<2x8x8xf32>
    %133 = arith.subf %129, %132 : vector<2x8x8xf32>
    %134 = math.exp %133 : vector<2x8x8xf32>
    %cst_39 = arith.constant dense<0.000000e+00> : vector<2x8xf32>
    %135 = vector.multi_reduction <add>, %134, %cst_39 [2] : vector<2x8x8xf32> to vector<2x8xf32>
    %136 = vector.shape_cast %135 : vector<2x8xf32> to vector<2x8x1xf32>
    %137 = tpu.reciprocal %136 {approx = true} : vector<2x8x1xf32> -> vector<2x8x1xf32>
    %138 = vector.broadcast %137 : vector<2x8x1xf32> to vector<2x8x8xf32>
    %139 = arith.mulf %134, %138 : vector<2x8x8xf32>
    %140 = vector.extract_strided_slice %62 {offsets = [0, 0, 24], sizes = [2, 8, 8], strides = [1, 1, 1]} : vector<2x8x32xf32> to vector<2x8x8xf32>
    "tpu.trace_start"() <{level = 10 : i32, message = "bqk,bkd->bqd"}> : () -> ()
    %cst_40 = arith.constant dense<0.000000e+00> : vector<2x8x8xf32>
    %141 = tpu.matmul %139, %140, %cst_40 {dimension_numbers = #tpu.dot_dimension_numbers<[2], [1], [1], [2], [0, 0, 0, 1, 1, 2], [0], [0]>} : vector<2x8x8xf32>, vector<2x8x8xf32>, vector<2x8x8xf32> -> vector<2x8x8xf32>
    "tpu.trace_stop"() : () -> ()
    %142 = vector.shape_cast %141 : vector<2x8x8xf32> to vector<16x8xf32>
    %143 = tpu.concatenate %82, %102, %122, %142 in 1 : vector<16x8xf32>, vector<16x8xf32>, vector<16x8xf32>, vector<16x8xf32> -> vector<16x32xf32>
    %144 = arith.truncf %143 : vector<16x32xf32> to vector<16x32xbf16>
    %c0_41 = arith.constant 0 : index
    %c0_42 = arith.constant 0 : index
    %c0_43 = arith.constant 0 : index
    %145 = vector.load %arg5[%c0_41, %c0_42, %c0_43] : memref<2x32x32xbf16, #tpu.memory_space<vmem>>, vector<1x32x32xbf16>
    %146 = vector.shape_cast %145 : vector<1x32x32xbf16> to vector<32x32xbf16>
    %cst_44 = arith.constant dense<0.000000e+00> : vector<16x32xf32>
    %147 = tpu.matmul %144, %146, %cst_44 {dimension_numbers = #tpu.dot_dimension_numbers<[1], [0], [0], [1], [0, 0, 1, 1], [], []>} : vector<16x32xbf16>, vector<32x32xbf16>, vector<16x32xf32> -> vector<16x32xf32>
    %c1_45 = arith.constant 1 : index
    %c96 = arith.constant 96 : index
    %148 = vector.load %arg3[%c1_45, %c96] : memref<8x128xf32, #tpu.memory_space<vmem>>, vector<1x32xf32>
    %149 = vector.broadcast %148 : vector<1x32xf32> to vector<16x32xf32>
    %150 = arith.addf %147, %149 : vector<16x32xf32>
    %151 = arith.addf %150, %44 : vector<16x32xf32>
    %c2 = arith.constant 2 : index
    %c0_46 = arith.constant 0 : index
    %152 = vector.load %arg3[%c2, %c0_46] : memref<8x128xf32, #tpu.memory_space<vmem>>, vector<1x32xf32>
    %c2_47 = arith.constant 2 : index
    %c32_48 = arith.constant 32 : index
    %153 = vector.load %arg3[%c2_47, %c32_48] : memref<8x128xf32, #tpu.memory_space<vmem>>, vector<1x32xf32>
    %cst_49 = arith.constant dense<0.000000e+00> : vector<16xf32>
    %154 = vector.multi_reduction <add>, %151, %cst_49 [1] : vector<16x32xf32> to vector<16xf32>
    %155 = vector.shape_cast %154 : vector<16xf32> to vector<16x1xf32>
    %cst_50 = arith.constant 3.200000e+01 : f32
    %156 = vector.broadcast %cst_50 : f32 to vector<16x1xf32>
    %157 = arith.divf %155, %156 : vector<16x1xf32>
    %158 = vector.broadcast %157 : vector<16x1xf32> to vector<16x32xf32>
    %159 = arith.subf %151, %158 : vector<16x32xf32>
    %160 = arith.mulf %159, %159 : vector<16x32xf32>
    %cst_51 = arith.constant dense<0.000000e+00> : vector<16xf32>
    %161 = vector.multi_reduction <add>, %160, %cst_51 [1] : vector<16x32xf32> to vector<16xf32>
    %162 = vector.shape_cast %161 : vector<16xf32> to vector<16x1xf32>
    %cst_52 = arith.constant 3.200000e+01 : f32
    %163 = vector.broadcast %cst_52 : f32 to vector<16x1xf32>
    %164 = arith.divf %162, %163 : vector<16x1xf32>
    %165 = vector.broadcast %157 : vector<16x1xf32> to vector<16x32xf32>
    %166 = arith.subf %151, %165 : vector<16x32xf32>
    %cst_53 = arith.constant 9.99999996E-13 : f32
    %167 = vector.broadcast %cst_53 : f32 to vector<16x1xf32>
    %168 = arith.addf %164, %167 : vector<16x1xf32>
    %169 = math.rsqrt %168 : vector<16x1xf32>
    %170 = vector.broadcast %169 : vector<16x1xf32> to vector<16x32xf32>
    %171 = arith.mulf %166, %170 : vector<16x32xf32>
    %172 = vector.broadcast %152 : vector<1x32xf32> to vector<16x32xf32>
    %173 = arith.mulf %171, %172 : vector<16x32xf32>
    %174 = vector.broadcast %153 : vector<1x32xf32> to vector<16x32xf32>
    %175 = arith.addf %173, %174 : vector<16x32xf32>
    %176 = arith.truncf %175 : vector<16x32xf32> to vector<16x32xbf16>
    %c0_54 = arith.constant 0 : index
    %c0_55 = arith.constant 0 : index
    %c0_56 = arith.constant 0 : index
    %177 = vector.load %arg6[%c0_54, %c0_55, %c0_56] : memref<2x32x64xbf16, #tpu.memory_space<vmem>>, vector<1x32x64xbf16>
    %178 = vector.shape_cast %177 : vector<1x32x64xbf16> to vector<32x64xbf16>
    %cst_57 = arith.constant dense<0.000000e+00> : vector<16x64xf32>
    %179 = tpu.matmul %176, %178, %cst_57 {dimension_numbers = #tpu.dot_dimension_numbers<[1], [0], [0], [1], [0, 0, 1, 1], [], []>} : vector<16x32xbf16>, vector<32x64xbf16>, vector<16x64xf32> -> vector<16x64xf32>
    %c3 = arith.constant 3 : index
    %c0_58 = arith.constant 0 : index
    %180 = vector.load %arg3[%c3, %c0_58] : memref<8x128xf32, #tpu.memory_space<vmem>>, vector<1x64xf32>
    %181 = vector.broadcast %180 : vector<1x64xf32> to vector<16x64xf32>
    %182 = arith.addf %179, %181 : vector<16x64xf32>
    %cst_59 = arith.constant 5.000000e-01 : f32
    %183 = vector.broadcast %cst_59 : f32 to vector<16x64xf32>
    %184 = arith.mulf %183, %182 : vector<16x64xf32>
    %cst_60 = arith.constant 0.707106769 : f32
    %185 = vector.broadcast %cst_60 : f32 to vector<16x64xf32>
    %186 = arith.mulf %182, %185 : vector<16x64xf32>
    %187 = math.erf %186 : vector<16x64xf32>
    %cst_61 = arith.constant 1.000000e+00 : f32
    %188 = vector.broadcast %cst_61 : f32 to vector<16x64xf32>
    %189 = arith.addf %188, %187 : vector<16x64xf32>
    %190 = arith.mulf %184, %189 : vector<16x64xf32>
    %191 = arith.truncf %190 : vector<16x64xf32> to vector<16x64xbf16>
    %c0_62 = arith.constant 0 : index
    %c0_63 = arith.constant 0 : index
    %c0_64 = arith.constant 0 : index
    %192 = vector.load %arg7[%c0_62, %c0_63, %c0_64] : memref<2x64x32xbf16, #tpu.memory_space<vmem>>, vector<1x64x32xbf16>
    %193 = vector.shape_cast %192 : vector<1x64x32xbf16> to vector<64x32xbf16>
    %cst_65 = arith.constant dense<0.000000e+00> : vector<16x32xf32>
    %194 = tpu.matmul %191, %193, %cst_65 {dimension_numbers = #tpu.dot_dimension_numbers<[1], [0], [0], [1], [0, 0, 1, 1], [], []>} : vector<16x64xbf16>, vector<64x32xbf16>, vector<16x32xf32> -> vector<16x32xf32>
    %c3_66 = arith.constant 3 : index
    %c64 = arith.constant 64 : index
    %195 = vector.load %arg3[%c3_66, %c64] : memref<8x128xf32, #tpu.memory_space<vmem>>, vector<1x32xf32>
    %196 = vector.broadcast %195 : vector<1x32xf32> to vector<16x32xf32>
    %197 = arith.addf %194, %196 : vector<16x32xf32>
    %198 = arith.addf %197, %175 : vector<16x32xf32>
    %c2_67 = arith.constant 2 : index
    %c64_68 = arith.constant 64 : index
    %199 = vector.load %arg3[%c2_67, %c64_68] : memref<8x128xf32, #tpu.memory_space<vmem>>, vector<1x32xf32>
    %c2_69 = arith.constant 2 : index
    %c96_70 = arith.constant 96 : index
    %200 = vector.load %arg3[%c2_69, %c96_70] : memref<8x128xf32, #tpu.memory_space<vmem>>, vector<1x32xf32>
    %cst_71 = arith.constant dense<0.000000e+00> : vector<16xf32>
    %201 = vector.multi_reduction <add>, %198, %cst_71 [1] : vector<16x32xf32> to vector<16xf32>
    %202 = vector.shape_cast %201 : vector<16xf32> to vector<16x1xf32>
    %cst_72 = arith.constant 3.200000e+01 : f32
    %203 = vector.broadcast %cst_72 : f32 to vector<16x1xf32>
    %204 = arith.divf %202, %203 : vector<16x1xf32>
    %205 = vector.broadcast %204 : vector<16x1xf32> to vector<16x32xf32>
    %206 = arith.subf %198, %205 : vector<16x32xf32>
    %207 = arith.mulf %206, %206 : vector<16x32xf32>
    %cst_73 = arith.constant dense<0.000000e+00> : vector<16xf32>
    %208 = vector.multi_reduction <add>, %207, %cst_73 [1] : vector<16x32xf32> to vector<16xf32>
    %209 = vector.shape_cast %208 : vector<16xf32> to vector<16x1xf32>
    %cst_74 = arith.constant 3.200000e+01 : f32
    %210 = vector.broadcast %cst_74 : f32 to vector<16x1xf32>
    %211 = arith.divf %209, %210 : vector<16x1xf32>
    %212 = vector.broadcast %204 : vector<16x1xf32> to vector<16x32xf32>
    %213 = arith.subf %198, %212 : vector<16x32xf32>
    %cst_75 = arith.constant 9.99999996E-13 : f32
    %214 = vector.broadcast %cst_75 : f32 to vector<16x1xf32>
    %215 = arith.addf %211, %214 : vector<16x1xf32>
    %216 = math.rsqrt %215 : vector<16x1xf32>
    %217 = vector.broadcast %216 : vector<16x1xf32> to vector<16x32xf32>
    %218 = arith.mulf %213, %217 : vector<16x32xf32>
    %219 = vector.broadcast %199 : vector<1x32xf32> to vector<16x32xf32>
    %220 = arith.mulf %218, %219 : vector<16x32xf32>
    %221 = vector.broadcast %200 : vector<1x32xf32> to vector<16x32xf32>
    %222 = arith.addf %220, %221 : vector<16x32xf32>
    %223 = arith.truncf %222 : vector<16x32xf32> to vector<16x32xbf16>
    %c1_76 = arith.constant 1 : index
    %c0_77 = arith.constant 0 : index
    %c0_78 = arith.constant 0 : index
    %224 = vector.load %arg4[%c1_76, %c0_77, %c0_78] : memref<2x32x96xbf16, #tpu.memory_space<vmem>>, vector<1x32x96xbf16>
    %225 = vector.shape_cast %224 : vector<1x32x96xbf16> to vector<32x96xbf16>
    %cst_79 = arith.constant dense<0.000000e+00> : vector<16x96xf32>
    %226 = tpu.matmul %223, %225, %cst_79 {dimension_numbers = #tpu.dot_dimension_numbers<[1], [0], [0], [1], [0, 0, 1, 1], [], []>} : vector<16x32xbf16>, vector<32x96xbf16>, vector<16x96xf32> -> vector<16x96xf32>
    %c4 = arith.constant 4 : index
    %c0_80 = arith.constant 0 : index
    %227 = vector.load %arg3[%c4, %c0_80] : memref<8x128xf32, #tpu.memory_space<vmem>>, vector<1x96xf32>
    %228 = vector.broadcast %227 : vector<1x96xf32> to vector<16x96xf32>
    %229 = arith.addf %226, %228 : vector<16x96xf32>
    %230 = vector.extract_strided_slice %229 {offsets = [0, 0], sizes = [16, 32], strides = [1, 1]} : vector<16x96xf32> to vector<16x32xf32>
    %231 = vector.shape_cast %230 : vector<16x32xf32> to vector<2x8x32xf32>
    %232 = vector.extract_strided_slice %229 {offsets = [0, 32], sizes = [16, 32], strides = [1, 1]} : vector<16x96xf32> to vector<16x32xf32>
    %233 = vector.shape_cast %232 : vector<16x32xf32> to vector<2x8x32xf32>
    %234 = vector.extract_strided_slice %229 {offsets = [0, 64], sizes = [16, 32], strides = [1, 1]} : vector<16x96xf32> to vector<16x32xf32>
    %235 = vector.shape_cast %234 : vector<16x32xf32> to vector<2x8x32xf32>
    %236 = vector.extract_strided_slice %231 {offsets = [0, 0, 0], sizes = [2, 8, 8], strides = [1, 1, 1]} : vector<2x8x32xf32> to vector<2x8x8xf32>
    %237 = vector.extract_strided_slice %233 {offsets = [0, 0, 0], sizes = [2, 8, 8], strides = [1, 1, 1]} : vector<2x8x32xf32> to vector<2x8x8xf32>
    "tpu.trace_start"() <{level = 10 : i32, message = "bqd,bkd->bqk"}> : () -> ()
    %cst_81 = arith.constant dense<0.000000e+00> : vector<2x8x8xf32>
    %238 = tpu.matmul %236, %237, %cst_81 {dimension_numbers = #tpu.dot_dimension_numbers<[2], [2], [1], [1], [0, 0, 0, 1, 1, 1], [0], [0]>} : vector<2x8x8xf32>, vector<2x8x8xf32>, vector<2x8x8xf32> -> vector<2x8x8xf32>
    "tpu.trace_stop"() : () -> ()
    %cst_82 = arith.constant 0.353553385 : f32
    %239 = vector.broadcast %cst_82 : f32 to vector<2x8x8xf32>
    %240 = arith.mulf %238, %239 : vector<2x8x8xf32>
    %241 = vector.broadcast %49 : vector<2x1x8xf32> to vector<2x8x8xf32>
    %242 = arith.addf %240, %241 : vector<2x8x8xf32>
    %cst_83 = arith.constant dense<0xFF800000> : vector<2x8xf32>
    %243 = vector.multi_reduction <maximumf>, %242, %cst_83 [2] : vector<2x8x8xf32> to vector<2x8xf32>
    %244 = vector.shape_cast %243 : vector<2x8xf32> to vector<2x8x1xf32>
    %245 = vector.broadcast %244 : vector<2x8x1xf32> to vector<2x8x8xf32>
    %246 = arith.subf %242, %245 : vector<2x8x8xf32>
    %247 = math.exp %246 : vector<2x8x8xf32>
    %cst_84 = arith.constant dense<0.000000e+00> : vector<2x8xf32>
    %248 = vector.multi_reduction <add>, %247, %cst_84 [2] : vector<2x8x8xf32> to vector<2x8xf32>
    %249 = vector.shape_cast %248 : vector<2x8xf32> to vector<2x8x1xf32>
    %250 = tpu.reciprocal %249 {approx = true} : vector<2x8x1xf32> -> vector<2x8x1xf32>
    %251 = vector.broadcast %250 : vector<2x8x1xf32> to vector<2x8x8xf32>
    %252 = arith.mulf %247, %251 : vector<2x8x8xf32>
    %253 = vector.extract_strided_slice %235 {offsets = [0, 0, 0], sizes = [2, 8, 8], strides = [1, 1, 1]} : vector<2x8x32xf32> to vector<2x8x8xf32>
    "tpu.trace_start"() <{level = 10 : i32, message = "bqk,bkd->bqd"}> : () -> ()
    %cst_85 = arith.constant dense<0.000000e+00> : vector<2x8x8xf32>
    %254 = tpu.matmul %252, %253, %cst_85 {dimension_numbers = #tpu.dot_dimension_numbers<[2], [1], [1], [2], [0, 0, 0, 1, 1, 2], [0], [0]>} : vector<2x8x8xf32>, vector<2x8x8xf32>, vector<2x8x8xf32> -> vector<2x8x8xf32>
    "tpu.trace_stop"() : () -> ()
    %255 = vector.shape_cast %254 : vector<2x8x8xf32> to vector<16x8xf32>
    %256 = vector.extract_strided_slice %231 {offsets = [0, 0, 8], sizes = [2, 8, 8], strides = [1, 1, 1]} : vector<2x8x32xf32> to vector<2x8x8xf32>
    %257 = vector.extract_strided_slice %233 {offsets = [0, 0, 8], sizes = [2, 8, 8], strides = [1, 1, 1]} : vector<2x8x32xf32> to vector<2x8x8xf32>
    "tpu.trace_start"() <{level = 10 : i32, message = "bqd,bkd->bqk"}> : () -> ()
    %cst_86 = arith.constant dense<0.000000e+00> : vector<2x8x8xf32>
    %258 = tpu.matmul %256, %257, %cst_86 {dimension_numbers = #tpu.dot_dimension_numbers<[2], [2], [1], [1], [0, 0, 0, 1, 1, 1], [0], [0]>} : vector<2x8x8xf32>, vector<2x8x8xf32>, vector<2x8x8xf32> -> vector<2x8x8xf32>
    "tpu.trace_stop"() : () -> ()
    %cst_87 = arith.constant 0.353553385 : f32
    %259 = vector.broadcast %cst_87 : f32 to vector<2x8x8xf32>
    %260 = arith.mulf %258, %259 : vector<2x8x8xf32>
    %261 = vector.broadcast %49 : vector<2x1x8xf32> to vector<2x8x8xf32>
    %262 = arith.addf %260, %261 : vector<2x8x8xf32>
    %cst_88 = arith.constant dense<0xFF800000> : vector<2x8xf32>
    %263 = vector.multi_reduction <maximumf>, %262, %cst_88 [2] : vector<2x8x8xf32> to vector<2x8xf32>
    %264 = vector.shape_cast %263 : vector<2x8xf32> to vector<2x8x1xf32>
    %265 = vector.broadcast %264 : vector<2x8x1xf32> to vector<2x8x8xf32>
    %266 = arith.subf %262, %265 : vector<2x8x8xf32>
    %267 = math.exp %266 : vector<2x8x8xf32>
    %cst_89 = arith.constant dense<0.000000e+00> : vector<2x8xf32>
    %268 = vector.multi_reduction <add>, %267, %cst_89 [2] : vector<2x8x8xf32> to vector<2x8xf32>
    %269 = vector.shape_cast %268 : vector<2x8xf32> to vector<2x8x1xf32>
    %270 = tpu.reciprocal %269 {approx = true} : vector<2x8x1xf32> -> vector<2x8x1xf32>
    %271 = vector.broadcast %270 : vector<2x8x1xf32> to vector<2x8x8xf32>
    %272 = arith.mulf %267, %271 : vector<2x8x8xf32>
    %273 = vector.extract_strided_slice %235 {offsets = [0, 0, 8], sizes = [2, 8, 8], strides = [1, 1, 1]} : vector<2x8x32xf32> to vector<2x8x8xf32>
    "tpu.trace_start"() <{level = 10 : i32, message = "bqk,bkd->bqd"}> : () -> ()
    %cst_90 = arith.constant dense<0.000000e+00> : vector<2x8x8xf32>
    %274 = tpu.matmul %272, %273, %cst_90 {dimension_numbers = #tpu.dot_dimension_numbers<[2], [1], [1], [2], [0, 0, 0, 1, 1, 2], [0], [0]>} : vector<2x8x8xf32>, vector<2x8x8xf32>, vector<2x8x8xf32> -> vector<2x8x8xf32>
    "tpu.trace_stop"() : () -> ()
    %275 = vector.shape_cast %274 : vector<2x8x8xf32> to vector<16x8xf32>
    %276 = vector.extract_strided_slice %231 {offsets = [0, 0, 16], sizes = [2, 8, 8], strides = [1, 1, 1]} : vector<2x8x32xf32> to vector<2x8x8xf32>
    %277 = vector.extract_strided_slice %233 {offsets = [0, 0, 16], sizes = [2, 8, 8], strides = [1, 1, 1]} : vector<2x8x32xf32> to vector<2x8x8xf32>
    "tpu.trace_start"() <{level = 10 : i32, message = "bqd,bkd->bqk"}> : () -> ()
    %cst_91 = arith.constant dense<0.000000e+00> : vector<2x8x8xf32>
    %278 = tpu.matmul %276, %277, %cst_91 {dimension_numbers = #tpu.dot_dimension_numbers<[2], [2], [1], [1], [0, 0, 0, 1, 1, 1], [0], [0]>} : vector<2x8x8xf32>, vector<2x8x8xf32>, vector<2x8x8xf32> -> vector<2x8x8xf32>
    "tpu.trace_stop"() : () -> ()
    %cst_92 = arith.constant 0.353553385 : f32
    %279 = vector.broadcast %cst_92 : f32 to vector<2x8x8xf32>
    %280 = arith.mulf %278, %279 : vector<2x8x8xf32>
    %281 = vector.broadcast %49 : vector<2x1x8xf32> to vector<2x8x8xf32>
    %282 = arith.addf %280, %281 : vector<2x8x8xf32>
    %cst_93 = arith.constant dense<0xFF800000> : vector<2x8xf32>
    %283 = vector.multi_reduction <maximumf>, %282, %cst_93 [2] : vector<2x8x8xf32> to vector<2x8xf32>
    %284 = vector.shape_cast %283 : vector<2x8xf32> to vector<2x8x1xf32>
    %285 = vector.broadcast %284 : vector<2x8x1xf32> to vector<2x8x8xf32>
    %286 = arith.subf %282, %285 : vector<2x8x8xf32>
    %287 = math.exp %286 : vector<2x8x8xf32>
    %cst_94 = arith.constant dense<0.000000e+00> : vector<2x8xf32>
    %288 = vector.multi_reduction <add>, %287, %cst_94 [2] : vector<2x8x8xf32> to vector<2x8xf32>
    %289 = vector.shape_cast %288 : vector<2x8xf32> to vector<2x8x1xf32>
    %290 = tpu.reciprocal %289 {approx = true} : vector<2x8x1xf32> -> vector<2x8x1xf32>
    %291 = vector.broadcast %290 : vector<2x8x1xf32> to vector<2x8x8xf32>
    %292 = arith.mulf %287, %291 : vector<2x8x8xf32>
    %293 = vector.extract_strided_slice %235 {offsets = [0, 0, 16], sizes = [2, 8, 8], strides = [1, 1, 1]} : vector<2x8x32xf32> to vector<2x8x8xf32>
    "tpu.trace_start"() <{level = 10 : i32, message = "bqk,bkd->bqd"}> : () -> ()
    %cst_95 = arith.constant dense<0.000000e+00> : vector<2x8x8xf32>
    %294 = tpu.matmul %292, %293, %cst_95 {dimension_numbers = #tpu.dot_dimension_numbers<[2], [1], [1], [2], [0, 0, 0, 1, 1, 2], [0], [0]>} : vector<2x8x8xf32>, vector<2x8x8xf32>, vector<2x8x8xf32> -> vector<2x8x8xf32>
    "tpu.trace_stop"() : () -> ()
    %295 = vector.shape_cast %294 : vector<2x8x8xf32> to vector<16x8xf32>
    %296 = vector.extract_strided_slice %231 {offsets = [0, 0, 24], sizes = [2, 8, 8], strides = [1, 1, 1]} : vector<2x8x32xf32> to vector<2x8x8xf32>
    %297 = vector.extract_strided_slice %233 {offsets = [0, 0, 24], sizes = [2, 8, 8], strides = [1, 1, 1]} : vector<2x8x32xf32> to vector<2x8x8xf32>
    "tpu.trace_start"() <{level = 10 : i32, message = "bqd,bkd->bqk"}> : () -> ()
    %cst_96 = arith.constant dense<0.000000e+00> : vector<2x8x8xf32>
    %298 = tpu.matmul %296, %297, %cst_96 {dimension_numbers = #tpu.dot_dimension_numbers<[2], [2], [1], [1], [0, 0, 0, 1, 1, 1], [0], [0]>} : vector<2x8x8xf32>, vector<2x8x8xf32>, vector<2x8x8xf32> -> vector<2x8x8xf32>
    "tpu.trace_stop"() : () -> ()
    %cst_97 = arith.constant 0.353553385 : f32
    %299 = vector.broadcast %cst_97 : f32 to vector<2x8x8xf32>
    %300 = arith.mulf %298, %299 : vector<2x8x8xf32>
    %301 = vector.broadcast %49 : vector<2x1x8xf32> to vector<2x8x8xf32>
    %302 = arith.addf %300, %301 : vector<2x8x8xf32>
    %cst_98 = arith.constant dense<0xFF800000> : vector<2x8xf32>
    %303 = vector.multi_reduction <maximumf>, %302, %cst_98 [2] : vector<2x8x8xf32> to vector<2x8xf32>
    %304 = vector.shape_cast %303 : vector<2x8xf32> to vector<2x8x1xf32>
    %305 = vector.broadcast %304 : vector<2x8x1xf32> to vector<2x8x8xf32>
    %306 = arith.subf %302, %305 : vector<2x8x8xf32>
    %307 = math.exp %306 : vector<2x8x8xf32>
    %cst_99 = arith.constant dense<0.000000e+00> : vector<2x8xf32>
    %308 = vector.multi_reduction <add>, %307, %cst_99 [2] : vector<2x8x8xf32> to vector<2x8xf32>
    %309 = vector.shape_cast %308 : vector<2x8xf32> to vector<2x8x1xf32>
    %310 = tpu.reciprocal %309 {approx = true} : vector<2x8x1xf32> -> vector<2x8x1xf32>
    %311 = vector.broadcast %310 : vector<2x8x1xf32> to vector<2x8x8xf32>
    %312 = arith.mulf %307, %311 : vector<2x8x8xf32>
    %313 = vector.extract_strided_slice %235 {offsets = [0, 0, 24], sizes = [2, 8, 8], strides = [1, 1, 1]} : vector<2x8x32xf32> to vector<2x8x8xf32>
    "tpu.trace_start"() <{level = 10 : i32, message = "bqk,bkd->bqd"}> : () -> ()
    %cst_100 = arith.constant dense<0.000000e+00> : vector<2x8x8xf32>
    %314 = tpu.matmul %312, %313, %cst_100 {dimension_numbers = #tpu.dot_dimension_numbers<[2], [1], [1], [2], [0, 0, 0, 1, 1, 2], [0], [0]>} : vector<2x8x8xf32>, vector<2x8x8xf32>, vector<2x8x8xf32> -> vector<2x8x8xf32>
    "tpu.trace_stop"() : () -> ()
    %315 = vector.shape_cast %314 : vector<2x8x8xf32> to vector<16x8xf32>
    %316 = tpu.concatenate %255, %275, %295, %315 in 1 : vector<16x8xf32>, vector<16x8xf32>, vector<16x8xf32>, vector<16x8xf32> -> vector<16x32xf32>
    %317 = arith.truncf %316 : vector<16x32xf32> to vector<16x32xbf16>
    %c1_101 = arith.constant 1 : index
    %c0_102 = arith.constant 0 : index
    %c0_103 = arith.constant 0 : index
    %318 = vector.load %arg5[%c1_101, %c0_102, %c0_103] : memref<2x32x32xbf16, #tpu.memory_space<vmem>>, vector<1x32x32xbf16>
    %319 = vector.shape_cast %318 : vector<1x32x32xbf16> to vector<32x32xbf16>
    %cst_104 = arith.constant dense<0.000000e+00> : vector<16x32xf32>
    %320 = tpu.matmul %317, %319, %cst_104 {dimension_numbers = #tpu.dot_dimension_numbers<[1], [0], [0], [1], [0, 0, 1, 1], [], []>} : vector<16x32xbf16>, vector<32x32xbf16>, vector<16x32xf32> -> vector<16x32xf32>
    %c4_105 = arith.constant 4 : index
    %c96_106 = arith.constant 96 : index
    %321 = vector.load %arg3[%c4_105, %c96_106] : memref<8x128xf32, #tpu.memory_space<vmem>>, vector<1x32xf32>
    %322 = vector.broadcast %321 : vector<1x32xf32> to vector<16x32xf32>
    %323 = arith.addf %320, %322 : vector<16x32xf32>
    %324 = arith.addf %323, %222 : vector<16x32xf32>
    %c5 = arith.constant 5 : index
    %c0_107 = arith.constant 0 : index
    %325 = vector.load %arg3[%c5, %c0_107] : memref<8x128xf32, #tpu.memory_space<vmem>>, vector<1x32xf32>
    %c5_108 = arith.constant 5 : index
    %c32_109 = arith.constant 32 : index
    %326 = vector.load %arg3[%c5_108, %c32_109] : memref<8x128xf32, #tpu.memory_space<vmem>>, vector<1x32xf32>
    %cst_110 = arith.constant dense<0.000000e+00> : vector<16xf32>
    %327 = vector.multi_reduction <add>, %324, %cst_110 [1] : vector<16x32xf32> to vector<16xf32>
    %328 = vector.shape_cast %327 : vector<16xf32> to vector<16x1xf32>
    %cst_111 = arith.constant 3.200000e+01 : f32
    %329 = vector.broadcast %cst_111 : f32 to vector<16x1xf32>
    %330 = arith.divf %328, %329 : vector<16x1xf32>
    %331 = vector.broadcast %330 : vector<16x1xf32> to vector<16x32xf32>
    %332 = arith.subf %324, %331 : vector<16x32xf32>
    %333 = arith.mulf %332, %332 : vector<16x32xf32>
    %cst_112 = arith.constant dense<0.000000e+00> : vector<16xf32>
    %334 = vector.multi_reduction <add>, %333, %cst_112 [1] : vector<16x32xf32> to vector<16xf32>
    %335 = vector.shape_cast %334 : vector<16xf32> to vector<16x1xf32>
    %cst_113 = arith.constant 3.200000e+01 : f32
    %336 = vector.broadcast %cst_113 : f32 to vector<16x1xf32>
    %337 = arith.divf %335, %336 : vector<16x1xf32>
    %338 = vector.broadcast %330 : vector<16x1xf32> to vector<16x32xf32>
    %339 = arith.subf %324, %338 : vector<16x32xf32>
    %cst_114 = arith.constant 9.99999996E-13 : f32
    %340 = vector.broadcast %cst_114 : f32 to vector<16x1xf32>
    %341 = arith.addf %337, %340 : vector<16x1xf32>
    %342 = math.rsqrt %341 : vector<16x1xf32>
    %343 = vector.broadcast %342 : vector<16x1xf32> to vector<16x32xf32>
    %344 = arith.mulf %339, %343 : vector<16x32xf32>
    %345 = vector.broadcast %325 : vector<1x32xf32> to vector<16x32xf32>
    %346 = arith.mulf %344, %345 : vector<16x32xf32>
    %347 = vector.broadcast %326 : vector<1x32xf32> to vector<16x32xf32>
    %348 = arith.addf %346, %347 : vector<16x32xf32>
    %349 = arith.truncf %348 : vector<16x32xf32> to vector<16x32xbf16>
    %c1_115 = arith.constant 1 : index
    %c0_116 = arith.constant 0 : index
    %c0_117 = arith.constant 0 : index
    %350 = vector.load %arg6[%c1_115, %c0_116, %c0_117] : memref<2x32x64xbf16, #tpu.memory_space<vmem>>, vector<1x32x64xbf16>
    %351 = vector.shape_cast %350 : vector<1x32x64xbf16> to vector<32x64xbf16>
    %cst_118 = arith.constant dense<0.000000e+00> : vector<16x64xf32>
    %352 = tpu.matmul %349, %351, %cst_118 {dimension_numbers = #tpu.dot_dimension_numbers<[1], [0], [0], [1], [0, 0, 1, 1], [], []>} : vector<16x32xbf16>, vector<32x64xbf16>, vector<16x64xf32> -> vector<16x64xf32>
    %c6 = arith.constant 6 : index
    %c0_119 = arith.constant 0 : index
    %353 = vector.load %arg3[%c6, %c0_119] : memref<8x128xf32, #tpu.memory_space<vmem>>, vector<1x64xf32>
    %354 = vector.broadcast %353 : vector<1x64xf32> to vector<16x64xf32>
    %355 = arith.addf %352, %354 : vector<16x64xf32>
    %cst_120 = arith.constant 5.000000e-01 : f32
    %356 = vector.broadcast %cst_120 : f32 to vector<16x64xf32>
    %357 = arith.mulf %356, %355 : vector<16x64xf32>
    %cst_121 = arith.constant 0.707106769 : f32
    %358 = vector.broadcast %cst_121 : f32 to vector<16x64xf32>
    %359 = arith.mulf %355, %358 : vector<16x64xf32>
    %360 = math.erf %359 : vector<16x64xf32>
    %cst_122 = arith.constant 1.000000e+00 : f32
    %361 = vector.broadcast %cst_122 : f32 to vector<16x64xf32>
    %362 = arith.addf %361, %360 : vector<16x64xf32>
    %363 = arith.mulf %357, %362 : vector<16x64xf32>
    %364 = arith.truncf %363 : vector<16x64xf32> to vector<16x64xbf16>
    %c1_123 = arith.constant 1 : index
    %c0_124 = arith.constant 0 : index
    %c0_125 = arith.constant 0 : index
    %365 = vector.load %arg7[%c1_123, %c0_124, %c0_125] : memref<2x64x32xbf16, #tpu.memory_space<vmem>>, vector<1x64x32xbf16>
    %366 = vector.shape_cast %365 : vector<1x64x32xbf16> to vector<64x32xbf16>
    %cst_126 = arith.constant dense<0.000000e+00> : vector<16x32xf32>
    %367 = tpu.matmul %364, %366, %cst_126 {dimension_numbers = #tpu.dot_dimension_numbers<[1], [0], [0], [1], [0, 0, 1, 1], [], []>} : vector<16x64xbf16>, vector<64x32xbf16>, vector<16x32xf32> -> vector<16x32xf32>
    %c6_127 = arith.constant 6 : index
    %c64_128 = arith.constant 64 : index
    %368 = vector.load %arg3[%c6_127, %c64_128] : memref<8x128xf32, #tpu.memory_space<vmem>>, vector<1x32xf32>
    %369 = vector.broadcast %368 : vector<1x32xf32> to vector<16x32xf32>
    %370 = arith.addf %367, %369 : vector<16x32xf32>
    %371 = arith.addf %370, %348 : vector<16x32xf32>
    %c5_129 = arith.constant 5 : index
    %c64_130 = arith.constant 64 : index
    %372 = vector.load %arg3[%c5_129, %c64_130] : memref<8x128xf32, #tpu.memory_space<vmem>>, vector<1x32xf32>
    %c5_131 = arith.constant 5 : index
    %c96_132 = arith.constant 96 : index
    %373 = vector.load %arg3[%c5_131, %c96_132] : memref<8x128xf32, #tpu.memory_space<vmem>>, vector<1x32xf32>
    %cst_133 = arith.constant dense<0.000000e+00> : vector<16xf32>
    %374 = vector.multi_reduction <add>, %371, %cst_133 [1] : vector<16x32xf32> to vector<16xf32>
    %375 = vector.shape_cast %374 : vector<16xf32> to vector<16x1xf32>
    %cst_134 = arith.constant 3.200000e+01 : f32
    %376 = vector.broadcast %cst_134 : f32 to vector<16x1xf32>
    %377 = arith.divf %375, %376 : vector<16x1xf32>
    %378 = vector.broadcast %377 : vector<16x1xf32> to vector<16x32xf32>
    %379 = arith.subf %371, %378 : vector<16x32xf32>
    %380 = arith.mulf %379, %379 : vector<16x32xf32>
    %cst_135 = arith.constant dense<0.000000e+00> : vector<16xf32>
    %381 = vector.multi_reduction <add>, %380, %cst_135 [1] : vector<16x32xf32> to vector<16xf32>
    %382 = vector.shape_cast %381 : vector<16xf32> to vector<16x1xf32>
    %cst_136 = arith.constant 3.200000e+01 : f32
    %383 = vector.broadcast %cst_136 : f32 to vector<16x1xf32>
    %384 = arith.divf %382, %383 : vector<16x1xf32>
    %385 = vector.broadcast %377 : vector<16x1xf32> to vector<16x32xf32>
    %386 = arith.subf %371, %385 : vector<16x32xf32>
    %cst_137 = arith.constant 9.99999996E-13 : f32
    %387 = vector.broadcast %cst_137 : f32 to vector<16x1xf32>
    %388 = arith.addf %384, %387 : vector<16x1xf32>
    %389 = math.rsqrt %388 : vector<16x1xf32>
    %390 = vector.broadcast %389 : vector<16x1xf32> to vector<16x32xf32>
    %391 = arith.mulf %386, %390 : vector<16x32xf32>
    %392 = vector.broadcast %372 : vector<1x32xf32> to vector<16x32xf32>
    %393 = arith.mulf %391, %392 : vector<16x32xf32>
    %394 = vector.broadcast %373 : vector<1x32xf32> to vector<16x32xf32>
    %395 = arith.addf %393, %394 : vector<16x32xf32>
    %c0_138 = arith.constant 0 : index
    %c0_139 = arith.constant 0 : index
    %396 = vector.load %arg9[%c0_138, %c0_139] : memref<16x32xf32, #tpu.memory_space<vmem>>, vector<16x32xf32>
    tpu.vector_store %arg9[%c0_138, %c0_139], %395 {strides = array<i32>} : memref<16x32xf32, #tpu.memory_space<vmem>>, vector<16x32xf32>,
    %397 = vector.shape_cast %395 : vector<16x32xf32> to vector<2x8x32xf32>
    %398 = vector.extract_strided_slice %397 {offsets = [0, 0, 0], sizes = [2, 1, 32], strides = [1, 1, 1]} : vector<2x8x32xf32> to vector<2x1x32xf32>
    %399 = vector.shape_cast %398 : vector<2x1x32xf32> to vector<2x32xf32>
    %400 = arith.truncf %399 : vector<2x32xf32> to vector<2x32xbf16>
    %c0_140 = arith.constant 0 : index
    %c0_141 = arith.constant 0 : index
    %401 = vector.load %arg8[%c0_140, %c0_141] : memref<32x32xbf16, #tpu.memory_space<vmem>>, vector<32x32xbf16>
    %cst_142 = arith.constant dense<0.000000e+00> : vector<2x32xf32>
    %402 = tpu.matmul %400, %401, %cst_142 {dimension_numbers = #tpu.dot_dimension_numbers<[1], [0], [0], [1], [0, 0, 1, 1], [], []>} : vector<2x32xbf16>, vector<32x32xbf16>, vector<2x32xf32> -> vector<2x32xf32>
    %c0_143 = arith.constant 0 : index
    %c64_144 = arith.constant 64 : index
    %403 = vector.load %arg3[%c0_143, %c64_144] : memref<8x128xf32, #tpu.memory_space<vmem>>, vector<1x32xf32>
    %404 = vector.broadcast %403 : vector<1x32xf32> to vector<2x32xf32>
    %405 = arith.addf %402, %404 : vector<2x32xf32>
    %406 = math.tanh %405 : vector<2x32xf32>
    %c0_145 = arith.constant 0 : index
    %c0_146 = arith.constant 0 : index
    %407 = vector.load %arg10[%c0_145, %c0_146] : memref<2x32xf32, #tpu.memory_space<vmem>>, vector<2x32xf32>
    tpu.vector_store %arg10[%c0_145, %c0_146], %406 {strides = array<i32>} : memref<2x32xf32, #tpu.memory_space<vmem>>, vector<2x32xf32>,
    return
  }
}

</mosaic_0001>

<llo_original>
// kernel: custom_bert_forward.1
$region0: #{custom_bert_forward.1}
  #allocation0 [shape = 'u32[]', space=smem, size = 0x4, offset = 0x4, fixed_abs, tag = 'smem constant byte address 0x4 - core index']
  #allocation1 [shape = 'u32[144,128]{1,0:T(1,128)}', space=vmem, size = 0x12000, scoped, tag = 'internal scratch']
  %s0 = inlined_call_operand.vmem [shape: s32[16,3], index: 0, kind: input, shape index: {}]
  %s1 = inlined_call_operand.vmem [shape: f32[2,1,8], index: 1, kind: input, shape index: {}]
  %s2 = inlined_call_operand.vmem [shape: f32[128,32], index: 2, kind: input, shape index: {}]
  %s3 = inlined_call_operand.vmem [shape: f32[8,128], index: 3, kind: input, shape index: {}]
  %s4 = inlined_call_operand.vmem [shape: bf16[2,32,96], index: 4, kind: input, shape index: {}]
  %s5 = inlined_call_operand.vmem [shape: bf16[2,32,32], index: 5, kind: input, shape index: {}]
  %s6 = inlined_call_operand.vmem [shape: bf16[2,32,64], index: 6, kind: input, shape index: {}]
  %s7 = inlined_call_operand.vmem [shape: bf16[2,64,32], index: 7, kind: input, shape index: {}]
  %s8 = inlined_call_operand.vmem [shape: bf16[32,32], index: 8, kind: input, shape index: {}]
  %s9 = inlined_call_operand.hbm [shape: f32[16,32], index: 9, kind: output, shape index: {0}]
  %s10 = inlined_call_operand.hbm [shape: f32[2,32], index: 10, kind: output, shape index: {1}]
  %11 = xla_tuple %s9, %s10
  %s12 = sld [smem:[#allocation0]]
  $region54: #{custom_bert_forward.1} parent=0
    _
  %s14 = ssub.s32 1, %s12
  %s15 = scalar_select 0, %s14, %s12
  $region1: #{custom_bert_forward.1} parent=0
    #allocation2 [shape = 'u8[8192]{0}', space=vmem, size = 0x2000, scoped, tag = 'output window, operand 0, single buffered']
    #allocation3 [shape = 's32[1]{0}', space=sflag, size = 0x4, scoped, tag = 'scoped memory for custom_bert_forward.1']
    #allocation4 [shape = 'u8[1024]{0}', space=vmem, size = 0x400, scoped, tag = 'output window, operand 1, single buffered']
    #allocation5 [shape = 's32[1]{0}', space=sflag, size = 0x4, scoped, tag = 'scoped memory for custom_bert_forward.1']
    %16 = vsyncpa [#allocation3], 0
    %17 = vsyncpa [#allocation5], 0
    // Predicated region
    $region2: #{custom_bert_forward.1} parent=1 // pred_check
      _
    $region3: #{custom_bert_forward.1} parent=1 // pred_check_branch
      %19 = sbr.rel (0) target = $region5
    $region4: #{custom_bert_forward.1} parent=1 // pred_region
      _
    $region5: #{custom_bert_forward.1} parent=1 // pred_fallthru
      _
    // Predicated region
    $region6: #{custom_bert_forward.1} parent=1 // pred_check
      _
    $region7: #{custom_bert_forward.1} parent=1 // pred_check_branch
      %21 = sbr.rel (0) target = $region9
    $region8: #{custom_bert_forward.1} parent=1 // pred_region
      _
    $region9: #{custom_bert_forward.1} parent=1 // pred_fallthru
      _
    // Predicated region
    $region10: #{custom_bert_forward.1} parent=1 // pred_check
      _
    $region11: #{custom_bert_forward.1} parent=1 // pred_check_branch
      %23 = sbr.rel (0) target = $region13
    $region12: #{custom_bert_forward.1} parent=1 // pred_region
      _
    $region13: #{custom_bert_forward.1} parent=1 // pred_fallthru
      _
    // Predicated region
    $region14: #{custom_bert_forward.1} parent=1 // pred_check
      _
    $region15: #{custom_bert_forward.1} parent=1 // pred_check_branch
      %25 = sbr.rel (0) target = $region17
    $region16: #{custom_bert_forward.1} parent=1 // pred_region
      _
    $region17: #{custom_bert_forward.1} parent=1 // pred_fallthru
      _
    // Predicated region
    $region18: #{custom_bert_forward.1} parent=1 // pred_check
      _
    $region19: #{custom_bert_forward.1} parent=1 // pred_check_branch
      %27 = sbr.rel (0) target = $region21
    $region20: #{custom_bert_forward.1} parent=1 // pred_region
      _
    $region21: #{custom_bert_forward.1} parent=1 // pred_fallthru
      _
    // Predicated region
    $region22: #{custom_bert_forward.1} parent=1 // pred_check
      _
    $region23: #{custom_bert_forward.1} parent=1 // pred_check_branch
      %29 = sbr.rel (0) target = $region25
    $region24: #{custom_bert_forward.1} parent=1 // pred_region
      _
    $region25: #{custom_bert_forward.1} parent=1 // pred_fallthru
      _
    // Predicated region
    $region26: #{custom_bert_forward.1} parent=1 // pred_check
      _
    $region27: #{custom_bert_forward.1} parent=1 // pred_check_branch
      %31 = sbr.rel (0) target = $region29
    $region28: #{custom_bert_forward.1} parent=1 // pred_region
      _
    $region29: #{custom_bert_forward.1} parent=1 // pred_fallthru
      _
    // Predicated region
    $region30: #{custom_bert_forward.1} parent=1 // pred_check
      _
    $region31: #{custom_bert_forward.1} parent=1 // pred_check_branch
      %33 = sbr.rel (0) target = $region33
    $region32: #{custom_bert_forward.1} parent=1 // pred_region
      _
    $region33: #{custom_bert_forward.1} parent=1 // pred_fallthru
      _
    // Predicated region
    $region34: #{custom_bert_forward.1} parent=1 // pred_check
      _
    $region35: #{custom_bert_forward.1} parent=1 // pred_check_branch
      %35 = sbr.rel (0) target = $region37
    $region36: #{custom_bert_forward.1} parent=1 // pred_region
      _
    $region37: #{custom_bert_forward.1} parent=1 // pred_fallthru
      _
    %v37 = vld [vmem:[%s0] sm:$0xff]
    %v38 = vld [vmem:[%s0 + $0x8] sm:$0xff]
    %v39 = vadd.s32 %v37, 50
    %v40 = vadd.s32 %v38, 50
    %v41 = vadd.s32 %v37, 66
    %v42 = vadd.s32 %v38, 66
    %v43 = vlaneseq
    %v44 = vand.u32 %v43, 127
    %45 = vset.pattern.permute.xlu0 0
    %46 = vperm.xlu0 %45, %v37
    %v47 = vpop.permute.xlu0 %46
    %48 = vset.pattern.permute.xlu0 0
    %49 = vperm.xlu0 %48, %v38
    %v50 = vpop.permute.xlu0 %49
    %vm51 = vcmp.eq.s32.totalorder %v44, %v47
    %vm52 = vcmp.eq.s32.totalorder %v44, %v50
    %53 = vset.pattern.permute.xlu0 1
    %54 = vperm.xlu0 %53, %v39
    %v55 = vpop.permute.xlu0 %54
    %56 = vset.pattern.permute.xlu0 1
    %57 = vperm.xlu0 %56, %v40
    %v58 = vpop.permute.xlu0 %57
    %vm59 = vcmp.eq.s32.totalorder %v44, %v55
    %vm60 = vcmp.eq.s32.totalorder %v44, %v58
    %vm61 = vmor %vm51, %vm59
    %vm62 = vmor %vm52, %vm60
    %63 = vset.pattern.permute.xlu0 2
    %64 = vperm.xlu0 %63, %v41
    %v65 = vpop.permute.xlu0 %64
    %66 = vset.pattern.permute.xlu0 2
    %67 = vperm.xlu0 %66, %v42
    %v68 = vpop.permute.xlu0 %67
    %vm69 = vcmp.eq.s32.totalorder %v44, %v65
    %vm70 = vcmp.eq.s32.totalorder %v44, %v68
    %vm71 = vmor %vm61, %vm69
    %vm72 = vmor %vm62, %vm70
    %v73 = vsel %vm71, 1, 0
    %v74 = vsel %vm72, 1, 0
    %v75 = vcvt.s32.f32 %v73
    %v76 = vcvt.s32.f32 %v74
    %v77 = vld [vmem:[%s2] sm:$0xff]
    %v78 = vld [vmem:[%s2 + $0x8] sm:$0xff]
    %v79 = vld [vmem:[%s2 + $0x10] sm:$0xff]
    %v80 = vld [vmem:[%s2 + $0x18] sm:$0xff]
    %v81 = vld [vmem:[%s2 + $0x20] sm:$0xff]
    %v82 = vld [vmem:[%s2 + $0x28] sm:$0xff]
    %v83 = vld [vmem:[%s2 + $0x30] sm:$0xff]
    %v84 = vld [vmem:[%s2 + $0x38] sm:$0xff]
    %v85 = vld [vmem:[%s2 + $0x40] sm:$0xff]
    %v86 = vld [vmem:[%s2 + $0x48] sm:$0xff]
    %v87 = vld [vmem:[%s2 + $0x50] sm:$0xff]
    %v88 = vld [vmem:[%s2 + $0x58] sm:$0xff]
    %v89 = vld [vmem:[%s2 + $0x60] sm:$0xff]
    %v90 = vld [vmem:[%s2 + $0x68] sm:$0xff]
    %v91 = vld [vmem:[%s2 + $0x70] sm:$0xff]
    %v92 = vld [vmem:[%s2 + $0x78] sm:$0xff]
    %93 = vmatprep.subr.mxu0 0.0
    %94 = vmatpush1.msra.mxu0 %v92
    %95 = vmatprep.subr.mxu0 0.0
    %96 = vmatpush1.msra.mxu0 %v91
    %97 = vmatprep.subr.mxu0 0.0
    %98 = vmatpush1.msra.mxu0 %v90
    %99 = vmatprep.subr.mxu0 0.0
    %100 = vmatpush1.msra.mxu0 %v89
    %101 = vmatprep.subr.mxu0 0.0
    %102 = vmatpush1.msra.mxu0 %v88
    %103 = vmatprep.subr.mxu0 0.0
    %104 = vmatpush1.msra.mxu0 %v87
    %105 = vmatprep.subr.mxu0 0.0
    %106 = vmatpush1.msra.mxu0 %v86
    %107 = vmatprep.subr.mxu0 0.0
    %108 = vmatpush1.msra.mxu0 %v85
    %109 = vmatprep.subr.mxu0 0.0
    %110 = vmatpush1.msra.mxu0 %v84
    %111 = vmatprep.subr.mxu0 0.0
    %112 = vmatpush1.msra.mxu0 %v83
    %113 = vmatprep.subr.mxu0 0.0
    %114 = vmatpush1.msra.mxu0 %v82
    %115 = vmatprep.subr.mxu0 0.0
    %116 = vmatpush1.msra.mxu0 %v81
    %117 = vmatprep.subr.mxu0 0.0
    %118 = vmatpush1.msra.mxu0 %v80
    %119 = vmatprep.subr.mxu0 0.0
    %120 = vmatpush1.msra.mxu0 %v79
    %121 = vmatprep.subr.mxu0 0.0
    %122 = vmatpush1.msra.mxu0 %v78
    %123 = vmatprep.subr.mxu0 0.0
    %124 = vmatpush1.msra.mxu0 %v77
    %125 = vmatprep.subr.mxu0 0.0
    %126 = vmatpush2.msra.mxu0 0.0
    %127 = vmatprep.subr.mxu0 0.0
    %128 = vmatpush2.msra.mxu0 0.0
    %129 = vmatprep.subr.mxu0 0.0
    %130 = vmatpush2.msra.mxu0 0.0
    %131 = vmatprep.subr.mxu0 0.0
    %132 = vmatpush2.msra.mxu0 0.0
    %133 = vmatprep.subr.mxu0 0.0
    %134 = vmatpush2.msra.mxu0 0.0
    %135 = vmatprep.subr.mxu0 0.0
    %136 = vmatpush2.msra.mxu0 0.0
    %137 = vmatprep.subr.mxu0 0.0
    %138 = vmatpush2.msra.mxu0 0.0
    %139 = vmatprep.subr.mxu0 0.0
    %140 = vmatpush2.msra.mxu0 0.0
    %141 = vmatprep.subr.mxu0 0.0
    %142 = vmatpush2.msra.mxu0 0.0
    %143 = vmatprep.subr.mxu0 0.0
    %144 = vmatpush2.msra.mxu0 0.0
    %145 = vmatprep.subr.mxu0 0.0
    %146 = vmatpush2.msra.mxu0 0.0
    %147 = vmatprep.subr.mxu0 0.0
    %148 = vmatpush2.msra.mxu0 0.0
    %149 = vmatprep.subr.mxu0 0.0
    %150 = vmatpush2.msra.mxu0 0.0
    %151 = vmatprep.subr.mxu0 0.0
    %152 = vmatpush2.msra.mxu0 0.0
    %153 = vmatprep.subr.mxu0 0.0
    %154 = vmatpush2.msra.mxu0 0.0
    %155 = vmatprep.subr.mxu0 0.0
    %156 = vmatpush2.msra.mxu0 0.0
    %157 = vmatprep.mubr.f32.mxu0 0.0
    %158 = vmatmul.mubr.f32.gmra.mxu0 %v75
    %v159 = vpop.f32.mrf.mxu0
    %v160 = vadd.f32 0.0, %v159
    %v161 = vpop.f32.mrf.mxu0
    %162 = vmatprep.mubr.f32.mxu0 0.0
    %163 = vmatmul.mubr.f32.gmra.mxu0 %v76
    %v164 = vpop.f32.mrf.mxu0
    %v165 = vadd.f32 0.0, %v164
    %v166 = vpop.f32.mrf.mxu0
    %167 = vdwg.mxu0
    %v168 = vld [vmem:[%s3] sm:$0x1]
    %vm169 = vcmask 261120
    %v170 = vsel %vm169, %v160, 0.0
    %171 = vadd.xlane.f32.xlu0 %v170
    %v172 = vpop.xlane.xlu0 %171
    %v173 = vsel %vm169, %v165, 0.0
    %174 = vadd.xlane.f32.xlu0 %v173
    %v175 = vpop.xlane.xlu0 %174
    %v176 = vrcp.pop 32.0
    %v177 = vmul.f32 %v172, %v176
    %v178 = vmul.f32 %v175, %v176
    %v179 = vsub.f32 %v160, %v177
    %v180 = vsub.f32 %v165, %v178
    %v181 = vmul.f32 %v179, %v179
    %v182 = vmul.f32 %v180, %v180
    %v183 = vsel %vm169, %v181, 0.0
    %184 = vadd.xlane.f32.xlu0 %v183
    %v185 = vpop.xlane.xlu0 %184
    %v186 = vsel %vm169, %v182, 0.0
    %187 = vadd.xlane.f32.xlu0 %v186
    %v188 = vpop.xlane.xlu0 %187
    %v189 = vmul.f32 %v185, %v176
    %v190 = vmul.f32 %v188, %v176
    %v191 = vadd.f32 %v189, 1e-12
    %v192 = vadd.f32 %v190, 1e-12
    %v193 = vrsqrt.pop %v191
    %v194 = vrsqrt.pop %v192
    %v195 = vmul.f32 %v179, %v193
    %v196 = vmul.f32 %v180, %v194
    %v197 = vlaneseq
    %v198 = vshrl.u32 %v197, 7
    %v199 = vsub.s32 0, %v198
    %v200 = vrot.slane %v168, %v199
    %v201 = vmul.f32 %v195, %v200
    %v202 = vmul.f32 %v196, %v200
    %204 = vrot.lane.b32.xlu0 %v200, 96
    %v205 = vpop.permute.xlu0 %204
    %v207 = vadd.f32 %v201, %v205
    %v208 = vadd.f32 %v202, %v205
    %v209 = vld [vmem:[%s1] sm:$0x1]
    %v210 = vld [vmem:[%s1 + $0x1] sm:$0x1]
    %v211 = vsub.f32 1.0, %v209
    %v212 = vsub.f32 1.0, %v210
    %v213 = vmul.f32 %v211, -3.4028235e+38
    %v214 = vmul.f32 %v212, -3.4028235e+38
    %v215 = vpack.c.bf16 %v208, %v207
    %v216 = vld [vmem:[%s4] sm:$0xf]
    %v217 = vld [vmem:[%s4 + $0x4] sm:$0xf]
    %v218 = vld [vmem:[%s4 + $0x8] sm:$0xf]
    %v219 = vld [vmem:[%s4 + $0xc] sm:$0xf]
    %v220 = vld [vmem:[%s3 + $0x1] sm:$0x1]
    %v221 = vlaneseq
    %v222 = vshrl.u32 %v221, 7
    %v223 = vsub.s32 0, %v222
    %v224 = vrot.slane %v220, %v223
    %v229 = vunpack.c.l.b16 %v216
    %v230 = vunpack.c.l.b16 %v217
    %v231 = vunpack.c.l.b16 %v218
    %v232 = vunpack.c.l.b16 %v219
    %v233 = vpack.c.b16 %v230, %v229
    %v234 = vpack.c.b16 %v232, %v231
    %v238 = vsel %vm169, %v215, 0
    %240 = vmatprep.subr.bf16.mxu0 0
    %241 = vmatpush1.bf16.msra.mxu0 0
    %242 = vmatprep.subr.bf16.mxu0 0
    %243 = vmatpush1.bf16.msra.mxu0 0
    %244 = vmatprep.subr.bf16.mxu0 0
    %245 = vmatpush1.bf16.msra.mxu0 0
    %246 = vmatprep.subr.bf16.mxu0 0
    %247 = vmatpush1.bf16.msra.mxu0 0
    %248 = vmatprep.subr.bf16.mxu0 0
    %249 = vmatpush1.bf16.msra.mxu0 0
    %250 = vmatprep.subr.bf16.mxu0 0
    %251 = vmatpush1.bf16.msra.mxu0 0
    %252 = vmatprep.subr.bf16.mxu0 0
    %253 = vmatpush1.bf16.msra.mxu0 %v234
    %254 = vmatprep.subr.bf16.mxu0 0
    %255 = vmatpush1.bf16.msra.mxu0 %v233
    %256 = vmatprep.subr.bf16.mxu0 0
    %257 = vmatpush2.bf16.msra.mxu0 0
    %258 = vmatprep.subr.bf16.mxu0 0
    %259 = vmatpush2.bf16.msra.mxu0 0
    %260 = vmatprep.subr.bf16.mxu0 0
    %261 = vmatpush2.bf16.msra.mxu0 0
    %262 = vmatprep.subr.bf16.mxu0 0
    %263 = vmatpush2.bf16.msra.mxu0 0
    %264 = vmatprep.subr.bf16.mxu0 0
    %265 = vmatpush2.bf16.msra.mxu0 0
    %266 = vmatprep.subr.bf16.mxu0 0
    %267 = vmatpush2.bf16.msra.mxu0 0
    %268 = vmatprep.subr.bf16.mxu0 0
    %269 = vmatpush2.bf16.msra.mxu0 0
    %270 = vmatprep.subr.bf16.mxu0 0
    %271 = vmatpush2.bf16.msra.mxu0 0
    %272 = vmatprep.mubr.bf16.mxu0 0
    %273 = vmatmul.mubr.bf16.gmra.mxu0 %v238
    %v274 = vpop.f32.mrf.mxu0
    %v275 = vadd.f32 %v224, %v274
    %v276 = vpop.f32.mrf.mxu0
    %v277 = vpop.f32.mrf.mxu0
    %v278 = vadd.f32 %v224, %v277
    %v279 = vpop.f32.mrf.mxu0
    %280 = vdwg.mxu0
    %282 = vrot.lane.b32.xlu0 %v275, 96
    %v283 = vpop.permute.xlu0 %282
    %vm284 = vcmask 64512
    %v285 = vsel %vm284, %v275, 0
    %v287 = vsel %vm284, %v283, 0
    %289 = vmatprep.subr.mxu0 0.0
    %290 = vmatpush1.xpose.msra.mxu0 0.0
    %291 = vmatprep.subr.mxu0 0.0
    %292 = vmatpush1.xpose.msra.mxu0 0.0
    %293 = vmatprep.subr.mxu0 0.0
    %294 = vmatpush1.xpose.msra.mxu0 0.0
    %295 = vmatprep.subr.mxu0 0.0
    %296 = vmatpush1.xpose.msra.mxu0 0.0
    %297 = vmatprep.subr.mxu0 0.0
    %298 = vmatpush1.xpose.msra.mxu0 0.0
    %299 = vmatprep.subr.mxu0 0.0
    %300 = vmatpush1.xpose.msra.mxu0 0.0
    %301 = vmatprep.subr.mxu0 0.0
    %302 = vmatpush1.xpose.msra.mxu0 0.0
    %303 = vmatprep.subr.mxu0 0.0
    %304 = vmatpush1.xpose.msra.mxu0 0.0
    %305 = vmatprep.subr.mxu0 0.0
    %306 = vmatpush1.xpose.msra.mxu0 0.0
    %307 = vmatprep.subr.mxu0 0.0
    %308 = vmatpush1.xpose.msra.mxu0 0.0
    %309 = vmatprep.subr.mxu0 0.0
    %310 = vmatpush1.xpose.msra.mxu0 0.0
    %311 = vmatprep.subr.mxu0 0.0
    %312 = vmatpush1.xpose.msra.mxu0 0.0
    %313 = vmatprep.subr.mxu0 0.0
    %314 = vmatpush1.xpose.msra.mxu0 0.0
    %315 = vmatprep.subr.mxu0 0.0
    %316 = vmatpush1.xpose.msra.mxu0 0.0
    %317 = vmatprep.subr.mxu0 0.0
    %318 = vmatpush1.xpose.msra.mxu0 0.0
    %319 = vmatprep.subr.mxu0 0.0
    %320 = vmatpush1.xpose.msra.mxu0 %v287
    %321 = vmatprep.subr.mxu0 0.0
    %322 = vmatpush2.xpose.msra.mxu0 0.0
    %323 = vmatprep.subr.mxu0 0.0
    %324 = vmatpush2.xpose.msra.mxu0 0.0
    %325 = vmatprep.subr.mxu0 0.0
    %326 = vmatpush2.xpose.msra.mxu0 0.0
    %327 = vmatprep.subr.mxu0 0.0
    %328 = vmatpush2.xpose.msra.mxu0 0.0
    %329 = vmatprep.subr.mxu0 0.0
    %330 = vmatpush2.xpose.msra.mxu0 0.0
    %331 = vmatprep.subr.mxu0 0.0
    %332 = vmatpush2.xpose.msra.mxu0 0.0
    %333 = vmatprep.subr.mxu0 0.0
    %334 = vmatpush2.xpose.msra.mxu0 0.0
    %335 = vmatprep.subr.mxu0 0.0
    %336 = vmatpush2.xpose.msra.mxu0 0.0
    %337 = vmatprep.subr.mxu0 0.0
    %338 = vmatpush2.xpose.msra.mxu0 0.0
    %339 = vmatprep.subr.mxu0 0.0
    %340 = vmatpush2.xpose.msra.mxu0 0.0
    %341 = vmatprep.subr.mxu0 0.0
    %342 = vmatpush2.xpose.msra.mxu0 0.0
    %343 = vmatprep.subr.mxu0 0.0
    %344 = vmatpush2.xpose.msra.mxu0 0.0
    %345 = vmatprep.subr.mxu0 0.0
    %346 = vmatpush2.xpose.msra.mxu0 0.0
    %347 = vmatprep.subr.mxu0 0.0
    %348 = vmatpush2.xpose.msra.mxu0 0.0
    %349 = vmatprep.subr.mxu0 0.0
    %350 = vmatpush2.xpose.msra.mxu0 0.0
    %351 = vmatprep.subr.mxu0 0.0
    %352 = vmatpush2.xpose.msra.mxu0 0.0
    %353 = vmatprep.mubr.f32.mxu0 0.0
    %354 = vmatmul.mubr.f32.gmra.mxu0 %v285
    %v355 = vpop.f32.mrf.mxu0
    %v356 = vadd.f32 0.0, %v355
    %v357 = vpop.f32.mrf.mxu0
    %358 = vdwg.mxu0
    %360 = vrot.lane.b32.xlu0 %v278, 96
    %v361 = vpop.permute.xlu0 %360
    %v362 = vsel %vm284, %v278, 0
    %v364 = vsel %vm284, %v361, 0
    %366 = vmatprep.subr.mxu0 0.0
    %367 = vmatpush1.xpose.msra.mxu0 0.0
    %368 = vmatprep.subr.mxu0 0.0
    %369 = vmatpush1.xpose.msra.mxu0 0.0
    %370 = vmatprep.subr.mxu0 0.0
    %371 = vmatpush1.xpose.msra.mxu0 0.0
    %372 = vmatprep.subr.mxu0 0.0
    %373 = vmatpush1.xpose.msra.mxu0 0.0
    %374 = vmatprep.subr.mxu0 0.0
    %375 = vmatpush1.xpose.msra.mxu0 0.0
    %376 = vmatprep.subr.mxu0 0.0
    %377 = vmatpush1.xpose.msra.mxu0 0.0
    %378 = vmatprep.subr.mxu0 0.0
    %379 = vmatpush1.xpose.msra.mxu0 0.0
    %380 = vmatprep.subr.mxu0 0.0
    %381 = vmatpush1.xpose.msra.mxu0 0.0
    %382 = vmatprep.subr.mxu0 0.0
    %383 = vmatpush1.xpose.msra.mxu0 0.0
    %384 = vmatprep.subr.mxu0 0.0
    %385 = vmatpush1.xpose.msra.mxu0 0.0
    %386 = vmatprep.subr.mxu0 0.0
    %387 = vmatpush1.xpose.msra.mxu0 0.0
    %388 = vmatprep.subr.mxu0 0.0
    %389 = vmatpush1.xpose.msra.mxu0 0.0
    %390 = vmatprep.subr.mxu0 0.0
    %391 = vmatpush1.xpose.msra.mxu0 0.0
    %392 = vmatprep.subr.mxu0 0.0
    %393 = vmatpush1.xpose.msra.mxu0 0.0
    %394 = vmatprep.subr.mxu0 0.0
    %395 = vmatpush1.xpose.msra.mxu0 0.0
    %396 = vmatprep.subr.mxu0 0.0
    %397 = vmatpush1.xpose.msra.mxu0 %v364
    %398 = vmatprep.subr.mxu0 0.0
    %399 = vmatpush2.xpose.msra.mxu0 0.0
    %400 = vmatprep.subr.mxu0 0.0
    %401 = vmatpush2.xpose.msra.mxu0 0.0
    %402 = vmatprep.subr.mxu0 0.0
    %403 = vmatpush2.xpose.msra.mxu0 0.0
    %404 = vmatprep.subr.mxu0 0.0
    %405 = vmatpush2.xpose.msra.mxu0 0.0
    %406 = vmatprep.subr.mxu0 0.0
    %407 = vmatpush2.xpose.msra.mxu0 0.0
    %408 = vmatprep.subr.mxu0 0.0
    %409 = vmatpush2.xpose.msra.mxu0 0.0
    %410 = vmatprep.subr.mxu0 0.0
    %411 = vmatpush2.xpose.msra.mxu0 0.0
    %412 = vmatprep.subr.mxu0 0.0
    %413 = vmatpush2.xpose.msra.mxu0 0.0
    %414 = vmatprep.subr.mxu0 0.0
    %415 = vmatpush2.xpose.msra.mxu0 0.0
    %416 = vmatprep.subr.mxu0 0.0
    %417 = vmatpush2.xpose.msra.mxu0 0.0
    %418 = vmatprep.subr.mxu0 0.0
    %419 = vmatpush2.xpose.msra.mxu0 0.0
    %420 = vmatprep.subr.mxu0 0.0
    %421 = vmatpush2.xpose.msra.mxu0 0.0
    %422 = vmatprep.subr.mxu0 0.0
    %423 = vmatpush2.xpose.msra.mxu0 0.0
    %424 = vmatprep.subr.mxu0 0.0
    %425 = vmatpush2.xpose.msra.mxu0 0.0
    %426 = vmatprep.subr.mxu0 0.0
    %427 = vmatpush2.xpose.msra.mxu0 0.0
    %428 = vmatprep.subr.mxu0 0.0
    %429 = vmatpush2.xpose.msra.mxu0 0.0
    %430 = vmatprep.mubr.f32.mxu0 0.0
    %431 = vmatmul.mubr.f32.gmra.mxu0 %v362
    %v432 = vpop.f32.mrf.mxu0
    %v433 = vadd.f32 0.0, %v432
    %v434 = vpop.f32.mrf.mxu0
    %435 = vdwg.mxu0
    %v436 = vmul.f32 %v356, 0.35355338
    %v437 = vmul.f32 %v433, 0.35355338
    %v440 = vlaneseq
    %v441 = vshrl.u32 %v440, 7
    %v442 = vsub.s32 0, %v441
    %v443 = vrot.slane %v213, %v442
    %v444 = vlaneseq
    %v445 = vshrl.u32 %v444, 7
    %v446 = vsub.s32 0, %v445
    %v447 = vrot.slane %v214, %v446
    %v450 = vadd.f32 %v436, %v443
    %v451 = vadd.f32 %v437, %v447
    %v452 = vsel %vm284, %v450, -inf
    %453 = vmax.xlane.f32.xlu0 %v452
    %v454 = vpop.xlane.xlu0 %453
    %v455 = vsel %vm284, %v451, -inf
    %456 = vmax.xlane.f32.xlu0 %v455
    %v457 = vpop.xlane.xlu0 %456
    %v458 = vsub.f32 %v450, %v454
    %v459 = vsub.f32 %v451, %v457
    %v460 = vmul.f32 %v458, 1.442695
    %v461 = vpow.pop %v460
    %v462 = vmul.f32 %v459, 1.442695
    %v463 = vpow.pop %v462
    %v464 = vsel %vm284, %v461, 0.0
    %465 = vadd.xlane.f32.xlu0 %v464
    %v466 = vpop.xlane.xlu0 %465
    %v467 = vsel %vm284, %v463, 0.0
    %468 = vadd.xlane.f32.xlu0 %v467
    %v469 = vpop.xlane.xlu0 %468
    %v470 = vrcp.pop %v466
    %v471 = vrcp.pop %v469
    %v472 = vmul.f32 %v461, %v470
    %v473 = vmul.f32 %v463, %v471
    %474 = vrot.lane.b32.xlu0 %v275, 64
    %v475 = vpop.permute.xlu0 %474
    %v478 = vsel %vm284, %v472, 0
    %480 = vmatprep.subr.mxu0 0.0
    %481 = vmatpush1.msra.mxu0 0.0
    %482 = vmatprep.subr.mxu0 0.0
    %483 = vmatpush1.msra.mxu0 0.0
    %484 = vmatprep.subr.mxu0 0.0
    %485 = vmatpush1.msra.mxu0 0.0
    %486 = vmatprep.subr.mxu0 0.0
    %487 = vmatpush1.msra.mxu0 0.0
    %488 = vmatprep.subr.mxu0 0.0
    %489 = vmatpush1.msra.mxu0 0.0
    %490 = vmatprep.subr.mxu0 0.0
    %491 = vmatpush1.msra.mxu0 0.0
    %492 = vmatprep.subr.mxu0 0.0
    %493 = vmatpush1.msra.mxu0 0.0
    %494 = vmatprep.subr.mxu0 0.0
    %495 = vmatpush1.msra.mxu0 0.0
    %496 = vmatprep.subr.mxu0 0.0
    %497 = vmatpush1.msra.mxu0 0.0
    %498 = vmatprep.subr.mxu0 0.0
    %499 = vmatpush1.msra.mxu0 0.0
    %500 = vmatprep.subr.mxu0 0.0
    %501 = vmatpush1.msra.mxu0 0.0
    %502 = vmatprep.subr.mxu0 0.0
    %503 = vmatpush1.msra.mxu0 0.0
    %504 = vmatprep.subr.mxu0 0.0
    %505 = vmatpush1.msra.mxu0 0.0
    %506 = vmatprep.subr.mxu0 0.0
    %507 = vmatpush1.msra.mxu0 0.0
    %508 = vmatprep.subr.mxu0 0.0
    %509 = vmatpush1.msra.mxu0 0.0
    %510 = vmatprep.subr.mxu0 0.0
    %511 = vmatpush1.msra.mxu0 %v475
    %512 = vmatprep.subr.mxu0 0.0
    %513 = vmatpush2.msra.mxu0 0.0
    %514 = vmatprep.subr.mxu0 0.0
    %515 = vmatpush2.msra.mxu0 0.0
    %516 = vmatprep.subr.mxu0 0.0
    %517 = vmatpush2.msra.mxu0 0.0
    %518 = vmatprep.subr.mxu0 0.0
    %519 = vmatpush2.msra.mxu0 0.0
    %520 = vmatprep.subr.mxu0 0.0
    %521 = vmatpush2.msra.mxu0 0.0
    %522 = vmatprep.subr.mxu0 0.0
    %523 = vmatpush2.msra.mxu0 0.0
    %524 = vmatprep.subr.mxu0 0.0
    %525 = vmatpush2.msra.mxu0 0.0
    %526 = vmatprep.subr.mxu0 0.0
    %527 = vmatpush2.msra.mxu0 0.0
    %528 = vmatprep.subr.mxu0 0.0
    %529 = vmatpush2.msra.mxu0 0.0
    %530 = vmatprep.subr.mxu0 0.0
    %531 = vmatpush2.msra.mxu0 0.0
    %532 = vmatprep.subr.mxu0 0.0
    %533 = vmatpush2.msra.mxu0 0.0
    %534 = vmatprep.subr.mxu0 0.0
    %535 = vmatpush2.msra.mxu0 0.0
    %536 = vmatprep.subr.mxu0 0.0
    %537 = vmatpush2.msra.mxu0 0.0
    %538 = vmatprep.subr.mxu0 0.0
    %539 = vmatpush2.msra.mxu0 0.0
    %540 = vmatprep.subr.mxu0 0.0
    %541 = vmatpush2.msra.mxu0 0.0
    %542 = vmatprep.subr.mxu0 0.0
    %543 = vmatpush2.msra.mxu0 0.0
    %544 = vmatprep.mubr.f32.mxu0 0.0
    %545 = vmatmul.mubr.f32.gmra.mxu0 %v478
    %v546 = vpop.f32.mrf.mxu0
    %v547 = vadd.f32 0.0, %v546
    %v548 = vpop.f32.mrf.mxu0
    %549 = vdwg.mxu0
    %550 = vrot.lane.b32.xlu0 %v278, 64
    %v551 = vpop.permute.xlu0 %550
    %v554 = vsel %vm284, %v473, 0
    %556 = vmatprep.subr.mxu0 0.0
    %557 = vmatpush1.msra.mxu0 0.0
    %558 = vmatprep.subr.mxu0 0.0
    %559 = vmatpush1.msra.mxu0 0.0
    %560 = vmatprep.subr.mxu0 0.0
    %561 = vmatpush1.msra.mxu0 0.0
    %562 = vmatprep.subr.mxu0 0.0
    %563 = vmatpush1.msra.mxu0 0.0
    %564 = vmatprep.subr.mxu0 0.0
    %565 = vmatpush1.msra.mxu0 0.0
    %566 = vmatprep.subr.mxu0 0.0
    %567 = vmatpush1.msra.mxu0 0.0
    %568 = vmatprep.subr.mxu0 0.0
    %569 = vmatpush1.msra.mxu0 0.0
    %570 = vmatprep.subr.mxu0 0.0
    %571 = vmatpush1.msra.mxu0 0.0
    %572 = vmatprep.subr.mxu0 0.0
    %573 = vmatpush1.msra.mxu0 0.0
    %574 = vmatprep.subr.mxu0 0.0
    %575 = vmatpush1.msra.mxu0 0.0
    %576 = vmatprep.subr.mxu0 0.0
    %577 = vmatpush1.msra.mxu0 0.0
    %578 = vmatprep.subr.mxu0 0.0
    %579 = vmatpush1.msra.mxu0 0.0
    %580 = vmatprep.subr.mxu0 0.0
    %581 = vmatpush1.msra.mxu0 0.0
    %582 = vmatprep.subr.mxu0 0.0
    %583 = vmatpush1.msra.mxu0 0.0
    %584 = vmatprep.subr.mxu0 0.0
    %585 = vmatpush1.msra.mxu0 0.0
    %586 = vmatprep.subr.mxu0 0.0
    %587 = vmatpush1.msra.mxu0 %v551
    %588 = vmatprep.subr.mxu0 0.0
    %589 = vmatpush2.msra.mxu0 0.0
    %590 = vmatprep.subr.mxu0 0.0
    %591 = vmatpush2.msra.mxu0 0.0
    %592 = vmatprep.subr.mxu0 0.0
    %593 = vmatpush2.msra.mxu0 0.0
    %594 = vmatprep.subr.mxu0 0.0
    %595 = vmatpush2.msra.mxu0 0.0
    %596 = vmatprep.subr.mxu0 0.0
    %597 = vmatpush2.msra.mxu0 0.0
    %598 = vmatprep.subr.mxu0 0.0
    %599 = vmatpush2.msra.mxu0 0.0
    %600 = vmatprep.subr.mxu0 0.0
    %601 = vmatpush2.msra.mxu0 0.0
    %602 = vmatprep.subr.mxu0 0.0
    %603 = vmatpush2.msra.mxu0 0.0
    %604 = vmatprep.subr.mxu0 0.0
    %605 = vmatpush2.msra.mxu0 0.0
    %606 = vmatprep.subr.mxu0 0.0
    %607 = vmatpush2.msra.mxu0 0.0
    %608 = vmatprep.subr.mxu0 0.0
    %609 = vmatpush2.msra.mxu0 0.0
    %610 = vmatprep.subr.mxu0 0.0
    %611 = vmatpush2.msra.mxu0 0.0
    %612 = vmatprep.subr.mxu0 0.0
    %613 = vmatpush2.msra.mxu0 0.0
    %614 = vmatprep.subr.mxu0 0.0
    %615 = vmatpush2.msra.mxu0 0.0
    %616 = vmatprep.subr.mxu0 0.0
    %617 = vmatpush2.msra.mxu0 0.0
    %618 = vmatprep.subr.mxu0 0.0
    %619 = vmatpush2.msra.mxu0 0.0
    %620 = vmatprep.mubr.f32.mxu0 0.0
    %621 = vmatmul.mubr.f32.gmra.mxu0 %v554
    %v622 = vpop.f32.mrf.mxu0
    %v623 = vadd.f32 0.0, %v622
    %v624 = vpop.f32.mrf.mxu0
    %625 = vdwg.mxu0
    %626 = vrot.lane.b32.xlu0 %v275, 120
    %v627 = vpop.permute.xlu0 %626
    %628 = vrot.lane.b32.xlu0 %v275, 88
    %v629 = vpop.permute.xlu0 %628
    %v630 = vsel %vm284, %v627, 0
    %v632 = vsel %vm284, %v629, 0
    %634 = vmatprep.subr.mxu0 0.0
    %635 = vmatpush1.xpose.msra.mxu0 0.0
    %636 = vmatprep.subr.mxu0 0.0
    %637 = vmatpush1.xpose.msra.mxu0 0.0
    %638 = vmatprep.subr.mxu0 0.0
    %639 = vmatpush1.xpose.msra.mxu0 0.0
    %640 = vmatprep.subr.mxu0 0.0
    %641 = vmatpush1.xpose.msra.mxu0 0.0
    %642 = vmatprep.subr.mxu0 0.0
    %643 = vmatpush1.xpose.msra.mxu0 0.0
    %644 = vmatprep.subr.mxu0 0.0
    %645 = vmatpush1.xpose.msra.mxu0 0.0
    %646 = vmatprep.subr.mxu0 0.0
    %647 = vmatpush1.xpose.msra.mxu0 0.0
    %648 = vmatprep.subr.mxu0 0.0
    %649 = vmatpush1.xpose.msra.mxu0 0.0
    %650 = vmatprep.subr.mxu0 0.0
    %651 = vmatpush1.xpose.msra.mxu0 0.0
    %652 = vmatprep.subr.mxu0 0.0
    %653 = vmatpush1.xpose.msra.mxu0 0.0
    %654 = vmatprep.subr.mxu0 0.0
    %655 = vmatpush1.xpose.msra.mxu0 0.0
    %656 = vmatprep.subr.mxu0 0.0
    %657 = vmatpush1.xpose.msra.mxu0 0.0
    %658 = vmatprep.subr.mxu0 0.0
    %659 = vmatpush1.xpose.msra.mxu0 0.0
    %660 = vmatprep.subr.mxu0 0.0
    %661 = vmatpush1.xpose.msra.mxu0 0.0
    %662 = vmatprep.subr.mxu0 0.0
    %663 = vmatpush1.xpose.msra.mxu0 0.0
    %664 = vmatprep.subr.mxu0 0.0
    %665 = vmatpush1.xpose.msra.mxu0 %v632
    %666 = vmatprep.subr.mxu0 0.0
    %667 = vmatpush2.xpose.msra.mxu0 0.0
    %668 = vmatprep.subr.mxu0 0.0
    %669 = vmatpush2.xpose.msra.mxu0 0.0
    %670 = vmatprep.subr.mxu0 0.0
    %671 = vmatpush2.xpose.msra.mxu0 0.0
    %672 = vmatprep.subr.mxu0 0.0
    %673 = vmatpush2.xpose.msra.mxu0 0.0
    %674 = vmatprep.subr.mxu0 0.0
    %675 = vmatpush2.xpose.msra.mxu0 0.0
    %676 = vmatprep.subr.mxu0 0.0
    %677 = vmatpush2.xpose.msra.mxu0 0.0
    %678 = vmatprep.subr.mxu0 0.0
    %679 = vmatpush2.xpose.msra.mxu0 0.0
    %680 = vmatprep.subr.mxu0 0.0
    %681 = vmatpush2.xpose.msra.mxu0 0.0
    %682 = vmatprep.subr.mxu0 0.0
    %683 = vmatpush2.xpose.msra.mxu0 0.0
    %684 = vmatprep.subr.mxu0 0.0
    %685 = vmatpush2.xpose.msra.mxu0 0.0
    %686 = vmatprep.subr.mxu0 0.0
    %687 = vmatpush2.xpose.msra.mxu0 0.0
    %688 = vmatprep.subr.mxu0 0.0
    %689 = vmatpush2.xpose.msra.mxu0 0.0
    %690 = vmatprep.subr.mxu0 0.0
    %691 = vmatpush2.xpose.msra.mxu0 0.0
    %692 = vmatprep.subr.mxu0 0.0
    %693 = vmatpush2.xpose.msra.mxu0 0.0
    %694 = vmatprep.subr.mxu0 0.0
    %695 = vmatpush2.xpose.msra.mxu0 0.0
    %696 = vmatprep.subr.mxu0 0.0
    %697 = vmatpush2.xpose.msra.mxu0 0.0
    %698 = vmatprep.mubr.f32.mxu0 0.0
    %699 = vmatmul.mubr.f32.gmra.mxu0 %v630
    %v700 = vpop.f32.mrf.mxu0
    %v701 = vadd.f32 0.0, %v700
    %v702 = vpop.f32.mrf.mxu0
    %703 = vdwg.mxu0
    %704 = vrot.lane.b32.xlu0 %v278, 120
    %v705 = vpop.permute.xlu0 %704
    %706 = vrot.lane.b32.xlu0 %v278, 88
    %v707 = vpop.permute.xlu0 %706
    %v708 = vsel %vm284, %v705, 0
    %v710 = vsel %vm284, %v707, 0
    %712 = vmatprep.subr.mxu0 0.0
    %713 = vmatpush1.xpose.msra.mxu0 0.0
    %714 = vmatprep.subr.mxu0 0.0
    %715 = vmatpush1.xpose.msra.mxu0 0.0
    %716 = vmatprep.subr.mxu0 0.0
    %717 = vmatpush1.xpose.msra.mxu0 0.0
    %718 = vmatprep.subr.mxu0 0.0
    %719 = vmatpush1.xpose.msra.mxu0 0.0
    %720 = vmatprep.subr.mxu0 0.0
    %721 = vmatpush1.xpose.msra.mxu0 0.0
    %722 = vmatprep.subr.mxu0 0.0
    %723 = vmatpush1.xpose.msra.mxu0 0.0
    %724 = vmatprep.subr.mxu0 0.0
    %725 = vmatpush1.xpose.msra.mxu0 0.0
    %726 = vmatprep.subr.mxu0 0.0
    %727 = vmatpush1.xpose.msra.mxu0 0.0
    %728 = vmatprep.subr.mxu0 0.0
    %729 = vmatpush1.xpose.msra.mxu0 0.0
    %730 = vmatprep.subr.mxu0 0.0
    %731 = vmatpush1.xpose.msra.mxu0 0.0
    %732 = vmatprep.subr.mxu0 0.0
    %733 = vmatpush1.xpose.msra.mxu0 0.0
    %734 = vmatprep.subr.mxu0 0.0
    %735 = vmatpush1.xpose.msra.mxu0 0.0
    %736 = vmatprep.subr.mxu0 0.0
    %737 = vmatpush1.xpose.msra.mxu0 0.0
    %738 = vmatprep.subr.mxu0 0.0
    %739 = vmatpush1.xpose.msra.mxu0 0.0
    %740 = vmatprep.subr.mxu0 0.0
    %741 = vmatpush1.xpose.msra.mxu0 0.0
    %742 = vmatprep.subr.mxu0 0.0
    %743 = vmatpush1.xpose.msra.mxu0 %v710
    %744 = vmatprep.subr.mxu0 0.0
    %745 = vmatpush2.xpose.msra.mxu0 0.0
    %746 = vmatprep.subr.mxu0 0.0
    %747 = vmatpush2.xpose.msra.mxu0 0.0
    %748 = vmatprep.subr.mxu0 0.0
    %749 = vmatpush2.xpose.msra.mxu0 0.0
    %750 = vmatprep.subr.mxu0 0.0
    %751 = vmatpush2.xpose.msra.mxu0 0.0
    %752 = vmatprep.subr.mxu0 0.0
    %753 = vmatpush2.xpose.msra.mxu0 0.0
    %754 = vmatprep.subr.mxu0 0.0
    %755 = vmatpush2.xpose.msra.mxu0 0.0
    %756 = vmatprep.subr.mxu0 0.0
    %757 = vmatpush2.xpose.msra.mxu0 0.0
    %758 = vmatprep.subr.mxu0 0.0
    %759 = vmatpush2.xpose.msra.mxu0 0.0
    %760 = vmatprep.subr.mxu0 0.0
    %761 = vmatpush2.xpose.msra.mxu0 0.0
    %762 = vmatprep.subr.mxu0 0.0
    %763 = vmatpush2.xpose.msra.mxu0 0.0
    %764 = vmatprep.subr.mxu0 0.0
    %765 = vmatpush2.xpose.msra.mxu0 0.0
    %766 = vmatprep.subr.mxu0 0.0
    %767 = vmatpush2.xpose.msra.mxu0 0.0
    %768 = vmatprep.subr.mxu0 0.0
    %769 = vmatpush2.xpose.msra.mxu0 0.0
    %770 = vmatprep.subr.mxu0 0.0
    %771 = vmatpush2.xpose.msra.mxu0 0.0
    %772 = vmatprep.subr.mxu0 0.0
    %773 = vmatpush2.xpose.msra.mxu0 0.0
    %774 = vmatprep.subr.mxu0 0.0
    %775 = vmatpush2.xpose.msra.mxu0 0.0
    %776 = vmatprep.mubr.f32.mxu0 0.0
    %777 = vmatmul.mubr.f32.gmra.mxu0 %v708
    %v778 = vpop.f32.mrf.mxu0
    %v779 = vadd.f32 0.0, %v778
    %v780 = vpop.f32.mrf.mxu0
    %781 = vdwg.mxu0
    %v782 = vmul.f32 %v701, 0.35355338
    %v783 = vmul.f32 %v779, 0.35355338
    %v784 = vadd.f32 %v782, %v443
    %v785 = vadd.f32 %v783, %v447
    %v786 = vsel %vm284, %v784, -inf
    %787 = vmax.xlane.f32.xlu0 %v786
    %v788 = vpop.xlane.xlu0 %787
    %v789 = vsel %vm284, %v785, -inf
    %790 = vmax.xlane.f32.xlu0 %v789
    %v791 = vpop.xlane.xlu0 %790
    %v792 = vsub.f32 %v784, %v788
    %v793 = vsub.f32 %v785, %v791
    %v794 = vmul.f32 %v792, 1.442695
    %v795 = vpow.pop %v794
    %v796 = vmul.f32 %v793, 1.442695
    %v797 = vpow.pop %v796
    %v798 = vsel %vm284, %v795, 0.0
    %799 = vadd.xlane.f32.xlu0 %v798
    %v800 = vpop.xlane.xlu0 %799
    %v801 = vsel %vm284, %v797, 0.0
    %802 = vadd.xlane.f32.xlu0 %v801
    %v803 = vpop.xlane.xlu0 %802
    %v804 = vrcp.pop %v800
    %v805 = vrcp.pop %v803
    %v806 = vmul.f32 %v795, %v804
    %v807 = vmul.f32 %v797, %v805
    %808 = vrot.lane.b32.xlu0 %v275, 56
    %v809 = vpop.permute.xlu0 %808
    %v812 = vsel %vm284, %v806, 0
    %814 = vmatprep.subr.mxu0 0.0
    %815 = vmatpush1.msra.mxu0 0.0
    %816 = vmatprep.subr.mxu0 0.0
    %817 = vmatpush1.msra.mxu0 0.0
    %818 = vmatprep.subr.mxu0 0.0
    %819 = vmatpush1.msra.mxu0 0.0
    %820 = vmatprep.subr.mxu0 0.0
    %821 = vmatpush1.msra.mxu0 0.0
    %822 = vmatprep.subr.mxu0 0.0
    %823 = vmatpush1.msra.mxu0 0.0
    %824 = vmatprep.subr.mxu0 0.0
    %825 = vmatpush1.msra.mxu0 0.0
    %826 = vmatprep.subr.mxu0 0.0
    %827 = vmatpush1.msra.mxu0 0.0
    %828 = vmatprep.subr.mxu0 0.0
    %829 = vmatpush1.msra.mxu0 0.0
    %830 = vmatprep.subr.mxu0 0.0
    %831 = vmatpush1.msra.mxu0 0.0
    %832 = vmatprep.subr.mxu0 0.0
    %833 = vmatpush1.msra.mxu0 0.0
    %834 = vmatprep.subr.mxu0 0.0
    %835 = vmatpush1.msra.mxu0 0.0
    %836 = vmatprep.subr.mxu0 0.0
    %837 = vmatpush1.msra.mxu0 0.0
    %838 = vmatprep.subr.mxu0 0.0
    %839 = vmatpush1.msra.mxu0 0.0
    %840 = vmatprep.subr.mxu0 0.0
    %841 = vmatpush1.msra.mxu0 0.0
    %842 = vmatprep.subr.mxu0 0.0
    %843 = vmatpush1.msra.mxu0 0.0
    %844 = vmatprep.subr.mxu0 0.0
    %845 = vmatpush1.msra.mxu0 %v809
    %846 = vmatprep.subr.mxu0 0.0
    %847 = vmatpush2.msra.mxu0 0.0
    %848 = vmatprep.subr.mxu0 0.0
    %849 = vmatpush2.msra.mxu0 0.0
    %850 = vmatprep.subr.mxu0 0.0
    %851 = vmatpush2.msra.mxu0 0.0
    %852 = vmatprep.subr.mxu0 0.0
    %853 = vmatpush2.msra.mxu0 0.0
    %854 = vmatprep.subr.mxu0 0.0
    %855 = vmatpush2.msra.mxu0 0.0
    %856 = vmatprep.subr.mxu0 0.0
    %857 = vmatpush2.msra.mxu0 0.0
    %858 = vmatprep.subr.mxu0 0.0
    %859 = vmatpush2.msra.mxu0 0.0
    %860 = vmatprep.subr.mxu0 0.0
    %861 = vmatpush2.msra.mxu0 0.0
    %862 = vmatprep.subr.mxu0 0.0
    %863 = vmatpush2.msra.mxu0 0.0
    %864 = vmatprep.subr.mxu0 0.0
    %865 = vmatpush2.msra.mxu0 0.0
    %866 = vmatprep.subr.mxu0 0.0
    %867 = vmatpush2.msra.mxu0 0.0
    %868 = vmatprep.subr.mxu0 0.0
    %869 = vmatpush2.msra.mxu0 0.0
    %870 = vmatprep.subr.mxu0 0.0
    %871 = vmatpush2.msra.mxu0 0.0
    %872 = vmatprep.subr.mxu0 0.0
    %873 = vmatpush2.msra.mxu0 0.0
    %874 = vmatprep.subr.mxu0 0.0
    %875 = vmatpush2.msra.mxu0 0.0
    %876 = vmatprep.subr.mxu0 0.0
    %877 = vmatpush2.msra.mxu0 0.0
    %878 = vmatprep.mubr.f32.mxu0 0.0
    %879 = vmatmul.mubr.f32.gmra.mxu0 %v812
    %v880 = vpop.f32.mrf.mxu0
    %v881 = vadd.f32 0.0, %v880
    %v882 = vpop.f32.mrf.mxu0
    %883 = vdwg.mxu0
    %884 = vrot.lane.b32.xlu0 %v278, 56
    %v885 = vpop.permute.xlu0 %884
    %v888 = vsel %vm284, %v807, 0
    %890 = vmatprep.subr.mxu0 0.0
    %891 = vmatpush1.msra.mxu0 0.0
    %892 = vmatprep.subr.mxu0 0.0
    %893 = vmatpush1.msra.mxu0 0.0
    %894 = vmatprep.subr.mxu0 0.0
    %895 = vmatpush1.msra.mxu0 0.0
    %896 = vmatprep.subr.mxu0 0.0
    %897 = vmatpush1.msra.mxu0 0.0
    %898 = vmatprep.subr.mxu0 0.0
    %899 = vmatpush1.msra.mxu0 0.0
    %900 = vmatprep.subr.mxu0 0.0
    %901 = vmatpush1.msra.mxu0 0.0
    %902 = vmatprep.subr.mxu0 0.0
    %903 = vmatpush1.msra.mxu0 0.0
    %904 = vmatprep.subr.mxu0 0.0
    %905 = vmatpush1.msra.mxu0 0.0
    %906 = vmatprep.subr.mxu0 0.0
    %907 = vmatpush1.msra.mxu0 0.0
    %908 = vmatprep.subr.mxu0 0.0
    %909 = vmatpush1.msra.mxu0 0.0
    %910 = vmatprep.subr.mxu0 0.0
    %911 = vmatpush1.msra.mxu0 0.0
    %912 = vmatprep.subr.mxu0 0.0
    %913 = vmatpush1.msra.mxu0 0.0
    %914 = vmatprep.subr.mxu0 0.0
    %915 = vmatpush1.msra.mxu0 0.0
    %916 = vmatprep.subr.mxu0 0.0
    %917 = vmatpush1.msra.mxu0 0.0
    %918 = vmatprep.subr.mxu0 0.0
    %919 = vmatpush1.msra.mxu0 0.0
    %920 = vmatprep.subr.mxu0 0.0
    %921 = vmatpush1.msra.mxu0 %v885
    %922 = vmatprep.subr.mxu0 0.0
    %923 = vmatpush2.msra.mxu0 0.0
    %924 = vmatprep.subr.mxu0 0.0
    %925 = vmatpush2.msra.mxu0 0.0
    %926 = vmatprep.subr.mxu0 0.0
    %927 = vmatpush2.msra.mxu0 0.0
    %928 = vmatprep.subr.mxu0 0.0
    %929 = vmatpush2.msra.mxu0 0.0
    %930 = vmatprep.subr.mxu0 0.0
    %931 = vmatpush2.msra.mxu0 0.0
    %932 = vmatprep.subr.mxu0 0.0
    %933 = vmatpush2.msra.mxu0 0.0
    %934 = vmatprep.subr.mxu0 0.0
    %935 = vmatpush2.msra.mxu0 0.0
    %936 = vmatprep.subr.mxu0 0.0
    %937 = vmatpush2.msra.mxu0 0.0
    %938 = vmatprep.subr.mxu0 0.0
    %939 = vmatpush2.msra.mxu0 0.0
    %940 = vmatprep.subr.mxu0 0.0
    %941 = vmatpush2.msra.mxu0 0.0
    %942 = vmatprep.subr.mxu0 0.0
    %943 = vmatpush2.msra.mxu0 0.0
    %944 = vmatprep.subr.mxu0 0.0
    %945 = vmatpush2.msra.mxu0 0.0
    %946 = vmatprep.subr.mxu0 0.0
    %947 = vmatpush2.msra.mxu0 0.0
    %948 = vmatprep.subr.mxu0 0.0
    %949 = vmatpush2.msra.mxu0 0.0
    %950 = vmatprep.subr.mxu0 0.0
    %951 = vmatpush2.msra.mxu0 0.0
    %952 = vmatprep.subr.mxu0 0.0
    %953 = vmatpush2.msra.mxu0 0.0
    %954 = vmatprep.mubr.f32.mxu0 0.0
    %955 = vmatmul.mubr.f32.gmra.mxu0 %v888
    %v956 = vpop.f32.mrf.mxu0
    %v957 = vadd.f32 0.0, %v956
    %v958 = vpop.f32.mrf.mxu0
    %959 = vdwg.mxu0
    %960 = vrot.lane.b32.xlu0 %v275, 112
    %v961 = vpop.permute.xlu0 %960
    %962 = vrot.lane.b32.xlu0 %v275, 80
    %v963 = vpop.permute.xlu0 %962
    %v964 = vsel %vm284, %v961, 0
    %v966 = vsel %vm284, %v963, 0
    %968 = vmatprep.subr.mxu0 0.0
    %969 = vmatpush1.xpose.msra.mxu0 0.0
    %970 = vmatprep.subr.mxu0 0.0
    %971 = vmatpush1.xpose.msra.mxu0 0.0
    %972 = vmatprep.subr.mxu0 0.0
    %973 = vmatpush1.xpose.msra.mxu0 0.0
    %974 = vmatprep.subr.mxu0 0.0
    %975 = vmatpush1.xpose.msra.mxu0 0.0
    %976 = vmatprep.subr.mxu0 0.0
    %977 = vmatpush1.xpose.msra.mxu0 0.0
    %978 = vmatprep.subr.mxu0 0.0
    %979 = vmatpush1.xpose.msra.mxu0 0.0
    %980 = vmatprep.subr.mxu0 0.0
    %981 = vmatpush1.xpose.msra.mxu0 0.0
    %982 = vmatprep.subr.mxu0 0.0
    %983 = vmatpush1.xpose.msra.mxu0 0.0
    %984 = vmatprep.subr.mxu0 0.0
    %985 = vmatpush1.xpose.msra.mxu0 0.0
    %986 = vmatprep.subr.mxu0 0.0
    %987 = vmatpush1.xpose.msra.mxu0 0.0
    %988 = vmatprep.subr.mxu0 0.0
    %989 = vmatpush1.xpose.msra.mxu0 0.0
    %990 = vmatprep.subr.mxu0 0.0
    %991 = vmatpush1.xpose.msra.mxu0 0.0
    %992 = vmatprep.subr.mxu0 0.0
    %993 = vmatpush1.xpose.msra.mxu0 0.0
    %994 = vmatprep.subr.mxu0 0.0
    %995 = vmatpush1.xpose.msra.mxu0 0.0
    %996 = vmatprep.subr.mxu0 0.0
    %997 = vmatpush1.xpose.msra.mxu0 0.0
    %998 = vmatprep.subr.mxu0 0.0
    %999 = vmatpush1.xpose.msra.mxu0 %v966
    %1000 = vmatprep.subr.mxu0 0.0
    %1001 = vmatpush2.xpose.msra.mxu0 0.0
    %1002 = vmatprep.subr.mxu0 0.0
    %1003 = vmatpush2.xpose.msra.mxu0 0.0
    %1004 = vmatprep.subr.mxu0 0.0
    %1005 = vmatpush2.xpose.msra.mxu0 0.0
    %1006 = vmatprep.subr.mxu0 0.0
    %1007 = vmatpush2.xpose.msra.mxu0 0.0
    %1008 = vmatprep.subr.mxu0 0.0
    %1009 = vmatpush2.xpose.msra.mxu0 0.0
    %1010 = vmatprep.subr.mxu0 0.0
    %1011 = vmatpush2.xpose.msra.mxu0 0.0
    %1012 = vmatprep.subr.mxu0 0.0
    %1013 = vmatpush2.xpose.msra.mxu0 0.0
    %1014 = vmatprep.subr.mxu0 0.0
    %1015 = vmatpush2.xpose.msra.mxu0 0.0
    %1016 = vmatprep.subr.mxu0 0.0
    %1017 = vmatpush2.xpose.msra.mxu0 0.0
    %1018 = vmatprep.subr.mxu0 0.0
    %1019 = vmatpush2.xpose.msra.mxu0 0.0
    %1020 = vmatprep.subr.mxu0 0.0
    %1021 = vmatpush2.xpose.msra.mxu0 0.0
    %1022 = vmatprep.subr.mxu0 0.0
    %1023 = vmatpush2.xpose.msra.mxu0 0.0
    %1024 = vmatprep.subr.mxu0 0.0
    %1025 = vmatpush2.xpose.msra.mxu0 0.0
    %1026 = vmatprep.subr.mxu0 0.0
    %1027 = vmatpush2.xpose.msra.mxu0 0.0
    %1028 = vmatprep.subr.mxu0 0.0
    %1029 = vmatpush2.xpose.msra.mxu0 0.0
    %1030 = vmatprep.subr.mxu0 0.0
    %1031 = vmatpush2.xpose.msra.mxu0 0.0
    %1032 = vmatprep.mubr.f32.mxu0 0.0
    %1033 = vmatmul.mubr.f32.gmra.mxu0 %v964
    %v1034 = vpop.f32.mrf.mxu0
    %v1035 = vadd.f32 0.0, %v1034
    %v1036 = vpop.f32.mrf.mxu0
    %1037 = vdwg.mxu0
    %1038 = vrot.lane.b32.xlu0 %v278, 112
    %v1039 = vpop.permute.xlu0 %1038
    %1040 = vrot.lane.b32.xlu0 %v278, 80
    %v1041 = vpop.permute.xlu0 %1040
    %v1042 = vsel %vm284, %v1039, 0
    %v1044 = vsel %vm284, %v1041, 0
    %1046 = vmatprep.subr.mxu0 0.0
    %1047 = vmatpush1.xpose.msra.mxu0 0.0
    %1048 = vmatprep.subr.mxu0 0.0
    %1049 = vmatpush1.xpose.msra.mxu0 0.0
    %1050 = vmatprep.subr.mxu0 0.0
    %1051 = vmatpush1.xpose.msra.mxu0 0.0
    %1052 = vmatprep.subr.mxu0 0.0
    %1053 = vmatpush1.xpose.msra.mxu0 0.0
    %1054 = vmatprep.subr.mxu0 0.0
    %1055 = vmatpush1.xpose.msra.mxu0 0.0
    %1056 = vmatprep.subr.mxu0 0.0
    %1057 = vmatpush1.xpose.msra.mxu0 0.0
    %1058 = vmatprep.subr.mxu0 0.0
    %1059 = vmatpush1.xpose.msra.mxu0 0.0
    %1060 = vmatprep.subr.mxu0 0.0
    %1061 = vmatpush1.xpose.msra.mxu0 0.0
    %1062 = vmatprep.subr.mxu0 0.0
    %1063 = vmatpush1.xpose.msra.mxu0 0.0
    %1064 = vmatprep.subr.mxu0 0.0
    %1065 = vmatpush1.xpose.msra.mxu0 0.0
    %1066 = vmatprep.subr.mxu0 0.0
    %1067 = vmatpush1.xpose.msra.mxu0 0.0
    %1068 = vmatprep.subr.mxu0 0.0
    %1069 = vmatpush1.xpose.msra.mxu0 0.0
    %1070 = vmatprep.subr.mxu0 0.0
    %1071 = vmatpush1.xpose.msra.mxu0 0.0
    %1072 = vmatprep.subr.mxu0 0.0
    %1073 = vmatpush1.xpose.msra.mxu0 0.0
    %1074 = vmatprep.subr.mxu0 0.0
    %1075 = vmatpush1.xpose.msra.mxu0 0.0
    %1076 = vmatprep.subr.mxu0 0.0
    %1077 = vmatpush1.xpose.msra.mxu0 %v1044
    %1078 = vmatprep.subr.mxu0 0.0
    %1079 = vmatpush2.xpose.msra.mxu0 0.0
    %1080 = vmatprep.subr.mxu0 0.0
    %1081 = vmatpush2.xpose.msra.mxu0 0.0
    %1082 = vmatprep.subr.mxu0 0.0
    %1083 = vmatpush2.xpose.msra.mxu0 0.0
    %1084 = vmatprep.subr.mxu0 0.0
    %1085 = vmatpush2.xpose.msra.mxu0 0.0
    %1086 = vmatprep.subr.mxu0 0.0
    %1087 = vmatpush2.xpose.msra.mxu0 0.0
    %1088 = vmatprep.subr.mxu0 0.0
    %1089 = vmatpush2.xpose.msra.mxu0 0.0
    %1090 = vmatprep.subr.mxu0 0.0
    %1091 = vmatpush2.xpose.msra.mxu0 0.0
    %1092 = vmatprep.subr.mxu0 0.0
    %1093 = vmatpush2.xpose.msra.mxu0 0.0
    %1094 = vmatprep.subr.mxu0 0.0
    %1095 = vmatpush2.xpose.msra.mxu0 0.0
    %1096 = vmatprep.subr.mxu0 0.0
    %1097 = vmatpush2.xpose.msra.mxu0 0.0
    %1098 = vmatprep.subr.mxu0 0.0
    %1099 = vmatpush2.xpose.msra.mxu0 0.0
    %1100 = vmatprep.subr.mxu0 0.0
    %1101 = vmatpush2.xpose.msra.mxu0 0.0
    %1102 = vmatprep.subr.mxu0 0.0
    %1103 = vmatpush2.xpose.msra.mxu0 0.0
    %1104 = vmatprep.subr.mxu0 0.0
    %1105 = vmatpush2.xpose.msra.mxu0 0.0
    %1106 = vmatprep.subr.mxu0 0.0
    %1107 = vmatpush2.xpose.msra.mxu0 0.0
    %1108 = vmatprep.subr.mxu0 0.0
    %1109 = vmatpush2.xpose.msra.mxu0 0.0
    %1110 = vmatprep.mubr.f32.mxu0 0.0
    %1111 = vmatmul.mubr.f32.gmra.mxu0 %v1042
    %v1112 = vpop.f32.mrf.mxu0
    %v1113 = vadd.f32 0.0, %v1112
    %v1114 = vpop.f32.mrf.mxu0
    %1115 = vdwg.mxu0
    %v1116 = vmul.f32 %v1035, 0.35355338
    %v1117 = vmul.f32 %v1113, 0.35355338
    %v1118 = vadd.f32 %v1116, %v443
    %v1119 = vadd.f32 %v1117, %v447
    %v1120 = vsel %vm284, %v1118, -inf
    %1121 = vmax.xlane.f32.xlu0 %v1120
    %v1122 = vpop.xlane.xlu0 %1121
    %v1123 = vsel %vm284, %v1119, -inf
    %1124 = vmax.xlane.f32.xlu0 %v1123
    %v1125 = vpop.xlane.xlu0 %1124
    %v1126 = vsub.f32 %v1118, %v1122
    %v1127 = vsub.f32 %v1119, %v1125
    %v1128 = vmul.f32 %v1126, 1.442695
    %v1129 = vpow.pop %v1128
    %v1130 = vmul.f32 %v1127, 1.442695
    %v1131 = vpow.pop %v1130
    %v1132 = vsel %vm284, %v1129, 0.0
    %1133 = vadd.xlane.f32.xlu0 %v1132
    %v1134 = vpop.xlane.xlu0 %1133
    %v1135 = vsel %vm284, %v1131, 0.0
    %1136 = vadd.xlane.f32.xlu0 %v1135
    %v1137 = vpop.xlane.xlu0 %1136
    %v1138 = vrcp.pop %v1134
    %v1139 = vrcp.pop %v1137
    %v1140 = vmul.f32 %v1129, %v1138
    %v1141 = vmul.f32 %v1131, %v1139
    %1142 = vrot.lane.b32.xlu0 %v275, 48
    %v1143 = vpop.permute.xlu0 %1142
    %v1146 = vsel %vm284, %v1140, 0
    %1148 = vmatprep.subr.mxu0 0.0
    %1149 = vmatpush1.msra.mxu0 0.0
    %1150 = vmatprep.subr.mxu0 0.0
    %1151 = vmatpush1.msra.mxu0 0.0
    %1152 = vmatprep.subr.mxu0 0.0
    %1153 = vmatpush1.msra.mxu0 0.0
    %1154 = vmatprep.subr.mxu0 0.0
    %1155 = vmatpush1.msra.mxu0 0.0
    %1156 = vmatprep.subr.mxu0 0.0
    %1157 = vmatpush1.msra.mxu0 0.0
    %1158 = vmatprep.subr.mxu0 0.0
    %1159 = vmatpush1.msra.mxu0 0.0
    %1160 = vmatprep.subr.mxu0 0.0
    %1161 = vmatpush1.msra.mxu0 0.0
    %1162 = vmatprep.subr.mxu0 0.0
    %1163 = vmatpush1.msra.mxu0 0.0
    %1164 = vmatprep.subr.mxu0 0.0
    %1165 = vmatpush1.msra.mxu0 0.0
    %1166 = vmatprep.subr.mxu0 0.0
    %1167 = vmatpush1.msra.mxu0 0.0
    %1168 = vmatprep.subr.mxu0 0.0
    %1169 = vmatpush1.msra.mxu0 0.0
    %1170 = vmatprep.subr.mxu0 0.0
    %1171 = vmatpush1.msra.mxu0 0.0
    %1172 = vmatprep.subr.mxu0 0.0
    %1173 = vmatpush1.msra.mxu0 0.0
    %1174 = vmatprep.subr.mxu0 0.0
    %1175 = vmatpush1.msra.mxu0 0.0
    %1176 = vmatprep.subr.mxu0 0.0
    %1177 = vmatpush1.msra.mxu0 0.0
    %1178 = vmatprep.subr.mxu0 0.0
    %1179 = vmatpush1.msra.mxu0 %v1143
    %1180 = vmatprep.subr.mxu0 0.0
    %1181 = vmatpush2.msra.mxu0 0.0
    %1182 = vmatprep.subr.mxu0 0.0
    %1183 = vmatpush2.msra.mxu0 0.0
    %1184 = vmatprep.subr.mxu0 0.0
    %1185 = vmatpush2.msra.mxu0 0.0
    %1186 = vmatprep.subr.mxu0 0.0
    %1187 = vmatpush2.msra.mxu0 0.0
    %1188 = vmatprep.subr.mxu0 0.0
    %1189 = vmatpush2.msra.mxu0 0.0
    %1190 = vmatprep.subr.mxu0 0.0
    %1191 = vmatpush2.msra.mxu0 0.0
    %1192 = vmatprep.subr.mxu0 0.0
    %1193 = vmatpush2.msra.mxu0 0.0
    %1194 = vmatprep.subr.mxu0 0.0
    %1195 = vmatpush2.msra.mxu0 0.0
    %1196 = vmatprep.subr.mxu0 0.0
    %1197 = vmatpush2.msra.mxu0 0.0
    %1198 = vmatprep.subr.mxu0 0.0
    %1199 = vmatpush2.msra.mxu0 0.0
    %1200 = vmatprep.subr.mxu0 0.0
    %1201 = vmatpush2.msra.mxu0 0.0
    %1202 = vmatprep.subr.mxu0 0.0
    %1203 = vmatpush2.msra.mxu0 0.0
    %1204 = vmatprep.subr.mxu0 0.0
    %1205 = vmatpush2.msra.mxu0 0.0
    %1206 = vmatprep.subr.mxu0 0.0
    %1207 = vmatpush2.msra.mxu0 0.0
    %1208 = vmatprep.subr.mxu0 0.0
    %1209 = vmatpush2.msra.mxu0 0.0
    %1210 = vmatprep.subr.mxu0 0.0
    %1211 = vmatpush2.msra.mxu0 0.0
    %1212 = vmatprep.mubr.f32.mxu0 0.0
    %1213 = vmatmul.mubr.f32.gmra.mxu0 %v1146
    %v1214 = vpop.f32.mrf.mxu0
    %v1215 = vadd.f32 0.0, %v1214
    %v1216 = vpop.f32.mrf.mxu0
    %1217 = vdwg.mxu0
    %1218 = vrot.lane.b32.xlu0 %v278, 48
    %v1219 = vpop.permute.xlu0 %1218
    %v1222 = vsel %vm284, %v1141, 0
    %1224 = vmatprep.subr.mxu0 0.0
    %1225 = vmatpush1.msra.mxu0 0.0
    %1226 = vmatprep.subr.mxu0 0.0
    %1227 = vmatpush1.msra.mxu0 0.0
    %1228 = vmatprep.subr.mxu0 0.0
    %1229 = vmatpush1.msra.mxu0 0.0
    %1230 = vmatprep.subr.mxu0 0.0
    %1231 = vmatpush1.msra.mxu0 0.0
    %1232 = vmatprep.subr.mxu0 0.0
    %1233 = vmatpush1.msra.mxu0 0.0
    %1234 = vmatprep.subr.mxu0 0.0
    %1235 = vmatpush1.msra.mxu0 0.0
    %1236 = vmatprep.subr.mxu0 0.0
    %1237 = vmatpush1.msra.mxu0 0.0
    %1238 = vmatprep.subr.mxu0 0.0
    %1239 = vmatpush1.msra.mxu0 0.0
    %1240 = vmatprep.subr.mxu0 0.0
    %1241 = vmatpush1.msra.mxu0 0.0
    %1242 = vmatprep.subr.mxu0 0.0
    %1243 = vmatpush1.msra.mxu0 0.0
    %1244 = vmatprep.subr.mxu0 0.0
    %1245 = vmatpush1.msra.mxu0 0.0
    %1246 = vmatprep.subr.mxu0 0.0
    %1247 = vmatpush1.msra.mxu0 0.0
    %1248 = vmatprep.subr.mxu0 0.0
    %1249 = vmatpush1.msra.mxu0 0.0
    %1250 = vmatprep.subr.mxu0 0.0
    %1251 = vmatpush1.msra.mxu0 0.0
    %1252 = vmatprep.subr.mxu0 0.0
    %1253 = vmatpush1.msra.mxu0 0.0
    %1254 = vmatprep.subr.mxu0 0.0
    %1255 = vmatpush1.msra.mxu0 %v1219
    %1256 = vmatprep.subr.mxu0 0.0
    %1257 = vmatpush2.msra.mxu0 0.0
    %1258 = vmatprep.subr.mxu0 0.0
    %1259 = vmatpush2.msra.mxu0 0.0
    %1260 = vmatprep.subr.mxu0 0.0
    %1261 = vmatpush2.msra.mxu0 0.0
    %1262 = vmatprep.subr.mxu0 0.0
    %1263 = vmatpush2.msra.mxu0 0.0
    %1264 = vmatprep.subr.mxu0 0.0
    %1265 = vmatpush2.msra.mxu0 0.0
    %1266 = vmatprep.subr.mxu0 0.0
    %1267 = vmatpush2.msra.mxu0 0.0
    %1268 = vmatprep.subr.mxu0 0.0
    %1269 = vmatpush2.msra.mxu0 0.0
    %1270 = vmatprep.subr.mxu0 0.0
    %1271 = vmatpush2.msra.mxu0 0.0
    %1272 = vmatprep.subr.mxu0 0.0
    %1273 = vmatpush2.msra.mxu0 0.0
    %1274 = vmatprep.subr.mxu0 0.0
    %1275 = vmatpush2.msra.mxu0 0.0
    %1276 = vmatprep.subr.mxu0 0.0
    %1277 = vmatpush2.msra.mxu0 0.0
    %1278 = vmatprep.subr.mxu0 0.0
    %1279 = vmatpush2.msra.mxu0 0.0
    %1280 = vmatprep.subr.mxu0 0.0
    %1281 = vmatpush2.msra.mxu0 0.0
    %1282 = vmatprep.subr.mxu0 0.0
    %1283 = vmatpush2.msra.mxu0 0.0
    %1284 = vmatprep.subr.mxu0 0.0
    %1285 = vmatpush2.msra.mxu0 0.0
    %1286 = vmatprep.subr.mxu0 0.0
    %1287 = vmatpush2.msra.mxu0 0.0
    %1288 = vmatprep.mubr.f32.mxu0 0.0
    %1289 = vmatmul.mubr.f32.gmra.mxu0 %v1222
    %v1290 = vpop.f32.mrf.mxu0
    %v1291 = vadd.f32 0.0, %v1290
    %v1292 = vpop.f32.mrf.mxu0
    %1293 = vdwg.mxu0
    %1294 = vrot.lane.b32.xlu0 %v275, 104
    %v1295 = vpop.permute.xlu0 %1294
    %1296 = vrot.lane.b32.xlu0 %v275, 72
    %v1297 = vpop.permute.xlu0 %1296
    %v1298 = vsel %vm284, %v1295, 0
    %v1300 = vsel %vm284, %v1297, 0
    %1302 = vmatprep.subr.mxu0 0.0
    %1303 = vmatpush1.xpose.msra.mxu0 0.0
    %1304 = vmatprep.subr.mxu0 0.0
    %1305 = vmatpush1.xpose.msra.mxu0 0.0
    %1306 = vmatprep.subr.mxu0 0.0
    %1307 = vmatpush1.xpose.msra.mxu0 0.0
    %1308 = vmatprep.subr.mxu0 0.0
    %1309 = vmatpush1.xpose.msra.mxu0 0.0
    %1310 = vmatprep.subr.mxu0 0.0
    %1311 = vmatpush1.xpose.msra.mxu0 0.0
    %1312 = vmatprep.subr.mxu0 0.0
    %1313 = vmatpush1.xpose.msra.mxu0 0.0
    %1314 = vmatprep.subr.mxu0 0.0
    %1315 = vmatpush1.xpose.msra.mxu0 0.0
    %1316 = vmatprep.subr.mxu0 0.0
    %1317 = vmatpush1.xpose.msra.mxu0 0.0
    %1318 = vmatprep.subr.mxu0 0.0
    %1319 = vmatpush1.xpose.msra.mxu0 0.0
    %1320 = vmatprep.subr.mxu0 0.0
    %1321 = vmatpush1.xpose.msra.mxu0 0.0
    %1322 = vmatprep.subr.mxu0 0.0
    %1323 = vmatpush1.xpose.msra.mxu0 0.0
    %1324 = vmatprep.subr.mxu0 0.0
    %1325 = vmatpush1.xpose.msra.mxu0 0.0
    %1326 = vmatprep.subr.mxu0 0.0
    %1327 = vmatpush1.xpose.msra.mxu0 0.0
    %1328 = vmatprep.subr.mxu0 0.0
    %1329 = vmatpush1.xpose.msra.mxu0 0.0
    %1330 = vmatprep.subr.mxu0 0.0
    %1331 = vmatpush1.xpose.msra.mxu0 0.0
    %1332 = vmatprep.subr.mxu0 0.0
    %1333 = vmatpush1.xpose.msra.mxu0 %v1300
    %1334 = vmatprep.subr.mxu0 0.0
    %1335 = vmatpush2.xpose.msra.mxu0 0.0
    %1336 = vmatprep.subr.mxu0 0.0
    %1337 = vmatpush2.xpose.msra.mxu0 0.0
    %1338 = vmatprep.subr.mxu0 0.0
    %1339 = vmatpush2.xpose.msra.mxu0 0.0
    %1340 = vmatprep.subr.mxu0 0.0
    %1341 = vmatpush2.xpose.msra.mxu0 0.0
    %1342 = vmatprep.subr.mxu0 0.0
    %1343 = vmatpush2.xpose.msra.mxu0 0.0
    %1344 = vmatprep.subr.mxu0 0.0
    %1345 = vmatpush2.xpose.msra.mxu0 0.0
    %1346 = vmatprep.subr.mxu0 0.0
    %1347 = vmatpush2.xpose.msra.mxu0 0.0
    %1348 = vmatprep.subr.mxu0 0.0
    %1349 = vmatpush2.xpose.msra.mxu0 0.0
    %1350 = vmatprep.subr.mxu0 0.0
    %1351 = vmatpush2.xpose.msra.mxu0 0.0
    %1352 = vmatprep.subr.mxu0 0.0
    %1353 = vmatpush2.xpose.msra.mxu0 0.0
    %1354 = vmatprep.subr.mxu0 0.0
    %1355 = vmatpush2.xpose.msra.mxu0 0.0
    %1356 = vmatprep.subr.mxu0 0.0
    %1357 = vmatpush2.xpose.msra.mxu0 0.0
    %1358 = vmatprep.subr.mxu0 0.0
    %1359 = vmatpush2.xpose.msra.mxu0 0.0
    %1360 = vmatprep.subr.mxu0 0.0
    %1361 = vmatpush2.xpose.msra.mxu0 0.0
    %1362 = vmatprep.subr.mxu0 0.0
    %1363 = vmatpush2.xpose.msra.mxu0 0.0
    %1364 = vmatprep.subr.mxu0 0.0
    %1365 = vmatpush2.xpose.msra.mxu0 0.0
    %1366 = vmatprep.mubr.f32.mxu0 0.0
    %1367 = vmatmul.mubr.f32.gmra.mxu0 %v1298
    %v1368 = vpop.f32.mrf.mxu0
    %v1369 = vadd.f32 0.0, %v1368
    %v1370 = vpop.f32.mrf.mxu0
    %1371 = vdwg.mxu0
    %1372 = vrot.lane.b32.xlu0 %v278, 104
    %v1373 = vpop.permute.xlu0 %1372
    %1374 = vrot.lane.b32.xlu0 %v278, 72
    %v1375 = vpop.permute.xlu0 %1374
    %v1376 = vsel %vm284, %v1373, 0
    %v1378 = vsel %vm284, %v1375, 0
    %1380 = vmatprep.subr.mxu0 0.0
    %1381 = vmatpush1.xpose.msra.mxu0 0.0
    %1382 = vmatprep.subr.mxu0 0.0
    %1383 = vmatpush1.xpose.msra.mxu0 0.0
    %1384 = vmatprep.subr.mxu0 0.0
    %1385 = vmatpush1.xpose.msra.mxu0 0.0
    %1386 = vmatprep.subr.mxu0 0.0
    %1387 = vmatpush1.xpose.msra.mxu0 0.0
    %1388 = vmatprep.subr.mxu0 0.0
    %1389 = vmatpush1.xpose.msra.mxu0 0.0
    %1390 = vmatprep.subr.mxu0 0.0
    %1391 = vmatpush1.xpose.msra.mxu0 0.0
    %1392 = vmatprep.subr.mxu0 0.0
    %1393 = vmatpush1.xpose.msra.mxu0 0.0
    %1394 = vmatprep.subr.mxu0 0.0
    %1395 = vmatpush1.xpose.msra.mxu0 0.0
    %1396 = vmatprep.subr.mxu0 0.0
    %1397 = vmatpush1.xpose.msra.mxu0 0.0
    %1398 = vmatprep.subr.mxu0 0.0
    %1399 = vmatpush1.xpose.msra.mxu0 0.0
    %1400 = vmatprep.subr.mxu0 0.0
    %1401 = vmatpush1.xpose.msra.mxu0 0.0
    %1402 = vmatprep.subr.mxu0 0.0
    %1403 = vmatpush1.xpose.msra.mxu0 0.0
    %1404 = vmatprep.subr.mxu0 0.0
    %1405 = vmatpush1.xpose.msra.mxu0 0.0
    %1406 = vmatprep.subr.mxu0 0.0
    %1407 = vmatpush1.xpose.msra.mxu0 0.0
    %1408 = vmatprep.subr.mxu0 0.0
    %1409 = vmatpush1.xpose.msra.mxu0 0.0
    %1410 = vmatprep.subr.mxu0 0.0
    %1411 = vmatpush1.xpose.msra.mxu0 %v1378
    %1412 = vmatprep.subr.mxu0 0.0
    %1413 = vmatpush2.xpose.msra.mxu0 0.0
    %1414 = vmatprep.subr.mxu0 0.0
    %1415 = vmatpush2.xpose.msra.mxu0 0.0
    %1416 = vmatprep.subr.mxu0 0.0
    %1417 = vmatpush2.xpose.msra.mxu0 0.0
    %1418 = vmatprep.subr.mxu0 0.0
    %1419 = vmatpush2.xpose.msra.mxu0 0.0
    %1420 = vmatprep.subr.mxu0 0.0
    %1421 = vmatpush2.xpose.msra.mxu0 0.0
    %1422 = vmatprep.subr.mxu0 0.0
    %1423 = vmatpush2.xpose.msra.mxu0 0.0
    %1424 = vmatprep.subr.mxu0 0.0
    %1425 = vmatpush2.xpose.msra.mxu0 0.0
    %1426 = vmatprep.subr.mxu0 0.0
    %1427 = vmatpush2.xpose.msra.mxu0 0.0
    %1428 = vmatprep.subr.mxu0 0.0
    %1429 = vmatpush2.xpose.msra.mxu0 0.0
    %1430 = vmatprep.subr.mxu0 0.0
    %1431 = vmatpush2.xpose.msra.mxu0 0.0
    %1432 = vmatprep.subr.mxu0 0.0
    %1433 = vmatpush2.xpose.msra.mxu0 0.0
    %1434 = vmatprep.subr.mxu0 0.0
    %1435 = vmatpush2.xpose.msra.mxu0 0.0
    %1436 = vmatprep.subr.mxu0 0.0
    %1437 = vmatpush2.xpose.msra.mxu0 0.0
    %1438 = vmatprep.subr.mxu0 0.0
    %1439 = vmatpush2.xpose.msra.mxu0 0.0
    %1440 = vmatprep.subr.mxu0 0.0
    %1441 = vmatpush2.xpose.msra.mxu0 0.0
    %1442 = vmatprep.subr.mxu0 0.0
    %1443 = vmatpush2.xpose.msra.mxu0 0.0
    %1444 = vmatprep.mubr.f32.mxu0 0.0
    %1445 = vmatmul.mubr.f32.gmra.mxu0 %v1376
    %v1446 = vpop.f32.mrf.mxu0
    %v1447 = vadd.f32 0.0, %v1446
    %v1448 = vpop.f32.mrf.mxu0
    %1449 = vdwg.mxu0
    %v1450 = vmul.f32 %v1369, 0.35355338
    %v1451 = vmul.f32 %v1447, 0.35355338
    %v1452 = vadd.f32 %v1450, %v443
    %v1453 = vadd.f32 %v1451, %v447
    %v1454 = vsel %vm284, %v1452, -inf
    %1455 = vmax.xlane.f32.xlu0 %v1454
    %v1456 = vpop.xlane.xlu0 %1455
    %v1457 = vsel %vm284, %v1453, -inf
    %1458 = vmax.xlane.f32.xlu0 %v1457
    %v1459 = vpop.xlane.xlu0 %1458
    %v1460 = vsub.f32 %v1452, %v1456
    %v1461 = vsub.f32 %v1453, %v1459
    %v1462 = vmul.f32 %v1460, 1.442695
    %v1463 = vpow.pop %v1462
    %v1464 = vmul.f32 %v1461, 1.442695
    %v1465 = vpow.pop %v1464
    %v1466 = vsel %vm284, %v1463, 0.0
    %1467 = vadd.xlane.f32.xlu0 %v1466
    %v1468 = vpop.xlane.xlu0 %1467
    %v1469 = vsel %vm284, %v1465, 0.0
    %1470 = vadd.xlane.f32.xlu0 %v1469
    %v1471 = vpop.xlane.xlu0 %1470
    %v1472 = vrcp.pop %v1468
    %v1473 = vrcp.pop %v1471
    %v1474 = vmul.f32 %v1463, %v1472
    %v1475 = vmul.f32 %v1465, %v1473
    %1476 = vrot.lane.b32.xlu0 %v275, 40
    %v1477 = vpop.permute.xlu0 %1476
    %v1480 = vsel %vm284, %v1474, 0
    %1482 = vmatprep.subr.mxu0 0.0
    %1483 = vmatpush1.msra.mxu0 0.0
    %1484 = vmatprep.subr.mxu0 0.0
    %1485 = vmatpush1.msra.mxu0 0.0
    %1486 = vmatprep.subr.mxu0 0.0
    %1487 = vmatpush1.msra.mxu0 0.0
    %1488 = vmatprep.subr.mxu0 0.0
    %1489 = vmatpush1.msra.mxu0 0.0
    %1490 = vmatprep.subr.mxu0 0.0
    %1491 = vmatpush1.msra.mxu0 0.0
    %1492 = vmatprep.subr.mxu0 0.0
    %1493 = vmatpush1.msra.mxu0 0.0
    %1494 = vmatprep.subr.mxu0 0.0
    %1495 = vmatpush1.msra.mxu0 0.0
    %1496 = vmatprep.subr.mxu0 0.0
    %1497 = vmatpush1.msra.mxu0 0.0
    %1498 = vmatprep.subr.mxu0 0.0
    %1499 = vmatpush1.msra.mxu0 0.0
    %1500 = vmatprep.subr.mxu0 0.0
    %1501 = vmatpush1.msra.mxu0 0.0
    %1502 = vmatprep.subr.mxu0 0.0
    %1503 = vmatpush1.msra.mxu0 0.0
    %1504 = vmatprep.subr.mxu0 0.0
    %1505 = vmatpush1.msra.mxu0 0.0
    %1506 = vmatprep.subr.mxu0 0.0
    %1507 = vmatpush1.msra.mxu0 0.0
    %1508 = vmatprep.subr.mxu0 0.0
    %1509 = vmatpush1.msra.mxu0 0.0
    %1510 = vmatprep.subr.mxu0 0.0
    %1511 = vmatpush1.msra.mxu0 0.0
    %1512 = vmatprep.subr.mxu0 0.0
    %1513 = vmatpush1.msra.mxu0 %v1477
    %1514 = vmatprep.subr.mxu0 0.0
    %1515 = vmatpush2.msra.mxu0 0.0
    %1516 = vmatprep.subr.mxu0 0.0
    %1517 = vmatpush2.msra.mxu0 0.0
    %1518 = vmatprep.subr.mxu0 0.0
    %1519 = vmatpush2.msra.mxu0 0.0
    %1520 = vmatprep.subr.mxu0 0.0
    %1521 = vmatpush2.msra.mxu0 0.0
    %1522 = vmatprep.subr.mxu0 0.0
    %1523 = vmatpush2.msra.mxu0 0.0
    %1524 = vmatprep.subr.mxu0 0.0
    %1525 = vmatpush2.msra.mxu0 0.0
    %1526 = vmatprep.subr.mxu0 0.0
    %1527 = vmatpush2.msra.mxu0 0.0
    %1528 = vmatprep.subr.mxu0 0.0
    %1529 = vmatpush2.msra.mxu0 0.0
    %1530 = vmatprep.subr.mxu0 0.0
    %1531 = vmatpush2.msra.mxu0 0.0
    %1532 = vmatprep.subr.mxu0 0.0
    %1533 = vmatpush2.msra.mxu0 0.0
    %1534 = vmatprep.subr.mxu0 0.0
    %1535 = vmatpush2.msra.mxu0 0.0
    %1536 = vmatprep.subr.mxu0 0.0
    %1537 = vmatpush2.msra.mxu0 0.0
    %1538 = vmatprep.subr.mxu0 0.0
    %1539 = vmatpush2.msra.mxu0 0.0
    %1540 = vmatprep.subr.mxu0 0.0
    %1541 = vmatpush2.msra.mxu0 0.0
    %1542 = vmatprep.subr.mxu0 0.0
    %1543 = vmatpush2.msra.mxu0 0.0
    %1544 = vmatprep.subr.mxu0 0.0
    %1545 = vmatpush2.msra.mxu0 0.0
    %1546 = vmatprep.mubr.f32.mxu0 0.0
    %1547 = vmatmul.mubr.f32.gmra.mxu0 %v1480
    %v1548 = vpop.f32.mrf.mxu0
    %v1549 = vadd.f32 0.0, %v1548
    %v1550 = vpop.f32.mrf.mxu0
    %1551 = vdwg.mxu0
    %1552 = vrot.lane.b32.xlu0 %v278, 40
    %v1553 = vpop.permute.xlu0 %1552
    %v1556 = vsel %vm284, %v1475, 0
    %1558 = vmatprep.subr.mxu0 0.0
    %1559 = vmatpush1.msra.mxu0 0.0
    %1560 = vmatprep.subr.mxu0 0.0
    %1561 = vmatpush1.msra.mxu0 0.0
    %1562 = vmatprep.subr.mxu0 0.0
    %1563 = vmatpush1.msra.mxu0 0.0
    %1564 = vmatprep.subr.mxu0 0.0
    %1565 = vmatpush1.msra.mxu0 0.0
    %1566 = vmatprep.subr.mxu0 0.0
    %1567 = vmatpush1.msra.mxu0 0.0
    %1568 = vmatprep.subr.mxu0 0.0
    %1569 = vmatpush1.msra.mxu0 0.0
    %1570 = vmatprep.subr.mxu0 0.0
    %1571 = vmatpush1.msra.mxu0 0.0
    %1572 = vmatprep.subr.mxu0 0.0
    %1573 = vmatpush1.msra.mxu0 0.0
    %1574 = vmatprep.subr.mxu0 0.0
    %1575 = vmatpush1.msra.mxu0 0.0
    %1576 = vmatprep.subr.mxu0 0.0
    %1577 = vmatpush1.msra.mxu0 0.0
    %1578 = vmatprep.subr.mxu0 0.0
    %1579 = vmatpush1.msra.mxu0 0.0
    %1580 = vmatprep.subr.mxu0 0.0
    %1581 = vmatpush1.msra.mxu0 0.0
    %1582 = vmatprep.subr.mxu0 0.0
    %1583 = vmatpush1.msra.mxu0 0.0
    %1584 = vmatprep.subr.mxu0 0.0
    %1585 = vmatpush1.msra.mxu0 0.0
    %1586 = vmatprep.subr.mxu0 0.0
    %1587 = vmatpush1.msra.mxu0 0.0
    %1588 = vmatprep.subr.mxu0 0.0
    %1589 = vmatpush1.msra.mxu0 %v1553
    %1590 = vmatprep.subr.mxu0 0.0
    %1591 = vmatpush2.msra.mxu0 0.0
    %1592 = vmatprep.subr.mxu0 0.0
    %1593 = vmatpush2.msra.mxu0 0.0
    %1594 = vmatprep.subr.mxu0 0.0
    %1595 = vmatpush2.msra.mxu0 0.0
    %1596 = vmatprep.subr.mxu0 0.0
    %1597 = vmatpush2.msra.mxu0 0.0
    %1598 = vmatprep.subr.mxu0 0.0
    %1599 = vmatpush2.msra.mxu0 0.0
    %1600 = vmatprep.subr.mxu0 0.0
    %1601 = vmatpush2.msra.mxu0 0.0
    %1602 = vmatprep.subr.mxu0 0.0
    %1603 = vmatpush2.msra.mxu0 0.0
    %1604 = vmatprep.subr.mxu0 0.0
    %1605 = vmatpush2.msra.mxu0 0.0
    %1606 = vmatprep.subr.mxu0 0.0
    %1607 = vmatpush2.msra.mxu0 0.0
    %1608 = vmatprep.subr.mxu0 0.0
    %1609 = vmatpush2.msra.mxu0 0.0
    %1610 = vmatprep.subr.mxu0 0.0
    %1611 = vmatpush2.msra.mxu0 0.0
    %1612 = vmatprep.subr.mxu0 0.0
    %1613 = vmatpush2.msra.mxu0 0.0
    %1614 = vmatprep.subr.mxu0 0.0
    %1615 = vmatpush2.msra.mxu0 0.0
    %1616 = vmatprep.subr.mxu0 0.0
    %1617 = vmatpush2.msra.mxu0 0.0
    %1618 = vmatprep.subr.mxu0 0.0
    %1619 = vmatpush2.msra.mxu0 0.0
    %1620 = vmatprep.subr.mxu0 0.0
    %1621 = vmatpush2.msra.mxu0 0.0
    %1622 = vmatprep.mubr.f32.mxu0 0.0
    %1623 = vmatmul.mubr.f32.gmra.mxu0 %v1556
    %v1624 = vpop.f32.mrf.mxu0
    %v1625 = vadd.f32 0.0, %v1624
    %v1626 = vpop.f32.mrf.mxu0
    %1627 = vdwg.mxu0
    %1630 = vrot.lane.b32.xlu0 %v881, 8
    %v1631 = vpop.permute.xlu0 %1630
    %1632 = vrot.lane.b32.xlu0 %v957, 8
    %v1633 = vpop.permute.xlu0 %1632
    %1638 = vrot.lane.b32.xlu0 %v1215, 16
    %v1639 = vpop.permute.xlu0 %1638
    %1640 = vrot.lane.b32.xlu0 %v1291, 16
    %v1641 = vpop.permute.xlu0 %1640
    %1646 = vrot.lane.b32.xlu0 %v1549, 24
    %v1647 = vpop.permute.xlu0 %1646
    %1648 = vrot.lane.b32.xlu0 %v1625, 24
    %v1649 = vpop.permute.xlu0 %1648
    %v1652 = vsel %vm284, %v547, %v1631
    %v1653 = vsel %vm284, %v623, %v1633
    %vm1654 = vcmask 130048
    %v1655 = vsel %vm1654, %v1652, %v1639
    %v1656 = vsel %vm1654, %v1653, %v1641
    %vm1657 = vcmask 195584
    %v1658 = vsel %vm1657, %v1655, %v1647
    %v1659 = vsel %vm1657, %v1656, %v1649
    %v1660 = vpack.c.bf16 %v1659, %v1658
    %v1661 = vld [vmem:[%s5] sm:$0xf]
    %v1662 = vld [vmem:[%s5 + $0x4] sm:$0xf]
    %v1663 = vld [vmem:[%s5 + $0x8] sm:$0xf]
    %v1664 = vld [vmem:[%s5 + $0xc] sm:$0xf]
    %v1665 = vld [vmem:[%s3 + $0x1] sm:$0x1]
    %v1666 = vlaneseq
    %v1667 = vshrl.u32 %v1666, 7
    %v1668 = vsub.s32 0, %v1667
    %v1669 = vrot.slane %v1665, %v1668
    %v1674 = vunpack.c.l.b16 %v1661
    %v1675 = vunpack.c.l.b16 %v1662
    %v1676 = vunpack.c.l.b16 %v1663
    %v1677 = vunpack.c.l.b16 %v1664
    %v1678 = vpack.c.b16 %v1675, %v1674
    %v1679 = vpack.c.b16 %v1677, %v1676
    %1683 = vrot.lane.b32.xlu0 %v1669, 32
    %v1684 = vpop.permute.xlu0 %1683
    %v1687 = vsel %vm169, %v1660, 0
    %1689 = vmatprep.subr.bf16.mxu0 0
    %1690 = vmatpush1.bf16.msra.mxu0 0
    %1691 = vmatprep.subr.bf16.mxu0 0
    %1692 = vmatpush1.bf16.msra.mxu0 0
    %1693 = vmatprep.subr.bf16.mxu0 0
    %1694 = vmatpush1.bf16.msra.mxu0 0
    %1695 = vmatprep.subr.bf16.mxu0 0
    %1696 = vmatpush1.bf16.msra.mxu0 0
    %1697 = vmatprep.subr.bf16.mxu0 0
    %1698 = vmatpush1.bf16.msra.mxu0 0
    %1699 = vmatprep.subr.bf16.mxu0 0
    %1700 = vmatpush1.bf16.msra.mxu0 0
    %1701 = vmatprep.subr.bf16.mxu0 0
    %1702 = vmatpush1.bf16.msra.mxu0 %v1679
    %1703 = vmatprep.subr.bf16.mxu0 0
    %1704 = vmatpush1.bf16.msra.mxu0 %v1678
    %1705 = vmatprep.subr.bf16.mxu0 0
    %1706 = vmatpush2.bf16.msra.mxu0 0
    %1707 = vmatprep.subr.bf16.mxu0 0
    %1708 = vmatpush2.bf16.msra.mxu0 0
    %1709 = vmatprep.subr.bf16.mxu0 0
    %1710 = vmatpush2.bf16.msra.mxu0 0
    %1711 = vmatprep.subr.bf16.mxu0 0
    %1712 = vmatpush2.bf16.msra.mxu0 0
    %1713 = vmatprep.subr.bf16.mxu0 0
    %1714 = vmatpush2.bf16.msra.mxu0 0
    %1715 = vmatprep.subr.bf16.mxu0 0
    %1716 = vmatpush2.bf16.msra.mxu0 0
    %1717 = vmatprep.subr.bf16.mxu0 0
    %1718 = vmatpush2.bf16.msra.mxu0 0
    %1719 = vmatprep.subr.bf16.mxu0 0
    %1720 = vmatpush2.bf16.msra.mxu0 0
    %1721 = vmatprep.mubr.bf16.mxu0 0
    %1722 = vmatmul.mubr.bf16.gmra.mxu0 %v1687
    %v1723 = vpop.f32.mrf.mxu0
    %v1724 = vadd.f32 %v1684, %v1723
    %v1725 = vpop.f32.mrf.mxu0
    %v1726 = vpop.f32.mrf.mxu0
    %v1727 = vadd.f32 %v1684, %v1726
    %v1728 = vpop.f32.mrf.mxu0
    %1729 = vdwg.mxu0
    %v1730 = vadd.f32 %v1724, %v207
    %v1731 = vadd.f32 %v1727, %v208
    %v1732 = vld [vmem:[%s3 + $0x2] sm:$0x1]
    %v1733 = vsel %vm169, %v1730, 0.0
    %1734 = vadd.xlane.f32.xlu0 %v1733
    %v1735 = vpop.xlane.xlu0 %1734
    %v1736 = vsel %vm169, %v1731, 0.0
    %1737 = vadd.xlane.f32.xlu0 %v1736
    %v1738 = vpop.xlane.xlu0 %1737
    %v1739 = vmul.f32 %v1735, %v176
    %v1740 = vmul.f32 %v1738, %v176
    %v1741 = vsub.f32 %v1730, %v1739
    %v1742 = vsub.f32 %v1731, %v1740
    %v1743 = vmul.f32 %v1741, %v1741
    %v1744 = vmul.f32 %v1742, %v1742
    %v1745 = vsel %vm169, %v1743, 0.0
    %1746 = vadd.xlane.f32.xlu0 %v1745
    %v1747 = vpop.xlane.xlu0 %1746
    %v1748 = vsel %vm169, %v1744, 0.0
    %1749 = vadd.xlane.f32.xlu0 %v1748
    %v1750 = vpop.xlane.xlu0 %1749
    %v1751 = vmul.f32 %v1747, %v176
    %v1752 = vmul.f32 %v1750, %v176
    %v1753 = vadd.f32 %v1751, 1e-12
    %v1754 = vadd.f32 %v1752, 1e-12
    %v1755 = vrsqrt.pop %v1753
    %v1756 = vrsqrt.pop %v1754
    %v1757 = vmul.f32 %v1741, %v1755
    %v1758 = vmul.f32 %v1742, %v1756
    %v1759 = vlaneseq
    %v1760 = vshrl.u32 %v1759, 7
    %v1761 = vsub.s32 0, %v1760
    %v1762 = vrot.slane %v1732, %v1761
    %v1763 = vmul.f32 %v1757, %v1762
    %v1764 = vmul.f32 %v1758, %v1762
    %1766 = vrot.lane.b32.xlu0 %v1762, 96
    %v1767 = vpop.permute.xlu0 %1766
    %v1769 = vadd.f32 %v1763, %v1767
    %v1770 = vadd.f32 %v1764, %v1767
    %v1771 = vpack.c.bf16 %v1770, %v1769
    %v1772 = vld [vmem:[%s6] sm:$0xf]
    %v1773 = vld [vmem:[%s6 + $0x4] sm:$0xf]
    %v1774 = vld [vmem:[%s6 + $0x8] sm:$0xf]
    %v1775 = vld [vmem:[%s6 + $0xc] sm:$0xf]
    %v1776 = vld [vmem:[%s3 + $0x3] sm:$0x1]
    %v1777 = vlaneseq
    %v1778 = vshrl.u32 %v1777, 7
    %v1779 = vsub.s32 0, %v1778
    %v1780 = vrot.slane %v1776, %v1779
    %v1785 = vunpack.c.l.b16 %v1772
    %v1786 = vunpack.c.l.b16 %v1773
    %v1787 = vunpack.c.l.b16 %v1774
    %v1788 = vunpack.c.l.b16 %v1775
    %v1789 = vpack.c.b16 %v1786, %v1785
    %v1790 = vpack.c.b16 %v1788, %v1787
    %v1794 = vsel %vm169, %v1771, 0
    %1796 = vmatprep.subr.bf16.mxu0 0
    %1797 = vmatpush1.bf16.msra.mxu0 0
    %1798 = vmatprep.subr.bf16.mxu0 0
    %1799 = vmatpush1.bf16.msra.mxu0 0
    %1800 = vmatprep.subr.bf16.mxu0 0
    %1801 = vmatpush1.bf16.msra.mxu0 0
    %1802 = vmatprep.subr.bf16.mxu0 0
    %1803 = vmatpush1.bf16.msra.mxu0 0
    %1804 = vmatprep.subr.bf16.mxu0 0
    %1805 = vmatpush1.bf16.msra.mxu0 0
    %1806 = vmatprep.subr.bf16.mxu0 0
    %1807 = vmatpush1.bf16.msra.mxu0 0
    %1808 = vmatprep.subr.bf16.mxu0 0
    %1809 = vmatpush1.bf16.msra.mxu0 %v1790
    %1810 = vmatprep.subr.bf16.mxu0 0
    %1811 = vmatpush1.bf16.msra.mxu0 %v1789
    %1812 = vmatprep.subr.bf16.mxu0 0
    %1813 = vmatpush2.bf16.msra.mxu0 0
    %1814 = vmatprep.subr.bf16.mxu0 0
    %1815 = vmatpush2.bf16.msra.mxu0 0
    %1816 = vmatprep.subr.bf16.mxu0 0
    %1817 = vmatpush2.bf16.msra.mxu0 0
    %1818 = vmatprep.subr.bf16.mxu0 0
    %1819 = vmatpush2.bf16.msra.mxu0 0
    %1820 = vmatprep.subr.bf16.mxu0 0
    %1821 = vmatpush2.bf16.msra.mxu0 0
    %1822 = vmatprep.subr.bf16.mxu0 0
    %1823 = vmatpush2.bf16.msra.mxu0 0
    %1824 = vmatprep.subr.bf16.mxu0 0
    %1825 = vmatpush2.bf16.msra.mxu0 0
    %1826 = vmatprep.subr.bf16.mxu0 0
    %1827 = vmatpush2.bf16.msra.mxu0 0
    %1828 = vmatprep.mubr.bf16.mxu0 0
    %1829 = vmatmul.mubr.bf16.gmra.mxu0 %v1794
    %v1830 = vpop.f32.mrf.mxu0
    %v1831 = vadd.f32 %v1780, %v1830
    %v1832 = vpop.f32.mrf.mxu0
    %v1833 = vpop.f32.mrf.mxu0
    %v1834 = vadd.f32 %v1780, %v1833
    %v1835 = vpop.f32.mrf.mxu0
    %1836 = vdwg.mxu0
    %v1837 = vmul.f32 %v1831, 0.5
    %v1838 = vmul.f32 %v1834, 0.5
    %v1839 = vmul.f32 %v1831, 0.70710677
    %v1840 = vmul.f32 %v1834, 0.70710677
    %v1841 = verf.f32.pop %v1839
    %v1842 = verf.f32.pop %v1840
    %v1843 = vadd.f32 %v1841, 1.0
    %v1844 = vadd.f32 %v1842, 1.0
    %v1845 = vmul.f32 %v1837, %v1843
    %v1846 = vmul.f32 %v1838, %v1844
    %v1847 = vpack.c.bf16 %v1846, %v1845
    %v1848 = vld [vmem:[%s7] sm:$0xf]
    %v1849 = vld [vmem:[%s7 + $0x4] sm:$0xf]
    %v1850 = vld [vmem:[%s7 + $0x8] sm:$0xf]
    %v1851 = vld [vmem:[%s7 + $0xc] sm:$0xf]
    %v1852 = vld [vmem:[%s7 + $0x10] sm:$0xf]
    %v1853 = vld [vmem:[%s7 + $0x14] sm:$0xf]
    %v1854 = vld [vmem:[%s7 + $0x18] sm:$0xf]
    %v1855 = vld [vmem:[%s7 + $0x1c] sm:$0xf]
    %v1864 = vunpack.c.l.b16 %v1848
    %v1865 = vunpack.c.l.b16 %v1849
    %v1866 = vunpack.c.l.b16 %v1850
    %v1867 = vunpack.c.l.b16 %v1851
    %v1868 = vunpack.c.l.b16 %v1852
    %v1869 = vunpack.c.l.b16 %v1853
    %v1870 = vunpack.c.l.b16 %v1854
    %v1871 = vunpack.c.l.b16 %v1855
    %v1872 = vpack.c.b16 %v1865, %v1864
    %v1873 = vpack.c.b16 %v1867, %v1866
    %v1874 = vpack.c.b16 %v1869, %v1868
    %v1875 = vpack.c.b16 %v1871, %v1870
    %1881 = vrot.lane.b32.xlu0 %v1780, 64
    %v1882 = vpop.permute.xlu0 %1881
    %vm1884 = vcmask 523264
    %v1886 = vsel %vm1884, %v1847, 0
    %1888 = vmatprep.subr.bf16.mxu0 0
    %1889 = vmatpush1.bf16.msra.mxu0 0
    %1890 = vmatprep.subr.bf16.mxu0 0
    %1891 = vmatpush1.bf16.msra.mxu0 0
    %1892 = vmatprep.subr.bf16.mxu0 0
    %1893 = vmatpush1.bf16.msra.mxu0 0
    %1894 = vmatprep.subr.bf16.mxu0 0
    %1895 = vmatpush1.bf16.msra.mxu0 0
    %1896 = vmatprep.subr.bf16.mxu0 0
    %1897 = vmatpush1.bf16.msra.mxu0 %v1875
    %1898 = vmatprep.subr.bf16.mxu0 0
    %1899 = vmatpush1.bf16.msra.mxu0 %v1874
    %1900 = vmatprep.subr.bf16.mxu0 0
    %1901 = vmatpush1.bf16.msra.mxu0 %v1873
    %1902 = vmatprep.subr.bf16.mxu0 0
    %1903 = vmatpush1.bf16.msra.mxu0 %v1872
    %1904 = vmatprep.subr.bf16.mxu0 0
    %1905 = vmatpush2.bf16.msra.mxu0 0
    %1906 = vmatprep.subr.bf16.mxu0 0
    %1907 = vmatpush2.bf16.msra.mxu0 0
    %1908 = vmatprep.subr.bf16.mxu0 0
    %1909 = vmatpush2.bf16.msra.mxu0 0
    %1910 = vmatprep.subr.bf16.mxu0 0
    %1911 = vmatpush2.bf16.msra.mxu0 0
    %1912 = vmatprep.subr.bf16.mxu0 0
    %1913 = vmatpush2.bf16.msra.mxu0 0
    %1914 = vmatprep.subr.bf16.mxu0 0
    %1915 = vmatpush2.bf16.msra.mxu0 0
    %1916 = vmatprep.subr.bf16.mxu0 0
    %1917 = vmatpush2.bf16.msra.mxu0 0
    %1918 = vmatprep.subr.bf16.mxu0 0
    %1919 = vmatpush2.bf16.msra.mxu0 0
    %1920 = vmatprep.mubr.bf16.mxu0 0
    %1921 = vmatmul.mubr.bf16.gmra.mxu0 %v1886
    %v1922 = vpop.f32.mrf.mxu0
    %v1923 = vadd.f32 %v1882, %v1922
    %v1924 = vpop.f32.mrf.mxu0
    %v1925 = vpop.f32.mrf.mxu0
    %v1926 = vadd.f32 %v1882, %v1925
    %v1927 = vpop.f32.mrf.mxu0
    %1928 = vdwg.mxu0
    %v1929 = vadd.f32 %v1923, %v1769
    %v1930 = vadd.f32 %v1926, %v1770
    %v1931 = vsel %vm169, %v1929, 0.0
    %1932 = vadd.xlane.f32.xlu0 %v1931
    %v1933 = vpop.xlane.xlu0 %1932
    %v1934 = vsel %vm169, %v1930, 0.0
    %1935 = vadd.xlane.f32.xlu0 %v1934
    %v1936 = vpop.xlane.xlu0 %1935
    %v1937 = vmul.f32 %v1933, %v176
    %v1938 = vmul.f32 %v1936, %v176
    %v1939 = vsub.f32 %v1929, %v1937
    %v1940 = vsub.f32 %v1930, %v1938
    %v1941 = vmul.f32 %v1939, %v1939
    %v1942 = vmul.f32 %v1940, %v1940
    %v1943 = vsel %vm169, %v1941, 0.0
    %1944 = vadd.xlane.f32.xlu0 %v1943
    %v1945 = vpop.xlane.xlu0 %1944
    %v1946 = vsel %vm169, %v1942, 0.0
    %1947 = vadd.xlane.f32.xlu0 %v1946
    %v1948 = vpop.xlane.xlu0 %1947
    %v1949 = vmul.f32 %v1945, %v176
    %v1950 = vmul.f32 %v1948, %v176
    %v1951 = vadd.f32 %v1949, 1e-12
    %v1952 = vadd.f32 %v1950, 1e-12
    %v1953 = vrsqrt.pop %v1951
    %v1954 = vrsqrt.pop %v1952
    %v1955 = vmul.f32 %v1939, %v1953
    %v1956 = vmul.f32 %v1940, %v1954
    %1957 = vrot.lane.b32.xlu0 %v1762, 64
    %v1958 = vpop.permute.xlu0 %1957
    %v1960 = vmul.f32 %v1955, %v1958
    %v1961 = vmul.f32 %v1956, %v1958
    %1962 = vrot.lane.b32.xlu0 %v1762, 32
    %v1963 = vpop.permute.xlu0 %1962
    %v1965 = vadd.f32 %v1960, %v1963
    %v1966 = vadd.f32 %v1961, %v1963
    %v1967 = vpack.c.bf16 %v1966, %v1965
    %s1968 = scalar_lea.vmem %s4, 16
    %v1969 = vld [vmem:[%s1968] sm:$0xf]
    %v1970 = vld [vmem:[%s1968 + $0x4] sm:$0xf]
    %v1971 = vld [vmem:[%s1968 + $0x8] sm:$0xf]
    %v1972 = vld [vmem:[%s1968 + $0xc] sm:$0xf]
    %v1973 = vld [vmem:[%s3 + $0x4] sm:$0x1]
    %v1974 = vlaneseq
    %v1975 = vshrl.u32 %v1974, 7
    %v1976 = vsub.s32 0, %v1975
    %v1977 = vrot.slane %v1973, %v1976
    %v1982 = vunpack.c.l.b16 %v1969
    %v1983 = vunpack.c.l.b16 %v1970
    %v1984 = vunpack.c.l.b16 %v1971
    %v1985 = vunpack.c.l.b16 %v1972
    %v1986 = vpack.c.b16 %v1983, %v1982
    %v1987 = vpack.c.b16 %v1985, %v1984
    %v1991 = vsel %vm169, %v1967, 0
    %1993 = vmatprep.subr.bf16.mxu0 0
    %1994 = vmatpush1.bf16.msra.mxu0 0
    %1995 = vmatprep.subr.bf16.mxu0 0
    %1996 = vmatpush1.bf16.msra.mxu0 0
    %1997 = vmatprep.subr.bf16.mxu0 0
    %1998 = vmatpush1.bf16.msra.mxu0 0
    %1999 = vmatprep.subr.bf16.mxu0 0
    %2000 = vmatpush1.bf16.msra.mxu0 0
    %2001 = vmatprep.subr.bf16.mxu0 0
    %2002 = vmatpush1.bf16.msra.mxu0 0
    %2003 = vmatprep.subr.bf16.mxu0 0
    %2004 = vmatpush1.bf16.msra.mxu0 0
    %2005 = vmatprep.subr.bf16.mxu0 0
    %2006 = vmatpush1.bf16.msra.mxu0 %v1987
    %2007 = vmatprep.subr.bf16.mxu0 0
    %2008 = vmatpush1.bf16.msra.mxu0 %v1986
    %2009 = vmatprep.subr.bf16.mxu0 0
    %2010 = vmatpush2.bf16.msra.mxu0 0
    %2011 = vmatprep.subr.bf16.mxu0 0
    %2012 = vmatpush2.bf16.msra.mxu0 0
    %2013 = vmatprep.subr.bf16.mxu0 0
    %2014 = vmatpush2.bf16.msra.mxu0 0
    %2015 = vmatprep.subr.bf16.mxu0 0
    %2016 = vmatpush2.bf16.msra.mxu0 0
    %2017 = vmatprep.subr.bf16.mxu0 0
    %2018 = vmatpush2.bf16.msra.mxu0 0
    %2019 = vmatprep.subr.bf16.mxu0 0
    %2020 = vmatpush2.bf16.msra.mxu0 0
    %2021 = vmatprep.subr.bf16.mxu0 0
    %2022 = vmatpush2.bf16.msra.mxu0 0
    %2023 = vmatprep.subr.bf16.mxu0 0
    %2024 = vmatpush2.bf16.msra.mxu0 0
    %2025 = vmatprep.mubr.bf16.mxu0 0
    %2026 = vmatmul.mubr.bf16.gmra.mxu0 %v1991
    %v2027 = vpop.f32.mrf.mxu0
    %v2028 = vadd.f32 %v1977, %v2027
    %v2029 = vpop.f32.mrf.mxu0
    %v2030 = vpop.f32.mrf.mxu0
    %v2031 = vadd.f32 %v1977, %v2030
    %v2032 = vpop.f32.mrf.mxu0
    %2033 = vdwg.mxu0
    %2035 = vrot.lane.b32.xlu0 %v2028, 96
    %v2036 = vpop.permute.xlu0 %2035
    %v2037 = vsel %vm284, %v2028, 0
    %v2039 = vsel %vm284, %v2036, 0
    %2041 = vmatprep.subr.mxu0 0.0
    %2042 = vmatpush1.xpose.msra.mxu0 0.0
    %2043 = vmatprep.subr.mxu0 0.0
    %2044 = vmatpush1.xpose.msra.mxu0 0.0
    %2045 = vmatprep.subr.mxu0 0.0
    %2046 = vmatpush1.xpose.msra.mxu0 0.0
    %2047 = vmatprep.subr.mxu0 0.0
    %2048 = vmatpush1.xpose.msra.mxu0 0.0
    %2049 = vmatprep.subr.mxu0 0.0
    %2050 = vmatpush1.xpose.msra.mxu0 0.0
    %2051 = vmatprep.subr.mxu0 0.0
    %2052 = vmatpush1.xpose.msra.mxu0 0.0
    %2053 = vmatprep.subr.mxu0 0.0
    %2054 = vmatpush1.xpose.msra.mxu0 0.0
    %2055 = vmatprep.subr.mxu0 0.0
    %2056 = vmatpush1.xpose.msra.mxu0 0.0
    %2057 = vmatprep.subr.mxu0 0.0
    %2058 = vmatpush1.xpose.msra.mxu0 0.0
    %2059 = vmatprep.subr.mxu0 0.0
    %2060 = vmatpush1.xpose.msra.mxu0 0.0
    %2061 = vmatprep.subr.mxu0 0.0
    %2062 = vmatpush1.xpose.msra.mxu0 0.0
    %2063 = vmatprep.subr.mxu0 0.0
    %2064 = vmatpush1.xpose.msra.mxu0 0.0
    %2065 = vmatprep.subr.mxu0 0.0
    %2066 = vmatpush1.xpose.msra.mxu0 0.0
    %2067 = vmatprep.subr.mxu0 0.0
    %2068 = vmatpush1.xpose.msra.mxu0 0.0
    %2069 = vmatprep.subr.mxu0 0.0
    %2070 = vmatpush1.xpose.msra.mxu0 0.0
    %2071 = vmatprep.subr.mxu0 0.0
    %2072 = vmatpush1.xpose.msra.mxu0 %v2039
    %2073 = vmatprep.subr.mxu0 0.0
    %2074 = vmatpush2.xpose.msra.mxu0 0.0
    %2075 = vmatprep.subr.mxu0 0.0
    %2076 = vmatpush2.xpose.msra.mxu0 0.0
    %2077 = vmatprep.subr.mxu0 0.0
    %2078 = vmatpush2.xpose.msra.mxu0 0.0
    %2079 = vmatprep.subr.mxu0 0.0
    %2080 = vmatpush2.xpose.msra.mxu0 0.0
    %2081 = vmatprep.subr.mxu0 0.0
    %2082 = vmatpush2.xpose.msra.mxu0 0.0
    %2083 = vmatprep.subr.mxu0 0.0
    %2084 = vmatpush2.xpose.msra.mxu0 0.0
    %2085 = vmatprep.subr.mxu0 0.0
    %2086 = vmatpush2.xpose.msra.mxu0 0.0
    %2087 = vmatprep.subr.mxu0 0.0
    %2088 = vmatpush2.xpose.msra.mxu0 0.0
    %2089 = vmatprep.subr.mxu0 0.0
    %2090 = vmatpush2.xpose.msra.mxu0 0.0
    %2091 = vmatprep.subr.mxu0 0.0
    %2092 = vmatpush2.xpose.msra.mxu0 0.0
    %2093 = vmatprep.subr.mxu0 0.0
    %2094 = vmatpush2.xpose.msra.mxu0 0.0
    %2095 = vmatprep.subr.mxu0 0.0
    %2096 = vmatpush2.xpose.msra.mxu0 0.0
    %2097 = vmatprep.subr.mxu0 0.0
    %2098 = vmatpush2.xpose.msra.mxu0 0.0
    %2099 = vmatprep.subr.mxu0 0.0
    %2100 = vmatpush2.xpose.msra.mxu0 0.0
    %2101 = vmatprep.subr.mxu0 0.0
    %2102 = vmatpush2.xpose.msra.mxu0 0.0
    %2103 = vmatprep.subr.mxu0 0.0
    %2104 = vmatpush2.xpose.msra.mxu0 0.0
    %2105 = vmatprep.mubr.f32.mxu0 0.0
    %2106 = vmatmul.mubr.f32.gmra.mxu0 %v2037
    %v2107 = vpop.f32.mrf.mxu0
    %v2108 = vadd.f32 0.0, %v2107
    %v2109 = vpop.f32.mrf.mxu0
    %2110 = vdwg.mxu0
    %2112 = vrot.lane.b32.xlu0 %v2031, 96
    %v2113 = vpop.permute.xlu0 %2112
    %v2114 = vsel %vm284, %v2031, 0
    %v2116 = vsel %vm284, %v2113, 0
    %2118 = vmatprep.subr.mxu0 0.0
    %2119 = vmatpush1.xpose.msra.mxu0 0.0
    %2120 = vmatprep.subr.mxu0 0.0
    %2121 = vmatpush1.xpose.msra.mxu0 0.0
    %2122 = vmatprep.subr.mxu0 0.0
    %2123 = vmatpush1.xpose.msra.mxu0 0.0
    %2124 = vmatprep.subr.mxu0 0.0
    %2125 = vmatpush1.xpose.msra.mxu0 0.0
    %2126 = vmatprep.subr.mxu0 0.0
    %2127 = vmatpush1.xpose.msra.mxu0 0.0
    %2128 = vmatprep.subr.mxu0 0.0
    %2129 = vmatpush1.xpose.msra.mxu0 0.0
    %2130 = vmatprep.subr.mxu0 0.0
    %2131 = vmatpush1.xpose.msra.mxu0 0.0
    %2132 = vmatprep.subr.mxu0 0.0
    %2133 = vmatpush1.xpose.msra.mxu0 0.0
    %2134 = vmatprep.subr.mxu0 0.0
    %2135 = vmatpush1.xpose.msra.mxu0 0.0
    %2136 = vmatprep.subr.mxu0 0.0
    %2137 = vmatpush1.xpose.msra.mxu0 0.0
    %2138 = vmatprep.subr.mxu0 0.0
    %2139 = vmatpush1.xpose.msra.mxu0 0.0
    %2140 = vmatprep.subr.mxu0 0.0
    %2141 = vmatpush1.xpose.msra.mxu0 0.0
    %2142 = vmatprep.subr.mxu0 0.0
    %2143 = vmatpush1.xpose.msra.mxu0 0.0
    %2144 = vmatprep.subr.mxu0 0.0
    %2145 = vmatpush1.xpose.msra.mxu0 0.0
    %2146 = vmatprep.subr.mxu0 0.0
    %2147 = vmatpush1.xpose.msra.mxu0 0.0
    %2148 = vmatprep.subr.mxu0 0.0
    %2149 = vmatpush1.xpose.msra.mxu0 %v2116
    %2150 = vmatprep.subr.mxu0 0.0
    %2151 = vmatpush2.xpose.msra.mxu0 0.0
    %2152 = vmatprep.subr.mxu0 0.0
    %2153 = vmatpush2.xpose.msra.mxu0 0.0
    %2154 = vmatprep.subr.mxu0 0.0
    %2155 = vmatpush2.xpose.msra.mxu0 0.0
    %2156 = vmatprep.subr.mxu0 0.0
    %2157 = vmatpush2.xpose.msra.mxu0 0.0
    %2158 = vmatprep.subr.mxu0 0.0
    %2159 = vmatpush2.xpose.msra.mxu0 0.0
    %2160 = vmatprep.subr.mxu0 0.0
    %2161 = vmatpush2.xpose.msra.mxu0 0.0
    %2162 = vmatprep.subr.mxu0 0.0
    %2163 = vmatpush2.xpose.msra.mxu0 0.0
    %2164 = vmatprep.subr.mxu0 0.0
    %2165 = vmatpush2.xpose.msra.mxu0 0.0
    %2166 = vmatprep.subr.mxu0 0.0
    %2167 = vmatpush2.xpose.msra.mxu0 0.0
    %2168 = vmatprep.subr.mxu0 0.0
    %2169 = vmatpush2.xpose.msra.mxu0 0.0
    %2170 = vmatprep.subr.mxu0 0.0
    %2171 = vmatpush2.xpose.msra.mxu0 0.0
    %2172 = vmatprep.subr.mxu0 0.0
    %2173 = vmatpush2.xpose.msra.mxu0 0.0
    %2174 = vmatprep.subr.mxu0 0.0
    %2175 = vmatpush2.xpose.msra.mxu0 0.0
    %2176 = vmatprep.subr.mxu0 0.0
    %2177 = vmatpush2.xpose.msra.mxu0 0.0
    %2178 = vmatprep.subr.mxu0 0.0
    %2179 = vmatpush2.xpose.msra.mxu0 0.0
    %2180 = vmatprep.subr.mxu0 0.0
    %2181 = vmatpush2.xpose.msra.mxu0 0.0
    %2182 = vmatprep.mubr.f32.mxu0 0.0
    %2183 = vmatmul.mubr.f32.gmra.mxu0 %v2114
    %v2184 = vpop.f32.mrf.mxu0
    %v2185 = vadd.f32 0.0, %v2184
    %v2186 = vpop.f32.mrf.mxu0
    %2187 = vdwg.mxu0
    %v2188 = vmul.f32 %v2108, 0.35355338
    %v2189 = vmul.f32 %v2185, 0.35355338
    %v2190 = vadd.f32 %v2188, %v443
    %v2191 = vadd.f32 %v2189, %v447
    %v2192 = vsel %vm284, %v2190, -inf
    %2193 = vmax.xlane.f32.xlu0 %v2192
    %v2194 = vpop.xlane.xlu0 %2193
    %v2195 = vsel %vm284, %v2191, -inf
    %2196 = vmax.xlane.f32.xlu0 %v2195
    %v2197 = vpop.xlane.xlu0 %2196
    %v2198 = vsub.f32 %v2190, %v2194
    %v2199 = vsub.f32 %v2191, %v2197
    %v2200 = vmul.f32 %v2198, 1.442695
    %v2201 = vpow.pop %v2200
    %v2202 = vmul.f32 %v2199, 1.442695
    %v2203 = vpow.pop %v2202
    %v2204 = vsel %vm284, %v2201, 0.0
    %2205 = vadd.xlane.f32.xlu0 %v2204
    %v2206 = vpop.xlane.xlu0 %2205
    %v2207 = vsel %vm284, %v2203, 0.0
    %2208 = vadd.xlane.f32.xlu0 %v2207
    %v2209 = vpop.xlane.xlu0 %2208
    %v2210 = vrcp.pop %v2206
    %v2211 = vrcp.pop %v2209
    %v2212 = vmul.f32 %v2201, %v2210
    %v2213 = vmul.f32 %v2203, %v2211
    %2214 = vrot.lane.b32.xlu0 %v2028, 64
    %v2215 = vpop.permute.xlu0 %2214
    %v2218 = vsel %vm284, %v2212, 0
    %2220 = vmatprep.subr.mxu0 0.0
    %2221 = vmatpush1.msra.mxu0 0.0
    %2222 = vmatprep.subr.mxu0 0.0
    %2223 = vmatpush1.msra.mxu0 0.0
    %2224 = vmatprep.subr.mxu0 0.0
    %2225 = vmatpush1.msra.mxu0 0.0
    %2226 = vmatprep.subr.mxu0 0.0
    %2227 = vmatpush1.msra.mxu0 0.0
    %2228 = vmatprep.subr.mxu0 0.0
    %2229 = vmatpush1.msra.mxu0 0.0
    %2230 = vmatprep.subr.mxu0 0.0
    %2231 = vmatpush1.msra.mxu0 0.0
    %2232 = vmatprep.subr.mxu0 0.0
    %2233 = vmatpush1.msra.mxu0 0.0
    %2234 = vmatprep.subr.mxu0 0.0
    %2235 = vmatpush1.msra.mxu0 0.0
    %2236 = vmatprep.subr.mxu0 0.0
    %2237 = vmatpush1.msra.mxu0 0.0
    %2238 = vmatprep.subr.mxu0 0.0
    %2239 = vmatpush1.msra.mxu0 0.0
    %2240 = vmatprep.subr.mxu0 0.0
    %2241 = vmatpush1.msra.mxu0 0.0
    %2242 = vmatprep.subr.mxu0 0.0
    %2243 = vmatpush1.msra.mxu0 0.0
    %2244 = vmatprep.subr.mxu0 0.0
    %2245 = vmatpush1.msra.mxu0 0.0
    %2246 = vmatprep.subr.mxu0 0.0
    %2247 = vmatpush1.msra.mxu0 0.0
    %2248 = vmatprep.subr.mxu0 0.0
    %2249 = vmatpush1.msra.mxu0 0.0
    %2250 = vmatprep.subr.mxu0 0.0
    %2251 = vmatpush1.msra.mxu0 %v2215
    %2252 = vmatprep.subr.mxu0 0.0
    %2253 = vmatpush2.msra.mxu0 0.0
    %2254 = vmatprep.subr.mxu0 0.0
    %2255 = vmatpush2.msra.mxu0 0.0
    %2256 = vmatprep.subr.mxu0 0.0
    %2257 = vmatpush2.msra.mxu0 0.0
    %2258 = vmatprep.subr.mxu0 0.0
    %2259 = vmatpush2.msra.mxu0 0.0
    %2260 = vmatprep.subr.mxu0 0.0
    %2261 = vmatpush2.msra.mxu0 0.0
    %2262 = vmatprep.subr.mxu0 0.0
    %2263 = vmatpush2.msra.mxu0 0.0
    %2264 = vmatprep.subr.mxu0 0.0
    %2265 = vmatpush2.msra.mxu0 0.0
    %2266 = vmatprep.subr.mxu0 0.0
    %2267 = vmatpush2.msra.mxu0 0.0
    %2268 = vmatprep.subr.mxu0 0.0
    %2269 = vmatpush2.msra.mxu0 0.0
    %2270 = vmatprep.subr.mxu0 0.0
    %2271 = vmatpush2.msra.mxu0 0.0
    %2272 = vmatprep.subr.mxu0 0.0
    %2273 = vmatpush2.msra.mxu0 0.0
    %2274 = vmatprep.subr.mxu0 0.0
    %2275 = vmatpush2.msra.mxu0 0.0
    %2276 = vmatprep.subr.mxu0 0.0
    %2277 = vmatpush2.msra.mxu0 0.0
    %2278 = vmatprep.subr.mxu0 0.0
    %2279 = vmatpush2.msra.mxu0 0.0
    %2280 = vmatprep.subr.mxu0 0.0
    %2281 = vmatpush2.msra.mxu0 0.0
    %2282 = vmatprep.subr.mxu0 0.0
    %2283 = vmatpush2.msra.mxu0 0.0
    %2284 = vmatprep.mubr.f32.mxu0 0.0
    %2285 = vmatmul.mubr.f32.gmra.mxu0 %v2218
    %v2286 = vpop.f32.mrf.mxu0
    %v2287 = vadd.f32 0.0, %v2286
    %v2288 = vpop.f32.mrf.mxu0
    %2289 = vdwg.mxu0
    %2290 = vrot.lane.b32.xlu0 %v2031, 64
    %v2291 = vpop.permute.xlu0 %2290
    %v2294 = vsel %vm284, %v2213, 0
    %2296 = vmatprep.subr.mxu0 0.0
    %2297 = vmatpush1.msra.mxu0 0.0
    %2298 = vmatprep.subr.mxu0 0.0
    %2299 = vmatpush1.msra.mxu0 0.0
    %2300 = vmatprep.subr.mxu0 0.0
    %2301 = vmatpush1.msra.mxu0 0.0
    %2302 = vmatprep.subr.mxu0 0.0
    %2303 = vmatpush1.msra.mxu0 0.0
    %2304 = vmatprep.subr.mxu0 0.0
    %2305 = vmatpush1.msra.mxu0 0.0
    %2306 = vmatprep.subr.mxu0 0.0
    %2307 = vmatpush1.msra.mxu0 0.0
    %2308 = vmatprep.subr.mxu0 0.0
    %2309 = vmatpush1.msra.mxu0 0.0
    %2310 = vmatprep.subr.mxu0 0.0
    %2311 = vmatpush1.msra.mxu0 0.0
    %2312 = vmatprep.subr.mxu0 0.0
    %2313 = vmatpush1.msra.mxu0 0.0
    %2314 = vmatprep.subr.mxu0 0.0
    %2315 = vmatpush1.msra.mxu0 0.0
    %2316 = vmatprep.subr.mxu0 0.0
    %2317 = vmatpush1.msra.mxu0 0.0
    %2318 = vmatprep.subr.mxu0 0.0
    %2319 = vmatpush1.msra.mxu0 0.0
    %2320 = vmatprep.subr.mxu0 0.0
    %2321 = vmatpush1.msra.mxu0 0.0
    %2322 = vmatprep.subr.mxu0 0.0
    %2323 = vmatpush1.msra.mxu0 0.0
    %2324 = vmatprep.subr.mxu0 0.0
    %2325 = vmatpush1.msra.mxu0 0.0
    %2326 = vmatprep.subr.mxu0 0.0
    %2327 = vmatpush1.msra.mxu0 %v2291
    %2328 = vmatprep.subr.mxu0 0.0
    %2329 = vmatpush2.msra.mxu0 0.0
    %2330 = vmatprep.subr.mxu0 0.0
    %2331 = vmatpush2.msra.mxu0 0.0
    %2332 = vmatprep.subr.mxu0 0.0
    %2333 = vmatpush2.msra.mxu0 0.0
    %2334 = vmatprep.subr.mxu0 0.0
    %2335 = vmatpush2.msra.mxu0 0.0
    %2336 = vmatprep.subr.mxu0 0.0
    %2337 = vmatpush2.msra.mxu0 0.0
    %2338 = vmatprep.subr.mxu0 0.0
    %2339 = vmatpush2.msra.mxu0 0.0
    %2340 = vmatprep.subr.mxu0 0.0
    %2341 = vmatpush2.msra.mxu0 0.0
    %2342 = vmatprep.subr.mxu0 0.0
    %2343 = vmatpush2.msra.mxu0 0.0
    %2344 = vmatprep.subr.mxu0 0.0
    %2345 = vmatpush2.msra.mxu0 0.0
    %2346 = vmatprep.subr.mxu0 0.0
    %2347 = vmatpush2.msra.mxu0 0.0
    %2348 = vmatprep.subr.mxu0 0.0
    %2349 = vmatpush2.msra.mxu0 0.0
    %2350 = vmatprep.subr.mxu0 0.0
    %2351 = vmatpush2.msra.mxu0 0.0
    %2352 = vmatprep.subr.mxu0 0.0
    %2353 = vmatpush2.msra.mxu0 0.0
    %2354 = vmatprep.subr.mxu0 0.0
    %2355 = vmatpush2.msra.mxu0 0.0
    %2356 = vmatprep.subr.mxu0 0.0
    %2357 = vmatpush2.msra.mxu0 0.0
    %2358 = vmatprep.subr.mxu0 0.0
    %2359 = vmatpush2.msra.mxu0 0.0
    %2360 = vmatprep.mubr.f32.mxu0 0.0
    %2361 = vmatmul.mubr.f32.gmra.mxu0 %v2294
    %v2362 = vpop.f32.mrf.mxu0
    %v2363 = vadd.f32 0.0, %v2362
    %v2364 = vpop.f32.mrf.mxu0
    %2365 = vdwg.mxu0
    %2366 = vrot.lane.b32.xlu0 %v2028, 120
    %v2367 = vpop.permute.xlu0 %2366
    %2368 = vrot.lane.b32.xlu0 %v2028, 88
    %v2369 = vpop.permute.xlu0 %2368
    %v2370 = vsel %vm284, %v2367, 0
    %v2372 = vsel %vm284, %v2369, 0
    %2374 = vmatprep.subr.mxu0 0.0
    %2375 = vmatpush1.xpose.msra.mxu0 0.0
    %2376 = vmatprep.subr.mxu0 0.0
    %2377 = vmatpush1.xpose.msra.mxu0 0.0
    %2378 = vmatprep.subr.mxu0 0.0
    %2379 = vmatpush1.xpose.msra.mxu0 0.0
    %2380 = vmatprep.subr.mxu0 0.0
    %2381 = vmatpush1.xpose.msra.mxu0 0.0
    %2382 = vmatprep.subr.mxu0 0.0
    %2383 = vmatpush1.xpose.msra.mxu0 0.0
    %2384 = vmatprep.subr.mxu0 0.0
    %2385 = vmatpush1.xpose.msra.mxu0 0.0
    %2386 = vmatprep.subr.mxu0 0.0
    %2387 = vmatpush1.xpose.msra.mxu0 0.0
    %2388 = vmatprep.subr.mxu0 0.0
    %2389 = vmatpush1.xpose.msra.mxu0 0.0
    %2390 = vmatprep.subr.mxu0 0.0
    %2391 = vmatpush1.xpose.msra.mxu0 0.0
    %2392 = vmatprep.subr.mxu0 0.0
    %2393 = vmatpush1.xpose.msra.mxu0 0.0
    %2394 = vmatprep.subr.mxu0 0.0
    %2395 = vmatpush1.xpose.msra.mxu0 0.0
    %2396 = vmatprep.subr.mxu0 0.0
    %2397 = vmatpush1.xpose.msra.mxu0 0.0
    %2398 = vmatprep.subr.mxu0 0.0
    %2399 = vmatpush1.xpose.msra.mxu0 0.0
    %2400 = vmatprep.subr.mxu0 0.0
    %2401 = vmatpush1.xpose.msra.mxu0 0.0
    %2402 = vmatprep.subr.mxu0 0.0
    %2403 = vmatpush1.xpose.msra.mxu0 0.0
    %2404 = vmatprep.subr.mxu0 0.0
    %2405 = vmatpush1.xpose.msra.mxu0 %v2372
    %2406 = vmatprep.subr.mxu0 0.0
    %2407 = vmatpush2.xpose.msra.mxu0 0.0
    %2408 = vmatprep.subr.mxu0 0.0
    %2409 = vmatpush2.xpose.msra.mxu0 0.0
    %2410 = vmatprep.subr.mxu0 0.0
    %2411 = vmatpush2.xpose.msra.mxu0 0.0
    %2412 = vmatprep.subr.mxu0 0.0
    %2413 = vmatpush2.xpose.msra.mxu0 0.0
    %2414 = vmatprep.subr.mxu0 0.0
    %2415 = vmatpush2.xpose.msra.mxu0 0.0
    %2416 = vmatprep.subr.mxu0 0.0
    %2417 = vmatpush2.xpose.msra.mxu0 0.0
    %2418 = vmatprep.subr.mxu0 0.0
    %2419 = vmatpush2.xpose.msra.mxu0 0.0
    %2420 = vmatprep.subr.mxu0 0.0
    %2421 = vmatpush2.xpose.msra.mxu0 0.0
    %2422 = vmatprep.subr.mxu0 0.0
    %2423 = vmatpush2.xpose.msra.mxu0 0.0
    %2424 = vmatprep.subr.mxu0 0.0
    %2425 = vmatpush2.xpose.msra.mxu0 0.0
    %2426 = vmatprep.subr.mxu0 0.0
    %2427 = vmatpush2.xpose.msra.mxu0 0.0
    %2428 = vmatprep.subr.mxu0 0.0
    %2429 = vmatpush2.xpose.msra.mxu0 0.0
    %2430 = vmatprep.subr.mxu0 0.0
    %2431 = vmatpush2.xpose.msra.mxu0 0.0
    %2432 = vmatprep.subr.mxu0 0.0
    %2433 = vmatpush2.xpose.msra.mxu0 0.0
    %2434 = vmatprep.subr.mxu0 0.0
    %2435 = vmatpush2.xpose.msra.mxu0 0.0
    %2436 = vmatprep.subr.mxu0 0.0
    %2437 = vmatpush2.xpose.msra.mxu0 0.0
    %2438 = vmatprep.mubr.f32.mxu0 0.0
    %2439 = vmatmul.mubr.f32.gmra.mxu0 %v2370
    %v2440 = vpop.f32.mrf.mxu0
    %v2441 = vadd.f32 0.0, %v2440
    %v2442 = vpop.f32.mrf.mxu0
    %2443 = vdwg.mxu0
    %2444 = vrot.lane.b32.xlu0 %v2031, 120
    %v2445 = vpop.permute.xlu0 %2444
    %2446 = vrot.lane.b32.xlu0 %v2031, 88
    %v2447 = vpop.permute.xlu0 %2446
    %v2448 = vsel %vm284, %v2445, 0
    %v2450 = vsel %vm284, %v2447, 0
    %2452 = vmatprep.subr.mxu0 0.0
    %2453 = vmatpush1.xpose.msra.mxu0 0.0
    %2454 = vmatprep.subr.mxu0 0.0
    %2455 = vmatpush1.xpose.msra.mxu0 0.0
    %2456 = vmatprep.subr.mxu0 0.0
    %2457 = vmatpush1.xpose.msra.mxu0 0.0
    %2458 = vmatprep.subr.mxu0 0.0
    %2459 = vmatpush1.xpose.msra.mxu0 0.0
    %2460 = vmatprep.subr.mxu0 0.0
    %2461 = vmatpush1.xpose.msra.mxu0 0.0
    %2462 = vmatprep.subr.mxu0 0.0
    %2463 = vmatpush1.xpose.msra.mxu0 0.0
    %2464 = vmatprep.subr.mxu0 0.0
    %2465 = vmatpush1.xpose.msra.mxu0 0.0
    %2466 = vmatprep.subr.mxu0 0.0
    %2467 = vmatpush1.xpose.msra.mxu0 0.0
    %2468 = vmatprep.subr.mxu0 0.0
    %2469 = vmatpush1.xpose.msra.mxu0 0.0
    %2470 = vmatprep.subr.mxu0 0.0
    %2471 = vmatpush1.xpose.msra.mxu0 0.0
    %2472 = vmatprep.subr.mxu0 0.0
    %2473 = vmatpush1.xpose.msra.mxu0 0.0
    %2474 = vmatprep.subr.mxu0 0.0
    %2475 = vmatpush1.xpose.msra.mxu0 0.0
    %2476 = vmatprep.subr.mxu0 0.0
    %2477 = vmatpush1.xpose.msra.mxu0 0.0
    %2478 = vmatprep.subr.mxu0 0.0
    %2479 = vmatpush1.xpose.msra.mxu0 0.0
    %2480 = vmatprep.subr.mxu0 0.0
    %2481 = vmatpush1.xpose.msra.mxu0 0.0
    %2482 = vmatprep.subr.mxu0 0.0
    %2483 = vmatpush1.xpose.msra.mxu0 %v2450
    %2484 = vmatprep.subr.mxu0 0.0
    %2485 = vmatpush2.xpose.msra.mxu0 0.0
    %2486 = vmatprep.subr.mxu0 0.0
    %2487 = vmatpush2.xpose.msra.mxu0 0.0
    %2488 = vmatprep.subr.mxu0 0.0
    %2489 = vmatpush2.xpose.msra.mxu0 0.0
    %2490 = vmatprep.subr.mxu0 0.0
    %2491 = vmatpush2.xpose.msra.mxu0 0.0
    %2492 = vmatprep.subr.mxu0 0.0
    %2493 = vmatpush2.xpose.msra.mxu0 0.0
    %2494 = vmatprep.subr.mxu0 0.0
    %2495 = vmatpush2.xpose.msra.mxu0 0.0
    %2496 = vmatprep.subr.mxu0 0.0
    %2497 = vmatpush2.xpose.msra.mxu0 0.0
    %2498 = vmatprep.subr.mxu0 0.0
    %2499 = vmatpush2.xpose.msra.mxu0 0.0
    %2500 = vmatprep.subr.mxu0 0.0
    %2501 = vmatpush2.xpose.msra.mxu0 0.0
    %2502 = vmatprep.subr.mxu0 0.0
    %2503 = vmatpush2.xpose.msra.mxu0 0.0
    %2504 = vmatprep.subr.mxu0 0.0
    %2505 = vmatpush2.xpose.msra.mxu0 0.0
    %2506 = vmatprep.subr.mxu0 0.0
    %2507 = vmatpush2.xpose.msra.mxu0 0.0
    %2508 = vmatprep.subr.mxu0 0.0
    %2509 = vmatpush2.xpose.msra.mxu0 0.0
    %2510 = vmatprep.subr.mxu0 0.0
    %2511 = vmatpush2.xpose.msra.mxu0 0.0
    %2512 = vmatprep.subr.mxu0 0.0
    %2513 = vmatpush2.xpose.msra.mxu0 0.0
    %2514 = vmatprep.subr.mxu0 0.0
    %2515 = vmatpush2.xpose.msra.mxu0 0.0
    %2516 = vmatprep.mubr.f32.mxu0 0.0
    %2517 = vmatmul.mubr.f32.gmra.mxu0 %v2448
    %v2518 = vpop.f32.mrf.mxu0
    %v2519 = vadd.f32 0.0, %v2518
    %v2520 = vpop.f32.mrf.mxu0
    %2521 = vdwg.mxu0
    %v2522 = vmul.f32 %v2441, 0.35355338
    %v2523 = vmul.f32 %v2519, 0.35355338
    %v2524 = vadd.f32 %v2522, %v443
    %v2525 = vadd.f32 %v2523, %v447
    %v2526 = vsel %vm284, %v2524, -inf
    %2527 = vmax.xlane.f32.xlu0 %v2526
    %v2528 = vpop.xlane.xlu0 %2527
    %v2529 = vsel %vm284, %v2525, -inf
    %2530 = vmax.xlane.f32.xlu0 %v2529
    %v2531 = vpop.xlane.xlu0 %2530
    %v2532 = vsub.f32 %v2524, %v2528
    %v2533 = vsub.f32 %v2525, %v2531
    %v2534 = vmul.f32 %v2532, 1.442695
    %v2535 = vpow.pop %v2534
    %v2536 = vmul.f32 %v2533, 1.442695
    %v2537 = vpow.pop %v2536
    %v2538 = vsel %vm284, %v2535, 0.0
    %2539 = vadd.xlane.f32.xlu0 %v2538
    %v2540 = vpop.xlane.xlu0 %2539
    %v2541 = vsel %vm284, %v2537, 0.0
    %2542 = vadd.xlane.f32.xlu0 %v2541
    %v2543 = vpop.xlane.xlu0 %2542
    %v2544 = vrcp.pop %v2540
    %v2545 = vrcp.pop %v2543
    %v2546 = vmul.f32 %v2535, %v2544
    %v2547 = vmul.f32 %v2537, %v2545
    %2548 = vrot.lane.b32.xlu0 %v2028, 56
    %v2549 = vpop.permute.xlu0 %2548
    %v2552 = vsel %vm284, %v2546, 0
    %2554 = vmatprep.subr.mxu0 0.0
    %2555 = vmatpush1.msra.mxu0 0.0
    %2556 = vmatprep.subr.mxu0 0.0
    %2557 = vmatpush1.msra.mxu0 0.0
    %2558 = vmatprep.subr.mxu0 0.0
    %2559 = vmatpush1.msra.mxu0 0.0
    %2560 = vmatprep.subr.mxu0 0.0
    %2561 = vmatpush1.msra.mxu0 0.0
    %2562 = vmatprep.subr.mxu0 0.0
    %2563 = vmatpush1.msra.mxu0 0.0
    %2564 = vmatprep.subr.mxu0 0.0
    %2565 = vmatpush1.msra.mxu0 0.0
    %2566 = vmatprep.subr.mxu0 0.0
    %2567 = vmatpush1.msra.mxu0 0.0
    %2568 = vmatprep.subr.mxu0 0.0
    %2569 = vmatpush1.msra.mxu0 0.0
    %2570 = vmatprep.subr.mxu0 0.0
    %2571 = vmatpush1.msra.mxu0 0.0
    %2572 = vmatprep.subr.mxu0 0.0
    %2573 = vmatpush1.msra.mxu0 0.0
    %2574 = vmatprep.subr.mxu0 0.0
    %2575 = vmatpush1.msra.mxu0 0.0
    %2576 = vmatprep.subr.mxu0 0.0
    %2577 = vmatpush1.msra.mxu0 0.0
    %2578 = vmatprep.subr.mxu0 0.0
    %2579 = vmatpush1.msra.mxu0 0.0
    %2580 = vmatprep.subr.mxu0 0.0
    %2581 = vmatpush1.msra.mxu0 0.0
    %2582 = vmatprep.subr.mxu0 0.0
    %2583 = vmatpush1.msra.mxu0 0.0
    %2584 = vmatprep.subr.mxu0 0.0
    %2585 = vmatpush1.msra.mxu0 %v2549
    %2586 = vmatprep.subr.mxu0 0.0
    %2587 = vmatpush2.msra.mxu0 0.0
    %2588 = vmatprep.subr.mxu0 0.0
    %2589 = vmatpush2.msra.mxu0 0.0
    %2590 = vmatprep.subr.mxu0 0.0
    %2591 = vmatpush2.msra.mxu0 0.0
    %2592 = vmatprep.subr.mxu0 0.0
    %2593 = vmatpush2.msra.mxu0 0.0
    %2594 = vmatprep.subr.mxu0 0.0
    %2595 = vmatpush2.msra.mxu0 0.0
    %2596 = vmatprep.subr.mxu0 0.0
    %2597 = vmatpush2.msra.mxu0 0.0
    %2598 = vmatprep.subr.mxu0 0.0
    %2599 = vmatpush2.msra.mxu0 0.0
    %2600 = vmatprep.subr.mxu0 0.0
    %2601 = vmatpush2.msra.mxu0 0.0
    %2602 = vmatprep.subr.mxu0 0.0
    %2603 = vmatpush2.msra.mxu0 0.0
    %2604 = vmatprep.subr.mxu0 0.0
    %2605 = vmatpush2.msra.mxu0 0.0
    %2606 = vmatprep.subr.mxu0 0.0
    %2607 = vmatpush2.msra.mxu0 0.0
    %2608 = vmatprep.subr.mxu0 0.0
    %2609 = vmatpush2.msra.mxu0 0.0
    %2610 = vmatprep.subr.mxu0 0.0
    %2611 = vmatpush2.msra.mxu0 0.0
    %2612 = vmatprep.subr.mxu0 0.0
    %2613 = vmatpush2.msra.mxu0 0.0
    %2614 = vmatprep.subr.mxu0 0.0
    %2615 = vmatpush2.msra.mxu0 0.0
    %2616 = vmatprep.subr.mxu0 0.0
    %2617 = vmatpush2.msra.mxu0 0.0
    %2618 = vmatprep.mubr.f32.mxu0 0.0
    %2619 = vmatmul.mubr.f32.gmra.mxu0 %v2552
    %v2620 = vpop.f32.mrf.mxu0
    %v2621 = vadd.f32 0.0, %v2620
    %v2622 = vpop.f32.mrf.mxu0
    %2623 = vdwg.mxu0
    %2624 = vrot.lane.b32.xlu0 %v2031, 56
    %v2625 = vpop.permute.xlu0 %2624
    %v2628 = vsel %vm284, %v2547, 0
    %2630 = vmatprep.subr.mxu0 0.0
    %2631 = vmatpush1.msra.mxu0 0.0
    %2632 = vmatprep.subr.mxu0 0.0
    %2633 = vmatpush1.msra.mxu0 0.0
    %2634 = vmatprep.subr.mxu0 0.0
    %2635 = vmatpush1.msra.mxu0 0.0
    %2636 = vmatprep.subr.mxu0 0.0
    %2637 = vmatpush1.msra.mxu0 0.0
    %2638 = vmatprep.subr.mxu0 0.0
    %2639 = vmatpush1.msra.mxu0 0.0
    %2640 = vmatprep.subr.mxu0 0.0
    %2641 = vmatpush1.msra.mxu0 0.0
    %2642 = vmatprep.subr.mxu0 0.0
    %2643 = vmatpush1.msra.mxu0 0.0
    %2644 = vmatprep.subr.mxu0 0.0
    %2645 = vmatpush1.msra.mxu0 0.0
    %2646 = vmatprep.subr.mxu0 0.0
    %2647 = vmatpush1.msra.mxu0 0.0
    %2648 = vmatprep.subr.mxu0 0.0
    %2649 = vmatpush1.msra.mxu0 0.0
    %2650 = vmatprep.subr.mxu0 0.0
    %2651 = vmatpush1.msra.mxu0 0.0
    %2652 = vmatprep.subr.mxu0 0.0
    %2653 = vmatpush1.msra.mxu0 0.0
    %2654 = vmatprep.subr.mxu0 0.0
    %2655 = vmatpush1.msra.mxu0 0.0
    %2656 = vmatprep.subr.mxu0 0.0
    %2657 = vmatpush1.msra.mxu0 0.0
    %2658 = vmatprep.subr.mxu0 0.0
    %2659 = vmatpush1.msra.mxu0 0.0
    %2660 = vmatprep.subr.mxu0 0.0
    %2661 = vmatpush1.msra.mxu0 %v2625
    %2662 = vmatprep.subr.mxu0 0.0
    %2663 = vmatpush2.msra.mxu0 0.0
    %2664 = vmatprep.subr.mxu0 0.0
    %2665 = vmatpush2.msra.mxu0 0.0
    %2666 = vmatprep.subr.mxu0 0.0
    %2667 = vmatpush2.msra.mxu0 0.0
    %2668 = vmatprep.subr.mxu0 0.0
    %2669 = vmatpush2.msra.mxu0 0.0
    %2670 = vmatprep.subr.mxu0 0.0
    %2671 = vmatpush2.msra.mxu0 0.0
    %2672 = vmatprep.subr.mxu0 0.0
    %2673 = vmatpush2.msra.mxu0 0.0
    %2674 = vmatprep.subr.mxu0 0.0
    %2675 = vmatpush2.msra.mxu0 0.0
    %2676 = vmatprep.subr.mxu0 0.0
    %2677 = vmatpush2.msra.mxu0 0.0
    %2678 = vmatprep.subr.mxu0 0.0
    %2679 = vmatpush2.msra.mxu0 0.0
    %2680 = vmatprep.subr.mxu0 0.0
    %2681 = vmatpush2.msra.mxu0 0.0
    %2682 = vmatprep.subr.mxu0 0.0
    %2683 = vmatpush2.msra.mxu0 0.0
    %2684 = vmatprep.subr.mxu0 0.0
    %2685 = vmatpush2.msra.mxu0 0.0
    %2686 = vmatprep.subr.mxu0 0.0
    %2687 = vmatpush2.msra.mxu0 0.0
    %2688 = vmatprep.subr.mxu0 0.0
    %2689 = vmatpush2.msra.mxu0 0.0
    %2690 = vmatprep.subr.mxu0 0.0
    %2691 = vmatpush2.msra.mxu0 0.0
    %2692 = vmatprep.subr.mxu0 0.0
    %2693 = vmatpush2.msra.mxu0 0.0
    %2694 = vmatprep.mubr.f32.mxu0 0.0
    %2695 = vmatmul.mubr.f32.gmra.mxu0 %v2628
    %v2696 = vpop.f32.mrf.mxu0
    %v2697 = vadd.f32 0.0, %v2696
    %v2698 = vpop.f32.mrf.mxu0
    %2699 = vdwg.mxu0
    %2700 = vrot.lane.b32.xlu0 %v2028, 112
    %v2701 = vpop.permute.xlu0 %2700
    %2702 = vrot.lane.b32.xlu0 %v2028, 80
    %v2703 = vpop.permute.xlu0 %2702
    %v2704 = vsel %vm284, %v2701, 0
    %v2706 = vsel %vm284, %v2703, 0
    %2708 = vmatprep.subr.mxu0 0.0
    %2709 = vmatpush1.xpose.msra.mxu0 0.0
    %2710 = vmatprep.subr.mxu0 0.0
    %2711 = vmatpush1.xpose.msra.mxu0 0.0
    %2712 = vmatprep.subr.mxu0 0.0
    %2713 = vmatpush1.xpose.msra.mxu0 0.0
    %2714 = vmatprep.subr.mxu0 0.0
    %2715 = vmatpush1.xpose.msra.mxu0 0.0
    %2716 = vmatprep.subr.mxu0 0.0
    %2717 = vmatpush1.xpose.msra.mxu0 0.0
    %2718 = vmatprep.subr.mxu0 0.0
    %2719 = vmatpush1.xpose.msra.mxu0 0.0
    %2720 = vmatprep.subr.mxu0 0.0
    %2721 = vmatpush1.xpose.msra.mxu0 0.0
    %2722 = vmatprep.subr.mxu0 0.0
    %2723 = vmatpush1.xpose.msra.mxu0 0.0
    %2724 = vmatprep.subr.mxu0 0.0
    %2725 = vmatpush1.xpose.msra.mxu0 0.0
    %2726 = vmatprep.subr.mxu0 0.0
    %2727 = vmatpush1.xpose.msra.mxu0 0.0
    %2728 = vmatprep.subr.mxu0 0.0
    %2729 = vmatpush1.xpose.msra.mxu0 0.0
    %2730 = vmatprep.subr.mxu0 0.0
    %2731 = vmatpush1.xpose.msra.mxu0 0.0
    %2732 = vmatprep.subr.mxu0 0.0
    %2733 = vmatpush1.xpose.msra.mxu0 0.0
    %2734 = vmatprep.subr.mxu0 0.0
    %2735 = vmatpush1.xpose.msra.mxu0 0.0
    %2736 = vmatprep.subr.mxu0 0.0
    %2737 = vmatpush1.xpose.msra.mxu0 0.0
    %2738 = vmatprep.subr.mxu0 0.0
    %2739 = vmatpush1.xpose.msra.mxu0 %v2706
    %2740 = vmatprep.subr.mxu0 0.0
    %2741 = vmatpush2.xpose.msra.mxu0 0.0
    %2742 = vmatprep.subr.mxu0 0.0
    %2743 = vmatpush2.xpose.msra.mxu0 0.0
    %2744 = vmatprep.subr.mxu0 0.0
    %2745 = vmatpush2.xpose.msra.mxu0 0.0
    %2746 = vmatprep.subr.mxu0 0.0
    %2747 = vmatpush2.xpose.msra.mxu0 0.0
    %2748 = vmatprep.subr.mxu0 0.0
    %2749 = vmatpush2.xpose.msra.mxu0 0.0
    %2750 = vmatprep.subr.mxu0 0.0
    %2751 = vmatpush2.xpose.msra.mxu0 0.0
    %2752 = vmatprep.subr.mxu0 0.0
    %2753 = vmatpush2.xpose.msra.mxu0 0.0
    %2754 = vmatprep.subr.mxu0 0.0
    %2755 = vmatpush2.xpose.msra.mxu0 0.0
    %2756 = vmatprep.subr.mxu0 0.0
    %2757 = vmatpush2.xpose.msra.mxu0 0.0
    %2758 = vmatprep.subr.mxu0 0.0
    %2759 = vmatpush2.xpose.msra.mxu0 0.0
    %2760 = vmatprep.subr.mxu0 0.0
    %2761 = vmatpush2.xpose.msra.mxu0 0.0
    %2762 = vmatprep.subr.mxu0 0.0
    %2763 = vmatpush2.xpose.msra.mxu0 0.0
    %2764 = vmatprep.subr.mxu0 0.0
    %2765 = vmatpush2.xpose.msra.mxu0 0.0
    %2766 = vmatprep.subr.mxu0 0.0
    %2767 = vmatpush2.xpose.msra.mxu0 0.0
    %2768 = vmatprep.subr.mxu0 0.0
    %2769 = vmatpush2.xpose.msra.mxu0 0.0
    %2770 = vmatprep.subr.mxu0 0.0
    %2771 = vmatpush2.xpose.msra.mxu0 0.0
    %2772 = vmatprep.mubr.f32.mxu0 0.0
    %2773 = vmatmul.mubr.f32.gmra.mxu0 %v2704
    %v2774 = vpop.f32.mrf.mxu0
    %v2775 = vadd.f32 0.0, %v2774
    %v2776 = vpop.f32.mrf.mxu0
    %2777 = vdwg.mxu0
    %2778 = vrot.lane.b32.xlu0 %v2031, 112
    %v2779 = vpop.permute.xlu0 %2778
    %2780 = vrot.lane.b32.xlu0 %v2031, 80
    %v2781 = vpop.permute.xlu0 %2780
    %v2782 = vsel %vm284, %v2779, 0
    %v2784 = vsel %vm284, %v2781, 0
    %2786 = vmatprep.subr.mxu0 0.0
    %2787 = vmatpush1.xpose.msra.mxu0 0.0
    %2788 = vmatprep.subr.mxu0 0.0
    %2789 = vmatpush1.xpose.msra.mxu0 0.0
    %2790 = vmatprep.subr.mxu0 0.0
    %2791 = vmatpush1.xpose.msra.mxu0 0.0
    %2792 = vmatprep.subr.mxu0 0.0
    %2793 = vmatpush1.xpose.msra.mxu0 0.0
    %2794 = vmatprep.subr.mxu0 0.0
    %2795 = vmatpush1.xpose.msra.mxu0 0.0
    %2796 = vmatprep.subr.mxu0 0.0
    %2797 = vmatpush1.xpose.msra.mxu0 0.0
    %2798 = vmatprep.subr.mxu0 0.0
    %2799 = vmatpush1.xpose.msra.mxu0 0.0
    %2800 = vmatprep.subr.mxu0 0.0
    %2801 = vmatpush1.xpose.msra.mxu0 0.0
    %2802 = vmatprep.subr.mxu0 0.0
    %2803 = vmatpush1.xpose.msra.mxu0 0.0
    %2804 = vmatprep.subr.mxu0 0.0
    %2805 = vmatpush1.xpose.msra.mxu0 0.0
    %2806 = vmatprep.subr.mxu0 0.0
    %2807 = vmatpush1.xpose.msra.mxu0 0.0
    %2808 = vmatprep.subr.mxu0 0.0
    %2809 = vmatpush1.xpose.msra.mxu0 0.0
    %2810 = vmatprep.subr.mxu0 0.0
    %2811 = vmatpush1.xpose.msra.mxu0 0.0
    %2812 = vmatprep.subr.mxu0 0.0
    %2813 = vmatpush1.xpose.msra.mxu0 0.0
    %2814 = vmatprep.subr.mxu0 0.0
    %2815 = vmatpush1.xpose.msra.mxu0 0.0
    %2816 = vmatprep.subr.mxu0 0.0
    %2817 = vmatpush1.xpose.msra.mxu0 %v2784
    %2818 = vmatprep.subr.mxu0 0.0
    %2819 = vmatpush2.xpose.msra.mxu0 0.0
    %2820 = vmatprep.subr.mxu0 0.0
    %2821 = vmatpush2.xpose.msra.mxu0 0.0
    %2822 = vmatprep.subr.mxu0 0.0
    %2823 = vmatpush2.xpose.msra.mxu0 0.0
    %2824 = vmatprep.subr.mxu0 0.0
    %2825 = vmatpush2.xpose.msra.mxu0 0.0
    %2826 = vmatprep.subr.mxu0 0.0
    %2827 = vmatpush2.xpose.msra.mxu0 0.0
    %2828 = vmatprep.subr.mxu0 0.0
    %2829 = vmatpush2.xpose.msra.mxu0 0.0
    %2830 = vmatprep.subr.mxu0 0.0
    %2831 = vmatpush2.xpose.msra.mxu0 0.0
    %2832 = vmatprep.subr.mxu0 0.0
    %2833 = vmatpush2.xpose.msra.mxu0 0.0
    %2834 = vmatprep.subr.mxu0 0.0
    %2835 = vmatpush2.xpose.msra.mxu0 0.0
    %2836 = vmatprep.subr.mxu0 0.0
    %2837 = vmatpush2.xpose.msra.mxu0 0.0
    %2838 = vmatprep.subr.mxu0 0.0
    %2839 = vmatpush2.xpose.msra.mxu0 0.0
    %2840 = vmatprep.subr.mxu0 0.0
    %2841 = vmatpush2.xpose.msra.mxu0 0.0
    %2842 = vmatprep.subr.mxu0 0.0
    %2843 = vmatpush2.xpose.msra.mxu0 0.0
    %2844 = vmatprep.subr.mxu0 0.0
    %2845 = vmatpush2.xpose.msra.mxu0 0.0
    %2846 = vmatprep.subr.mxu0 0.0
    %2847 = vmatpush2.xpose.msra.mxu0 0.0
    %2848 = vmatprep.subr.mxu0 0.0
    %2849 = vmatpush2.xpose.msra.mxu0 0.0
    %2850 = vmatprep.mubr.f32.mxu0 0.0
    %2851 = vmatmul.mubr.f32.gmra.mxu0 %v2782
    %v2852 = vpop.f32.mrf.mxu0
    %v2853 = vadd.f32 0.0, %v2852
    %v2854 = vpop.f32.mrf.mxu0
    %2855 = vdwg.mxu0
    %v2856 = vmul.f32 %v2775, 0.35355338
    %v2857 = vmul.f32 %v2853, 0.35355338
    %v2858 = vadd.f32 %v2856, %v443
    %v2859 = vadd.f32 %v2857, %v447
    %v2860 = vsel %vm284, %v2858, -inf
    %2861 = vmax.xlane.f32.xlu0 %v2860
    %v2862 = vpop.xlane.xlu0 %2861
    %v2863 = vsel %vm284, %v2859, -inf
    %2864 = vmax.xlane.f32.xlu0 %v2863
    %v2865 = vpop.xlane.xlu0 %2864
    %v2866 = vsub.f32 %v2858, %v2862
    %v2867 = vsub.f32 %v2859, %v2865
    %v2868 = vmul.f32 %v2866, 1.442695
    %v2869 = vpow.pop %v2868
    %v2870 = vmul.f32 %v2867, 1.442695
    %v2871 = vpow.pop %v2870
    %v2872 = vsel %vm284, %v2869, 0.0
    %2873 = vadd.xlane.f32.xlu0 %v2872
    %v2874 = vpop.xlane.xlu0 %2873
    %v2875 = vsel %vm284, %v2871, 0.0
    %2876 = vadd.xlane.f32.xlu0 %v2875
    %v2877 = vpop.xlane.xlu0 %2876
    %v2878 = vrcp.pop %v2874
    %v2879 = vrcp.pop %v2877
    %v2880 = vmul.f32 %v2869, %v2878
    %v2881 = vmul.f32 %v2871, %v2879
    %2882 = vrot.lane.b32.xlu0 %v2028, 48
    %v2883 = vpop.permute.xlu0 %2882
    %v2886 = vsel %vm284, %v2880, 0
    %2888 = vmatprep.subr.mxu0 0.0
    %2889 = vmatpush1.msra.mxu0 0.0
    %2890 = vmatprep.subr.mxu0 0.0
    %2891 = vmatpush1.msra.mxu0 0.0
    %2892 = vmatprep.subr.mxu0 0.0
    %2893 = vmatpush1.msra.mxu0 0.0
    %2894 = vmatprep.subr.mxu0 0.0
    %2895 = vmatpush1.msra.mxu0 0.0
    %2896 = vmatprep.subr.mxu0 0.0
    %2897 = vmatpush1.msra.mxu0 0.0
    %2898 = vmatprep.subr.mxu0 0.0
    %2899 = vmatpush1.msra.mxu0 0.0
    %2900 = vmatprep.subr.mxu0 0.0
    %2901 = vmatpush1.msra.mxu0 0.0
    %2902 = vmatprep.subr.mxu0 0.0
    %2903 = vmatpush1.msra.mxu0 0.0
    %2904 = vmatprep.subr.mxu0 0.0
    %2905 = vmatpush1.msra.mxu0 0.0
    %2906 = vmatprep.subr.mxu0 0.0
    %2907 = vmatpush1.msra.mxu0 0.0
    %2908 = vmatprep.subr.mxu0 0.0
    %2909 = vmatpush1.msra.mxu0 0.0
    %2910 = vmatprep.subr.mxu0 0.0
    %2911 = vmatpush1.msra.mxu0 0.0
    %2912 = vmatprep.subr.mxu0 0.0
    %2913 = vmatpush1.msra.mxu0 0.0
    %2914 = vmatprep.subr.mxu0 0.0
    %2915 = vmatpush1.msra.mxu0 0.0
    %2916 = vmatprep.subr.mxu0 0.0
    %2917 = vmatpush1.msra.mxu0 0.0
    %2918 = vmatprep.subr.mxu0 0.0
    %2919 = vmatpush1.msra.mxu0 %v2883
    %2920 = vmatprep.subr.mxu0 0.0
    %2921 = vmatpush2.msra.mxu0 0.0
    %2922 = vmatprep.subr.mxu0 0.0
    %2923 = vmatpush2.msra.mxu0 0.0
    %2924 = vmatprep.subr.mxu0 0.0
    %2925 = vmatpush2.msra.mxu0 0.0
    %2926 = vmatprep.subr.mxu0 0.0
    %2927 = vmatpush2.msra.mxu0 0.0
    %2928 = vmatprep.subr.mxu0 0.0
    %2929 = vmatpush2.msra.mxu0 0.0
    %2930 = vmatprep.subr.mxu0 0.0
    %2931 = vmatpush2.msra.mxu0 0.0
    %2932 = vmatprep.subr.mxu0 0.0
    %2933 = vmatpush2.msra.mxu0 0.0
    %2934 = vmatprep.subr.mxu0 0.0
    %2935 = vmatpush2.msra.mxu0 0.0
    %2936 = vmatprep.subr.mxu0 0.0
    %2937 = vmatpush2.msra.mxu0 0.0
    %2938 = vmatprep.subr.mxu0 0.0
    %2939 = vmatpush2.msra.mxu0 0.0
    %2940 = vmatprep.subr.mxu0 0.0
    %2941 = vmatpush2.msra.mxu0 0.0
    %2942 = vmatprep.subr.mxu0 0.0
    %2943 = vmatpush2.msra.mxu0 0.0
    %2944 = vmatprep.subr.mxu0 0.0
    %2945 = vmatpush2.msra.mxu0 0.0
    %2946 = vmatprep.subr.mxu0 0.0
    %2947 = vmatpush2.msra.mxu0 0.0
    %2948 = vmatprep.subr.mxu0 0.0
    %2949 = vmatpush2.msra.mxu0 0.0
    %2950 = vmatprep.subr.mxu0 0.0
    %2951 = vmatpush2.msra.mxu0 0.0
    %2952 = vmatprep.mubr.f32.mxu0 0.0
    %2953 = vmatmul.mubr.f32.gmra.mxu0 %v2886
    %v2954 = vpop.f32.mrf.mxu0
    %v2955 = vadd.f32 0.0, %v2954
    %v2956 = vpop.f32.mrf.mxu0
    %2957 = vdwg.mxu0
    %2958 = vrot.lane.b32.xlu0 %v2031, 48
    %v2959 = vpop.permute.xlu0 %2958
    %v2962 = vsel %vm284, %v2881, 0
    %2964 = vmatprep.subr.mxu0 0.0
    %2965 = vmatpush1.msra.mxu0 0.0
    %2966 = vmatprep.subr.mxu0 0.0
    %2967 = vmatpush1.msra.mxu0 0.0
    %2968 = vmatprep.subr.mxu0 0.0
    %2969 = vmatpush1.msra.mxu0 0.0
    %2970 = vmatprep.subr.mxu0 0.0
    %2971 = vmatpush1.msra.mxu0 0.0
    %2972 = vmatprep.subr.mxu0 0.0
    %2973 = vmatpush1.msra.mxu0 0.0
    %2974 = vmatprep.subr.mxu0 0.0
    %2975 = vmatpush1.msra.mxu0 0.0
    %2976 = vmatprep.subr.mxu0 0.0
    %2977 = vmatpush1.msra.mxu0 0.0
    %2978 = vmatprep.subr.mxu0 0.0
    %2979 = vmatpush1.msra.mxu0 0.0
    %2980 = vmatprep.subr.mxu0 0.0
    %2981 = vmatpush1.msra.mxu0 0.0
    %2982 = vmatprep.subr.mxu0 0.0
    %2983 = vmatpush1.msra.mxu0 0.0
    %2984 = vmatprep.subr.mxu0 0.0
    %2985 = vmatpush1.msra.mxu0 0.0
    %2986 = vmatprep.subr.mxu0 0.0
    %2987 = vmatpush1.msra.mxu0 0.0
    %2988 = vmatprep.subr.mxu0 0.0
    %2989 = vmatpush1.msra.mxu0 0.0
    %2990 = vmatprep.subr.mxu0 0.0
    %2991 = vmatpush1.msra.mxu0 0.0
    %2992 = vmatprep.subr.mxu0 0.0
    %2993 = vmatpush1.msra.mxu0 0.0
    %2994 = vmatprep.subr.mxu0 0.0
    %2995 = vmatpush1.msra.mxu0 %v2959
    %2996 = vmatprep.subr.mxu0 0.0
    %2997 = vmatpush2.msra.mxu0 0.0
    %2998 = vmatprep.subr.mxu0 0.0
    %2999 = vmatpush2.msra.mxu0 0.0
    %3000 = vmatprep.subr.mxu0 0.0
    %3001 = vmatpush2.msra.mxu0 0.0
    %3002 = vmatprep.subr.mxu0 0.0
    %3003 = vmatpush2.msra.mxu0 0.0
    %3004 = vmatprep.subr.mxu0 0.0
    %3005 = vmatpush2.msra.mxu0 0.0
    %3006 = vmatprep.subr.mxu0 0.0
    %3007 = vmatpush2.msra.mxu0 0.0
    %3008 = vmatprep.subr.mxu0 0.0
    %3009 = vmatpush2.msra.mxu0 0.0
    %3010 = vmatprep.subr.mxu0 0.0
    %3011 = vmatpush2.msra.mxu0 0.0
    %3012 = vmatprep.subr.mxu0 0.0
    %3013 = vmatpush2.msra.mxu0 0.0
    %3014 = vmatprep.subr.mxu0 0.0
    %3015 = vmatpush2.msra.mxu0 0.0
    %3016 = vmatprep.subr.mxu0 0.0
    %3017 = vmatpush2.msra.mxu0 0.0
    %3018 = vmatprep.subr.mxu0 0.0
    %3019 = vmatpush2.msra.mxu0 0.0
    %3020 = vmatprep.subr.mxu0 0.0
    %3021 = vmatpush2.msra.mxu0 0.0
    %3022 = vmatprep.subr.mxu0 0.0
    %3023 = vmatpush2.msra.mxu0 0.0
    %3024 = vmatprep.subr.mxu0 0.0
    %3025 = vmatpush2.msra.mxu0 0.0
    %3026 = vmatprep.subr.mxu0 0.0
    %3027 = vmatpush2.msra.mxu0 0.0
    %3028 = vmatprep.mubr.f32.mxu0 0.0
    %3029 = vmatmul.mubr.f32.gmra.mxu0 %v2962
    %v3030 = vpop.f32.mrf.mxu0
    %v3031 = vadd.f32 0.0, %v3030
    %v3032 = vpop.f32.mrf.mxu0
    %3033 = vdwg.mxu0
    %3034 = vrot.lane.b32.xlu0 %v2028, 104
    %v3035 = vpop.permute.xlu0 %3034
    %3036 = vrot.lane.b32.xlu0 %v2028, 72
    %v3037 = vpop.permute.xlu0 %3036
    %v3038 = vsel %vm284, %v3035, 0
    %v3040 = vsel %vm284, %v3037, 0
    %3042 = vmatprep.subr.mxu0 0.0
    %3043 = vmatpush1.xpose.msra.mxu0 0.0
    %3044 = vmatprep.subr.mxu0 0.0
    %3045 = vmatpush1.xpose.msra.mxu0 0.0
    %3046 = vmatprep.subr.mxu0 0.0
    %3047 = vmatpush1.xpose.msra.mxu0 0.0
    %3048 = vmatprep.subr.mxu0 0.0
    %3049 = vmatpush1.xpose.msra.mxu0 0.0
    %3050 = vmatprep.subr.mxu0 0.0
    %3051 = vmatpush1.xpose.msra.mxu0 0.0
    %3052 = vmatprep.subr.mxu0 0.0
    %3053 = vmatpush1.xpose.msra.mxu0 0.0
    %3054 = vmatprep.subr.mxu0 0.0
    %3055 = vmatpush1.xpose.msra.mxu0 0.0
    %3056 = vmatprep.subr.mxu0 0.0
    %3057 = vmatpush1.xpose.msra.mxu0 0.0
    %3058 = vmatprep.subr.mxu0 0.0
    %3059 = vmatpush1.xpose.msra.mxu0 0.0
    %3060 = vmatprep.subr.mxu0 0.0
    %3061 = vmatpush1.xpose.msra.mxu0 0.0
    %3062 = vmatprep.subr.mxu0 0.0
    %3063 = vmatpush1.xpose.msra.mxu0 0.0
    %3064 = vmatprep.subr.mxu0 0.0
    %3065 = vmatpush1.xpose.msra.mxu0 0.0
    %3066 = vmatprep.subr.mxu0 0.0
    %3067 = vmatpush1.xpose.msra.mxu0 0.0
    %3068 = vmatprep.subr.mxu0 0.0
    %3069 = vmatpush1.xpose.msra.mxu0 0.0
    %3070 = vmatprep.subr.mxu0 0.0
    %3071 = vmatpush1.xpose.msra.mxu0 0.0
    %3072 = vmatprep.subr.mxu0 0.0
    %3073 = vmatpush1.xpose.msra.mxu0 %v3040
    %3074 = vmatprep.subr.mxu0 0.0
    %3075 = vmatpush2.xpose.msra.mxu0 0.0
    %3076 = vmatprep.subr.mxu0 0.0
    %3077 = vmatpush2.xpose.msra.mxu0 0.0
    %3078 = vmatprep.subr.mxu0 0.0
    %3079 = vmatpush2.xpose.msra.mxu0 0.0
    %3080 = vmatprep.subr.mxu0 0.0
    %3081 = vmatpush2.xpose.msra.mxu0 0.0
    %3082 = vmatprep.subr.mxu0 0.0
    %3083 = vmatpush2.xpose.msra.mxu0 0.0
    %3084 = vmatprep.subr.mxu0 0.0
    %3085 = vmatpush2.xpose.msra.mxu0 0.0
    %3086 = vmatprep.subr.mxu0 0.0
    %3087 = vmatpush2.xpose.msra.mxu0 0.0
    %3088 = vmatprep.subr.mxu0 0.0
    %3089 = vmatpush2.xpose.msra.mxu0 0.0
    %3090 = vmatprep.subr.mxu0 0.0
    %3091 = vmatpush2.xpose.msra.mxu0 0.0
    %3092 = vmatprep.subr.mxu0 0.0
    %3093 = vmatpush2.xpose.msra.mxu0 0.0
    %3094 = vmatprep.subr.mxu0 0.0
    %3095 = vmatpush2.xpose.msra.mxu0 0.0
    %3096 = vmatprep.subr.mxu0 0.0
    %3097 = vmatpush2.xpose.msra.mxu0 0.0
    %3098 = vmatprep.subr.mxu0 0.0
    %3099 = vmatpush2.xpose.msra.mxu0 0.0
    %3100 = vmatprep.subr.mxu0 0.0
    %3101 = vmatpush2.xpose.msra.mxu0 0.0
    %3102 = vmatprep.subr.mxu0 0.0
    %3103 = vmatpush2.xpose.msra.mxu0 0.0
    %3104 = vmatprep.subr.mxu0 0.0
    %3105 = vmatpush2.xpose.msra.mxu0 0.0
    %3106 = vmatprep.mubr.f32.mxu0 0.0
    %3107 = vmatmul.mubr.f32.gmra.mxu0 %v3038
    %v3108 = vpop.f32.mrf.mxu0
    %v3109 = vadd.f32 0.0, %v3108
    %v3110 = vpop.f32.mrf.mxu0
    %3111 = vdwg.mxu0
    %3112 = vrot.lane.b32.xlu0 %v2031, 104
    %v3113 = vpop.permute.xlu0 %3112
    %3114 = vrot.lane.b32.xlu0 %v2031, 72
    %v3115 = vpop.permute.xlu0 %3114
    %v3116 = vsel %vm284, %v3113, 0
    %v3118 = vsel %vm284, %v3115, 0
    %3120 = vmatprep.subr.mxu0 0.0
    %3121 = vmatpush1.xpose.msra.mxu0 0.0
    %3122 = vmatprep.subr.mxu0 0.0
    %3123 = vmatpush1.xpose.msra.mxu0 0.0
    %3124 = vmatprep.subr.mxu0 0.0
    %3125 = vmatpush1.xpose.msra.mxu0 0.0
    %3126 = vmatprep.subr.mxu0 0.0
    %3127 = vmatpush1.xpose.msra.mxu0 0.0
    %3128 = vmatprep.subr.mxu0 0.0
    %3129 = vmatpush1.xpose.msra.mxu0 0.0
    %3130 = vmatprep.subr.mxu0 0.0
    %3131 = vmatpush1.xpose.msra.mxu0 0.0
    %3132 = vmatprep.subr.mxu0 0.0
    %3133 = vmatpush1.xpose.msra.mxu0 0.0
    %3134 = vmatprep.subr.mxu0 0.0
    %3135 = vmatpush1.xpose.msra.mxu0 0.0
    %3136 = vmatprep.subr.mxu0 0.0
    %3137 = vmatpush1.xpose.msra.mxu0 0.0
    %3138 = vmatprep.subr.mxu0 0.0
    %3139 = vmatpush1.xpose.msra.mxu0 0.0
    %3140 = vmatprep.subr.mxu0 0.0
    %3141 = vmatpush1.xpose.msra.mxu0 0.0
    %3142 = vmatprep.subr.mxu0 0.0
    %3143 = vmatpush1.xpose.msra.mxu0 0.0
    %3144 = vmatprep.subr.mxu0 0.0
    %3145 = vmatpush1.xpose.msra.mxu0 0.0
    %3146 = vmatprep.subr.mxu0 0.0
    %3147 = vmatpush1.xpose.msra.mxu0 0.0
    %3148 = vmatprep.subr.mxu0 0.0
    %3149 = vmatpush1.xpose.msra.mxu0 0.0
    %3150 = vmatprep.subr.mxu0 0.0
    %3151 = vmatpush1.xpose.msra.mxu0 %v3118
    %3152 = vmatprep.subr.mxu0 0.0
    %3153 = vmatpush2.xpose.msra.mxu0 0.0
    %3154 = vmatprep.subr.mxu0 0.0
    %3155 = vmatpush2.xpose.msra.mxu0 0.0
    %3156 = vmatprep.subr.mxu0 0.0
    %3157 = vmatpush2.xpose.msra.mxu0 0.0
    %3158 = vmatprep.subr.mxu0 0.0
    %3159 = vmatpush2.xpose.msra.mxu0 0.0
    %3160 = vmatprep.subr.mxu0 0.0
    %3161 = vmatpush2.xpose.msra.mxu0 0.0
    %3162 = vmatprep.subr.mxu0 0.0
    %3163 = vmatpush2.xpose.msra.mxu0 0.0
    %3164 = vmatprep.subr.mxu0 0.0
    %3165 = vmatpush2.xpose.msra.mxu0 0.0
    %3166 = vmatprep.subr.mxu0 0.0
    %3167 = vmatpush2.xpose.msra.mxu0 0.0
    %3168 = vmatprep.subr.mxu0 0.0
    %3169 = vmatpush2.xpose.msra.mxu0 0.0
    %3170 = vmatprep.subr.mxu0 0.0
    %3171 = vmatpush2.xpose.msra.mxu0 0.0
    %3172 = vmatprep.subr.mxu0 0.0
    %3173 = vmatpush2.xpose.msra.mxu0 0.0
    %3174 = vmatprep.subr.mxu0 0.0
    %3175 = vmatpush2.xpose.msra.mxu0 0.0
    %3176 = vmatprep.subr.mxu0 0.0
    %3177 = vmatpush2.xpose.msra.mxu0 0.0
    %3178 = vmatprep.subr.mxu0 0.0
    %3179 = vmatpush2.xpose.msra.mxu0 0.0
    %3180 = vmatprep.subr.mxu0 0.0
    %3181 = vmatpush2.xpose.msra.mxu0 0.0
    %3182 = vmatprep.subr.mxu0 0.0
    %3183 = vmatpush2.xpose.msra.mxu0 0.0
    %3184 = vmatprep.mubr.f32.mxu0 0.0
    %3185 = vmatmul.mubr.f32.gmra.mxu0 %v3116
    %v3186 = vpop.f32.mrf.mxu0
    %v3187 = vadd.f32 0.0, %v3186
    %v3188 = vpop.f32.mrf.mxu0
    %3189 = vdwg.mxu0
    %v3190 = vmul.f32 %v3109, 0.35355338
    %v3191 = vmul.f32 %v3187, 0.35355338
    %v3192 = vadd.f32 %v3190, %v443
    %v3193 = vadd.f32 %v3191, %v447
    %v3194 = vsel %vm284, %v3192, -inf
    %3195 = vmax.xlane.f32.xlu0 %v3194
    %v3196 = vpop.xlane.xlu0 %3195
    %v3197 = vsel %vm284, %v3193, -inf
    %3198 = vmax.xlane.f32.xlu0 %v3197
    %v3199 = vpop.xlane.xlu0 %3198
    %v3200 = vsub.f32 %v3192, %v3196
    %v3201 = vsub.f32 %v3193, %v3199
    %v3202 = vmul.f32 %v3200, 1.442695
    %v3203 = vpow.pop %v3202
    %v3204 = vmul.f32 %v3201, 1.442695
    %v3205 = vpow.pop %v3204
    %v3206 = vsel %vm284, %v3203, 0.0
    %3207 = vadd.xlane.f32.xlu0 %v3206
    %v3208 = vpop.xlane.xlu0 %3207
    %v3209 = vsel %vm284, %v3205, 0.0
    %3210 = vadd.xlane.f32.xlu0 %v3209
    %v3211 = vpop.xlane.xlu0 %3210
    %v3212 = vrcp.pop %v3208
    %v3213 = vrcp.pop %v3211
    %v3214 = vmul.f32 %v3203, %v3212
    %v3215 = vmul.f32 %v3205, %v3213
    %3216 = vrot.lane.b32.xlu0 %v2028, 40
    %v3217 = vpop.permute.xlu0 %3216
    %v3220 = vsel %vm284, %v3214, 0
    %3222 = vmatprep.subr.mxu0 0.0
    %3223 = vmatpush1.msra.mxu0 0.0
    %3224 = vmatprep.subr.mxu0 0.0
    %3225 = vmatpush1.msra.mxu0 0.0
    %3226 = vmatprep.subr.mxu0 0.0
    %3227 = vmatpush1.msra.mxu0 0.0
    %3228 = vmatprep.subr.mxu0 0.0
    %3229 = vmatpush1.msra.mxu0 0.0
    %3230 = vmatprep.subr.mxu0 0.0
    %3231 = vmatpush1.msra.mxu0 0.0
    %3232 = vmatprep.subr.mxu0 0.0
    %3233 = vmatpush1.msra.mxu0 0.0
    %3234 = vmatprep.subr.mxu0 0.0
    %3235 = vmatpush1.msra.mxu0 0.0
    %3236 = vmatprep.subr.mxu0 0.0
    %3237 = vmatpush1.msra.mxu0 0.0
    %3238 = vmatprep.subr.mxu0 0.0
    %3239 = vmatpush1.msra.mxu0 0.0
    %3240 = vmatprep.subr.mxu0 0.0
    %3241 = vmatpush1.msra.mxu0 0.0
    %3242 = vmatprep.subr.mxu0 0.0
    %3243 = vmatpush1.msra.mxu0 0.0
    %3244 = vmatprep.subr.mxu0 0.0
    %3245 = vmatpush1.msra.mxu0 0.0
    %3246 = vmatprep.subr.mxu0 0.0
    %3247 = vmatpush1.msra.mxu0 0.0
    %3248 = vmatprep.subr.mxu0 0.0
    %3249 = vmatpush1.msra.mxu0 0.0
    %3250 = vmatprep.subr.mxu0 0.0
    %3251 = vmatpush1.msra.mxu0 0.0
    %3252 = vmatprep.subr.mxu0 0.0
    %3253 = vmatpush1.msra.mxu0 %v3217
    %3254 = vmatprep.subr.mxu0 0.0
    %3255 = vmatpush2.msra.mxu0 0.0
    %3256 = vmatprep.subr.mxu0 0.0
    %3257 = vmatpush2.msra.mxu0 0.0
    %3258 = vmatprep.subr.mxu0 0.0
    %3259 = vmatpush2.msra.mxu0 0.0
    %3260 = vmatprep.subr.mxu0 0.0
    %3261 = vmatpush2.msra.mxu0 0.0
    %3262 = vmatprep.subr.mxu0 0.0
    %3263 = vmatpush2.msra.mxu0 0.0
    %3264 = vmatprep.subr.mxu0 0.0
    %3265 = vmatpush2.msra.mxu0 0.0
    %3266 = vmatprep.subr.mxu0 0.0
    %3267 = vmatpush2.msra.mxu0 0.0
    %3268 = vmatprep.subr.mxu0 0.0
    %3269 = vmatpush2.msra.mxu0 0.0
    %3270 = vmatprep.subr.mxu0 0.0
    %3271 = vmatpush2.msra.mxu0 0.0
    %3272 = vmatprep.subr.mxu0 0.0
    %3273 = vmatpush2.msra.mxu0 0.0
    %3274 = vmatprep.subr.mxu0 0.0
    %3275 = vmatpush2.msra.mxu0 0.0
    %3276 = vmatprep.subr.mxu0 0.0
    %3277 = vmatpush2.msra.mxu0 0.0
    %3278 = vmatprep.subr.mxu0 0.0
    %3279 = vmatpush2.msra.mxu0 0.0
    %3280 = vmatprep.subr.mxu0 0.0
    %3281 = vmatpush2.msra.mxu0 0.0
    %3282 = vmatprep.subr.mxu0 0.0
    %3283 = vmatpush2.msra.mxu0 0.0
    %3284 = vmatprep.subr.mxu0 0.0
    %3285 = vmatpush2.msra.mxu0 0.0
    %3286 = vmatprep.mubr.f32.mxu0 0.0
    %3287 = vmatmul.mubr.f32.gmra.mxu0 %v3220
    %v3288 = vpop.f32.mrf.mxu0
    %v3289 = vadd.f32 0.0, %v3288
    %v3290 = vpop.f32.mrf.mxu0
    %3291 = vdwg.mxu0
    %3292 = vrot.lane.b32.xlu0 %v2031, 40
    %v3293 = vpop.permute.xlu0 %3292
    %v3296 = vsel %vm284, %v3215, 0
    %3298 = vmatprep.subr.mxu0 0.0
    %3299 = vmatpush1.msra.mxu0 0.0
    %3300 = vmatprep.subr.mxu0 0.0
    %3301 = vmatpush1.msra.mxu0 0.0
    %3302 = vmatprep.subr.mxu0 0.0
    %3303 = vmatpush1.msra.mxu0 0.0
    %3304 = vmatprep.subr.mxu0 0.0
    %3305 = vmatpush1.msra.mxu0 0.0
    %3306 = vmatprep.subr.mxu0 0.0
    %3307 = vmatpush1.msra.mxu0 0.0
    %3308 = vmatprep.subr.mxu0 0.0
    %3309 = vmatpush1.msra.mxu0 0.0
    %3310 = vmatprep.subr.mxu0 0.0
    %3311 = vmatpush1.msra.mxu0 0.0
    %3312 = vmatprep.subr.mxu0 0.0
    %3313 = vmatpush1.msra.mxu0 0.0
    %3314 = vmatprep.subr.mxu0 0.0
    %3315 = vmatpush1.msra.mxu0 0.0
    %3316 = vmatprep.subr.mxu0 0.0
    %3317 = vmatpush1.msra.mxu0 0.0
    %3318 = vmatprep.subr.mxu0 0.0
    %3319 = vmatpush1.msra.mxu0 0.0
    %3320 = vmatprep.subr.mxu0 0.0
    %3321 = vmatpush1.msra.mxu0 0.0
    %3322 = vmatprep.subr.mxu0 0.0
    %3323 = vmatpush1.msra.mxu0 0.0
    %3324 = vmatprep.subr.mxu0 0.0
    %3325 = vmatpush1.msra.mxu0 0.0
    %3326 = vmatprep.subr.mxu0 0.0
    %3327 = vmatpush1.msra.mxu0 0.0
    %3328 = vmatprep.subr.mxu0 0.0
    %3329 = vmatpush1.msra.mxu0 %v3293
    %3330 = vmatprep.subr.mxu0 0.0
    %3331 = vmatpush2.msra.mxu0 0.0
    %3332 = vmatprep.subr.mxu0 0.0
    %3333 = vmatpush2.msra.mxu0 0.0
    %3334 = vmatprep.subr.mxu0 0.0
    %3335 = vmatpush2.msra.mxu0 0.0
    %3336 = vmatprep.subr.mxu0 0.0
    %3337 = vmatpush2.msra.mxu0 0.0
    %3338 = vmatprep.subr.mxu0 0.0
    %3339 = vmatpush2.msra.mxu0 0.0
    %3340 = vmatprep.subr.mxu0 0.0
    %3341 = vmatpush2.msra.mxu0 0.0
    %3342 = vmatprep.subr.mxu0 0.0
    %3343 = vmatpush2.msra.mxu0 0.0
    %3344 = vmatprep.subr.mxu0 0.0
    %3345 = vmatpush2.msra.mxu0 0.0
    %3346 = vmatprep.subr.mxu0 0.0
    %3347 = vmatpush2.msra.mxu0 0.0
    %3348 = vmatprep.subr.mxu0 0.0
    %3349 = vmatpush2.msra.mxu0 0.0
    %3350 = vmatprep.subr.mxu0 0.0
    %3351 = vmatpush2.msra.mxu0 0.0
    %3352 = vmatprep.subr.mxu0 0.0
    %3353 = vmatpush2.msra.mxu0 0.0
    %3354 = vmatprep.subr.mxu0 0.0
    %3355 = vmatpush2.msra.mxu0 0.0
    %3356 = vmatprep.subr.mxu0 0.0
    %3357 = vmatpush2.msra.mxu0 0.0
    %3358 = vmatprep.subr.mxu0 0.0
    %3359 = vmatpush2.msra.mxu0 0.0
    %3360 = vmatprep.subr.mxu0 0.0
    %3361 = vmatpush2.msra.mxu0 0.0
    %3362 = vmatprep.mubr.f32.mxu0 0.0
    %3363 = vmatmul.mubr.f32.gmra.mxu0 %v3296
    %v3364 = vpop.f32.mrf.mxu0
    %v3365 = vadd.f32 0.0, %v3364
    %v3366 = vpop.f32.mrf.mxu0
    %3367 = vdwg.mxu0
    %3370 = vrot.lane.b32.xlu0 %v2621, 8
    %v3371 = vpop.permute.xlu0 %3370
    %3372 = vrot.lane.b32.xlu0 %v2697, 8
    %v3373 = vpop.permute.xlu0 %3372
    %3378 = vrot.lane.b32.xlu0 %v2955, 16
    %v3379 = vpop.permute.xlu0 %3378
    %3380 = vrot.lane.b32.xlu0 %v3031, 16
    %v3381 = vpop.permute.xlu0 %3380
    %3386 = vrot.lane.b32.xlu0 %v3289, 24
    %v3387 = vpop.permute.xlu0 %3386
    %3388 = vrot.lane.b32.xlu0 %v3365, 24
    %v3389 = vpop.permute.xlu0 %3388
    %v3392 = vsel %vm284, %v2287, %v3371
    %v3393 = vsel %vm284, %v2363, %v3373
    %v3394 = vsel %vm1654, %v3392, %v3379
    %v3395 = vsel %vm1654, %v3393, %v3381
    %v3396 = vsel %vm1657, %v3394, %v3387
    %v3397 = vsel %vm1657, %v3395, %v3389
    %v3398 = vpack.c.bf16 %v3397, %v3396
    %s3399 = scalar_lea.vmem %s5, 16
    %v3400 = vld [vmem:[%s3399] sm:$0xf]
    %v3401 = vld [vmem:[%s3399 + $0x4] sm:$0xf]
    %v3402 = vld [vmem:[%s3399 + $0x8] sm:$0xf]
    %v3403 = vld [vmem:[%s3399 + $0xc] sm:$0xf]
    %v3404 = vld [vmem:[%s3 + $0x4] sm:$0x1]
    %v3405 = vlaneseq
    %v3406 = vshrl.u32 %v3405, 7
    %v3407 = vsub.s32 0, %v3406
    %v3408 = vrot.slane %v3404, %v3407
    %v3413 = vunpack.c.l.b16 %v3400
    %v3414 = vunpack.c.l.b16 %v3401
    %v3415 = vunpack.c.l.b16 %v3402
    %v3416 = vunpack.c.l.b16 %v3403
    %v3417 = vpack.c.b16 %v3414, %v3413
    %v3418 = vpack.c.b16 %v3416, %v3415
    %3422 = vrot.lane.b32.xlu0 %v3408, 32
    %v3423 = vpop.permute.xlu0 %3422
    %v3426 = vsel %vm169, %v3398, 0
    %3428 = vmatprep.subr.bf16.mxu0 0
    %3429 = vmatpush1.bf16.msra.mxu0 0
    %3430 = vmatprep.subr.bf16.mxu0 0
    %3431 = vmatpush1.bf16.msra.mxu0 0
    %3432 = vmatprep.subr.bf16.mxu0 0
    %3433 = vmatpush1.bf16.msra.mxu0 0
    %3434 = vmatprep.subr.bf16.mxu0 0
    %3435 = vmatpush1.bf16.msra.mxu0 0
    %3436 = vmatprep.subr.bf16.mxu0 0
    %3437 = vmatpush1.bf16.msra.mxu0 0
    %3438 = vmatprep.subr.bf16.mxu0 0
    %3439 = vmatpush1.bf16.msra.mxu0 0
    %3440 = vmatprep.subr.bf16.mxu0 0
    %3441 = vmatpush1.bf16.msra.mxu0 %v3418
    %3442 = vmatprep.subr.bf16.mxu0 0
    %3443 = vmatpush1.bf16.msra.mxu0 %v3417
    %3444 = vmatprep.subr.bf16.mxu0 0
    %3445 = vmatpush2.bf16.msra.mxu0 0
    %3446 = vmatprep.subr.bf16.mxu0 0
    %3447 = vmatpush2.bf16.msra.mxu0 0
    %3448 = vmatprep.subr.bf16.mxu0 0
    %3449 = vmatpush2.bf16.msra.mxu0 0
    %3450 = vmatprep.subr.bf16.mxu0 0
    %3451 = vmatpush2.bf16.msra.mxu0 0
    %3452 = vmatprep.subr.bf16.mxu0 0
    %3453 = vmatpush2.bf16.msra.mxu0 0
    %3454 = vmatprep.subr.bf16.mxu0 0
    %3455 = vmatpush2.bf16.msra.mxu0 0
    %3456 = vmatprep.subr.bf16.mxu0 0
    %3457 = vmatpush2.bf16.msra.mxu0 0
    %3458 = vmatprep.subr.bf16.mxu0 0
    %3459 = vmatpush2.bf16.msra.mxu0 0
    %3460 = vmatprep.mubr.bf16.mxu0 0
    %3461 = vmatmul.mubr.bf16.gmra.mxu0 %v3426
    %v3462 = vpop.f32.mrf.mxu0
    %v3463 = vadd.f32 %v3423, %v3462
    %v3464 = vpop.f32.mrf.mxu0
    %v3465 = vpop.f32.mrf.mxu0
    %v3466 = vadd.f32 %v3423, %v3465
    %v3467 = vpop.f32.mrf.mxu0
    %3468 = vdwg.mxu0
    %v3469 = vadd.f32 %v3463, %v1965
    %v3470 = vadd.f32 %v3466, %v1966
    %v3471 = vld [vmem:[%s3 + $0x5] sm:$0x1]
    %v3472 = vsel %vm169, %v3469, 0.0
    %3473 = vadd.xlane.f32.xlu0 %v3472
    %v3474 = vpop.xlane.xlu0 %3473
    %v3475 = vsel %vm169, %v3470, 0.0
    %3476 = vadd.xlane.f32.xlu0 %v3475
    %v3477 = vpop.xlane.xlu0 %3476
    %v3478 = vmul.f32 %v3474, %v176
    %v3479 = vmul.f32 %v3477, %v176
    %v3480 = vsub.f32 %v3469, %v3478
    %v3481 = vsub.f32 %v3470, %v3479
    %v3482 = vmul.f32 %v3480, %v3480
    %v3483 = vmul.f32 %v3481, %v3481
    %v3484 = vsel %vm169, %v3482, 0.0
    %3485 = vadd.xlane.f32.xlu0 %v3484
    %v3486 = vpop.xlane.xlu0 %3485
    %v3487 = vsel %vm169, %v3483, 0.0
    %3488 = vadd.xlane.f32.xlu0 %v3487
    %v3489 = vpop.xlane.xlu0 %3488
    %v3490 = vmul.f32 %v3486, %v176
    %v3491 = vmul.f32 %v3489, %v176
    %v3492 = vadd.f32 %v3490, 1e-12
    %v3493 = vadd.f32 %v3491, 1e-12
    %v3494 = vrsqrt.pop %v3492
    %v3495 = vrsqrt.pop %v3493
    %v3496 = vmul.f32 %v3480, %v3494
    %v3497 = vmul.f32 %v3481, %v3495
    %v3498 = vlaneseq
    %v3499 = vshrl.u32 %v3498, 7
    %v3500 = vsub.s32 0, %v3499
    %v3501 = vrot.slane %v3471, %v3500
    %v3502 = vmul.f32 %v3496, %v3501
    %v3503 = vmul.f32 %v3497, %v3501
    %3505 = vrot.lane.b32.xlu0 %v3501, 96
    %v3506 = vpop.permute.xlu0 %3505
    %v3508 = vadd.f32 %v3502, %v3506
    %v3509 = vadd.f32 %v3503, %v3506
    %v3510 = vpack.c.bf16 %v3509, %v3508
    %s3511 = scalar_lea.vmem %s6, 16
    %v3512 = vld [vmem:[%s3511] sm:$0xf]
    %v3513 = vld [vmem:[%s3511 + $0x4] sm:$0xf]
    %v3514 = vld [vmem:[%s3511 + $0x8] sm:$0xf]
    %v3515 = vld [vmem:[%s3511 + $0xc] sm:$0xf]
    %v3516 = vld [vmem:[%s3 + $0x6] sm:$0x1]
    %v3517 = vlaneseq
    %v3518 = vshrl.u32 %v3517, 7
    %v3519 = vsub.s32 0, %v3518
    %v3520 = vrot.slane %v3516, %v3519
    %v3525 = vunpack.c.l.b16 %v3512
    %v3526 = vunpack.c.l.b16 %v3513
    %v3527 = vunpack.c.l.b16 %v3514
    %v3528 = vunpack.c.l.b16 %v3515
    %v3529 = vpack.c.b16 %v3526, %v3525
    %v3530 = vpack.c.b16 %v3528, %v3527
    %v3534 = vsel %vm169, %v3510, 0
    %3536 = vmatprep.subr.bf16.mxu0 0
    %3537 = vmatpush1.bf16.msra.mxu0 0
    %3538 = vmatprep.subr.bf16.mxu0 0
    %3539 = vmatpush1.bf16.msra.mxu0 0
    %3540 = vmatprep.subr.bf16.mxu0 0
    %3541 = vmatpush1.bf16.msra.mxu0 0
    %3542 = vmatprep.subr.bf16.mxu0 0
    %3543 = vmatpush1.bf16.msra.mxu0 0
    %3544 = vmatprep.subr.bf16.mxu0 0
    %3545 = vmatpush1.bf16.msra.mxu0 0
    %3546 = vmatprep.subr.bf16.mxu0 0
    %3547 = vmatpush1.bf16.msra.mxu0 0
    %3548 = vmatprep.subr.bf16.mxu0 0
    %3549 = vmatpush1.bf16.msra.mxu0 %v3530
    %3550 = vmatprep.subr.bf16.mxu0 0
    %3551 = vmatpush1.bf16.msra.mxu0 %v3529
    %3552 = vmatprep.subr.bf16.mxu0 0
    %3553 = vmatpush2.bf16.msra.mxu0 0
    %3554 = vmatprep.subr.bf16.mxu0 0
    %3555 = vmatpush2.bf16.msra.mxu0 0
    %3556 = vmatprep.subr.bf16.mxu0 0
    %3557 = vmatpush2.bf16.msra.mxu0 0
    %3558 = vmatprep.subr.bf16.mxu0 0
    %3559 = vmatpush2.bf16.msra.mxu0 0
    %3560 = vmatprep.subr.bf16.mxu0 0
    %3561 = vmatpush2.bf16.msra.mxu0 0
    %3562 = vmatprep.subr.bf16.mxu0 0
    %3563 = vmatpush2.bf16.msra.mxu0 0
    %3564 = vmatprep.subr.bf16.mxu0 0
    %3565 = vmatpush2.bf16.msra.mxu0 0
    %3566 = vmatprep.subr.bf16.mxu0 0
    %3567 = vmatpush2.bf16.msra.mxu0 0
    %3568 = vmatprep.mubr.bf16.mxu0 0
    %3569 = vmatmul.mubr.bf16.gmra.mxu0 %v3534
    %v3570 = vpop.f32.mrf.mxu0
    %v3571 = vadd.f32 %v3520, %v3570
    %v3572 = vpop.f32.mrf.mxu0
    %v3573 = vpop.f32.mrf.mxu0
    %v3574 = vadd.f32 %v3520, %v3573
    %v3575 = vpop.f32.mrf.mxu0
    %3576 = vdwg.mxu0
    %v3577 = vmul.f32 %v3571, 0.5
    %v3578 = vmul.f32 %v3574, 0.5
    %v3579 = vmul.f32 %v3571, 0.70710677
    %v3580 = vmul.f32 %v3574, 0.70710677
    %v3581 = verf.f32.pop %v3579
    %v3582 = verf.f32.pop %v3580
    %v3583 = vadd.f32 %v3581, 1.0
    %v3584 = vadd.f32 %v3582, 1.0
    %v3585 = vmul.f32 %v3577, %v3583
    %v3586 = vmul.f32 %v3578, %v3584
    %v3587 = vpack.c.bf16 %v3586, %v3585
    %s3588 = scalar_lea.vmem %s7, 32
    %v3589 = vld [vmem:[%s3588] sm:$0xf]
    %v3590 = vld [vmem:[%s3588 + $0x4] sm:$0xf]
    %v3591 = vld [vmem:[%s3588 + $0x8] sm:$0xf]
    %v3592 = vld [vmem:[%s3588 + $0xc] sm:$0xf]
    %v3593 = vld [vmem:[%s3588 + $0x10] sm:$0xf]
    %v3594 = vld [vmem:[%s3588 + $0x14] sm:$0xf]
    %v3595 = vld [vmem:[%s3588 + $0x18] sm:$0xf]
    %v3596 = vld [vmem:[%s3588 + $0x1c] sm:$0xf]
    %v3605 = vunpack.c.l.b16 %v3589
    %v3606 = vunpack.c.l.b16 %v3590
    %v3607 = vunpack.c.l.b16 %v3591
    %v3608 = vunpack.c.l.b16 %v3592
    %v3609 = vunpack.c.l.b16 %v3593
    %v3610 = vunpack.c.l.b16 %v3594
    %v3611 = vunpack.c.l.b16 %v3595
    %v3612 = vunpack.c.l.b16 %v3596
    %v3613 = vpack.c.b16 %v3606, %v3605
    %v3614 = vpack.c.b16 %v3608, %v3607
    %v3615 = vpack.c.b16 %v3610, %v3609
    %v3616 = vpack.c.b16 %v3612, %v3611
    %3622 = vrot.lane.b32.xlu0 %v3520, 64
    %v3623 = vpop.permute.xlu0 %3622
    %v3626 = vsel %vm1884, %v3587, 0
    %3628 = vmatprep.subr.bf16.mxu0 0
    %3629 = vmatpush1.bf16.msra.mxu0 0
    %3630 = vmatprep.subr.bf16.mxu0 0
    %3631 = vmatpush1.bf16.msra.mxu0 0
    %3632 = vmatprep.subr.bf16.mxu0 0
    %3633 = vmatpush1.bf16.msra.mxu0 0
    %3634 = vmatprep.subr.bf16.mxu0 0
    %3635 = vmatpush1.bf16.msra.mxu0 0
    %3636 = vmatprep.subr.bf16.mxu0 0
    %3637 = vmatpush1.bf16.msra.mxu0 %v3616
    %3638 = vmatprep.subr.bf16.mxu0 0
    %3639 = vmatpush1.bf16.msra.mxu0 %v3615
    %3640 = vmatprep.subr.bf16.mxu0 0
    %3641 = vmatpush1.bf16.msra.mxu0 %v3614
    %3642 = vmatprep.subr.bf16.mxu0 0
    %3643 = vmatpush1.bf16.msra.mxu0 %v3613
    %3644 = vmatprep.subr.bf16.mxu0 0
    %3645 = vmatpush2.bf16.msra.mxu0 0
    %3646 = vmatprep.subr.bf16.mxu0 0
    %3647 = vmatpush2.bf16.msra.mxu0 0
    %3648 = vmatprep.subr.bf16.mxu0 0
    %3649 = vmatpush2.bf16.msra.mxu0 0
    %3650 = vmatprep.subr.bf16.mxu0 0
    %3651 = vmatpush2.bf16.msra.mxu0 0
    %3652 = vmatprep.subr.bf16.mxu0 0
    %3653 = vmatpush2.bf16.msra.mxu0 0
    %3654 = vmatprep.subr.bf16.mxu0 0
    %3655 = vmatpush2.bf16.msra.mxu0 0
    %3656 = vmatprep.subr.bf16.mxu0 0
    %3657 = vmatpush2.bf16.msra.mxu0 0
    %3658 = vmatprep.subr.bf16.mxu0 0
    %3659 = vmatpush2.bf16.msra.mxu0 0
    %3660 = vmatprep.mubr.bf16.mxu0 0
    %3661 = vmatmul.mubr.bf16.gmra.mxu0 %v3626
    %v3662 = vpop.f32.mrf.mxu0
    %v3663 = vadd.f32 %v3623, %v3662
    %v3664 = vpop.f32.mrf.mxu0
    %v3665 = vpop.f32.mrf.mxu0
    %v3666 = vadd.f32 %v3623, %v3665
    %v3667 = vpop.f32.mrf.mxu0
    %3668 = vdwg.mxu0
    %v3669 = vadd.f32 %v3663, %v3508
    %v3670 = vadd.f32 %v3666, %v3509
    %v3671 = vsel %vm169, %v3669, 0.0
    %3672 = vadd.xlane.f32.xlu0 %v3671
    %v3673 = vpop.xlane.xlu0 %3672
    %v3674 = vsel %vm169, %v3670, 0.0
    %3675 = vadd.xlane.f32.xlu0 %v3674
    %v3676 = vpop.xlane.xlu0 %3675
    %v3677 = vmul.f32 %v3673, %v176
    %v3678 = vmul.f32 %v3676, %v176
    %v3679 = vsub.f32 %v3669, %v3677
    %v3680 = vsub.f32 %v3670, %v3678
    %v3681 = vmul.f32 %v3679, %v3679
    %v3682 = vmul.f32 %v3680, %v3680
    %v3683 = vsel %vm169, %v3681, 0.0
    %3684 = vadd.xlane.f32.xlu0 %v3683
    %v3685 = vpop.xlane.xlu0 %3684
    %v3686 = vsel %vm169, %v3682, 0.0
    %3687 = vadd.xlane.f32.xlu0 %v3686
    %v3688 = vpop.xlane.xlu0 %3687
    %v3689 = vmul.f32 %v3685, %v176
    %v3690 = vmul.f32 %v3688, %v176
    %v3691 = vadd.f32 %v3689, 1e-12
    %v3692 = vadd.f32 %v3690, 1e-12
    %v3693 = vrsqrt.pop %v3691
    %v3694 = vrsqrt.pop %v3692
    %v3695 = vmul.f32 %v3679, %v3693
    %v3696 = vmul.f32 %v3680, %v3694
    %3697 = vrot.lane.b32.xlu0 %v3501, 64
    %v3698 = vpop.permute.xlu0 %3697
    %v3700 = vmul.f32 %v3695, %v3698
    %v3701 = vmul.f32 %v3696, %v3698
    %3702 = vrot.lane.b32.xlu0 %v3501, 32
    %v3703 = vpop.permute.xlu0 %3702
    %v3705 = vadd.f32 %v3700, %v3703
    %v3706 = vadd.f32 %v3701, %v3703
    %3707 = vst.msk [vmem:[#allocation2] sm:$0xff] %vm169, %v3705
    %3708 = vst.msk [vmem:[#allocation2 + $0x8] sm:$0xff] %vm169, %v3706
    %v3709 = vpack.c.bf16 %v3705, %v3705
    %v3710 = vpack.c.bf16 %v3706, %v3706
    %v3711 = vld [vmem:[%s8] sm:$0xf]
    %v3712 = vld [vmem:[%s8 + $0x4] sm:$0xf]
    %v3713 = vld [vmem:[%s8 + $0x8] sm:$0xf]
    %v3714 = vld [vmem:[%s8 + $0xc] sm:$0xf]
    %v3715 = vld [vmem:[%s3] sm:$0x1]
    %v3716 = vlaneseq
    %v3717 = vshrl.u32 %v3716, 7
    %v3718 = vsub.s32 0, %v3717
    %v3719 = vrot.slane %v3715, %v3718
    %v3722 = vunpack.c.l.b16 %v3709
    %v3723 = vunpack.c.l.b16 %v3710
    %v3724 = vrot.slane %v3723, 7
    %vm3725 = vcmask 1041409
    %v3726 = vsel %vm3725, %v3724, %v3722
    %v3727 = vpack.c.b16 %v3726, %v3726
    %v3732 = vunpack.c.l.b16 %v3711
    %v3733 = vunpack.c.l.b16 %v3712
    %v3734 = vunpack.c.l.b16 %v3713
    %v3735 = vunpack.c.l.b16 %v3714
    %v3736 = vpack.c.b16 %v3733, %v3732
    %v3737 = vpack.c.b16 %v3735, %v3734
    %3741 = vrot.lane.b32.xlu0 %v3719, 64
    %v3742 = vpop.permute.xlu0 %3741
    %v3745 = vsel %vm169, %v3727, 0
    %3747 = vmatprep.subr.bf16.mxu0 0
    %3748 = vmatpush1.bf16.msra.mxu0 0
    %3749 = vmatprep.subr.bf16.mxu0 0
    %3750 = vmatpush1.bf16.msra.mxu0 0
    %3751 = vmatprep.subr.bf16.mxu0 0
    %3752 = vmatpush1.bf16.msra.mxu0 0
    %3753 = vmatprep.subr.bf16.mxu0 0
    %3754 = vmatpush1.bf16.msra.mxu0 0
    %3755 = vmatprep.subr.bf16.mxu0 0
    %3756 = vmatpush1.bf16.msra.mxu0 0
    %3757 = vmatprep.subr.bf16.mxu0 0
    %3758 = vmatpush1.bf16.msra.mxu0 0
    %3759 = vmatprep.subr.bf16.mxu0 0
    %3760 = vmatpush1.bf16.msra.mxu0 %v3737
    %3761 = vmatprep.subr.bf16.mxu0 0
    %3762 = vmatpush1.bf16.msra.mxu0 %v3736
    %3763 = vmatprep.subr.bf16.mxu0 0
    %3764 = vmatpush2.bf16.msra.mxu0 0
    %3765 = vmatprep.subr.bf16.mxu0 0
    %3766 = vmatpush2.bf16.msra.mxu0 0
    %3767 = vmatprep.subr.bf16.mxu0 0
    %3768 = vmatpush2.bf16.msra.mxu0 0
    %3769 = vmatprep.subr.bf16.mxu0 0
    %3770 = vmatpush2.bf16.msra.mxu0 0
    %3771 = vmatprep.subr.bf16.mxu0 0
    %3772 = vmatpush2.bf16.msra.mxu0 0
    %3773 = vmatprep.subr.bf16.mxu0 0
    %3774 = vmatpush2.bf16.msra.mxu0 0
    %3775 = vmatprep.subr.bf16.mxu0 0
    %3776 = vmatpush2.bf16.msra.mxu0 0
    %3777 = vmatprep.subr.bf16.mxu0 0
    %3778 = vmatpush2.bf16.msra.mxu0 0
    %3779 = vmatprep.mubr.bf16.mxu0 0
    %3780 = vmatmul.mubr.bf16.gmra.mxu0 %v3745
    %v3781 = vpop.f32.mrf.mxu0
    %v3782 = vadd.f32 %v3742, %v3781
    %v3783 = vpop.f32.mrf.mxu0
    %v3784 = vpop.f32.mrf.mxu0
    %v3785 = vpop.f32.mrf.mxu0
    %3786 = vdwg.mxu0
    %v3787 = vtanh.pop %v3782
    %vm3788 = vcmask 254976
    %3789 = vst.msk [vmem:[#allocation4] sm:$0x3] %vm3788, %v3787
    // Predicated region
    $region38: #{custom_bert_forward.1} parent=1 // pred_check
      _
    $region39: #{custom_bert_forward.1} parent=1 // pred_check_branch
      %3791 = sbr.rel (0) target = $region41
    $region40: #{custom_bert_forward.1} parent=1 // pred_region
      %s3793 = ssub.s32 256, 256
      %3794 = vsyncadd [#allocation3], %s3793
      %s3795 = sshll.u32 [#allocation2], 4
      %s3796 = int_to_ptr.vmem [resolvable:$true] %s3795
      %3801 = dma.vmem_to_hbm [thread:$0]  %s3796, 256, %s9, [#allocation3], 128, 128, 8
    $region41: #{custom_bert_forward.1} parent=1 // pred_fallthru
      _
    // Predicated region
    $region42: #{custom_bert_forward.1} parent=1 // pred_check
      _
    $region43: #{custom_bert_forward.1} parent=1 // pred_check_branch
      %3803 = sbr.rel (0) target = $region45
    $region44: #{custom_bert_forward.1} parent=1 // pred_region
      %s3805 = ssub.s32 32, 32
      %3806 = vsyncadd [#allocation5], %s3805
      %s3808 = sshll.u32 [#allocation4], 4
      %s3809 = int_to_ptr.vmem [resolvable:$true] %s3808
      %3811 = dma.vmem_to_hbm [thread:$0]  %s3809, 32, %s10, [#allocation5]
    $region45: #{custom_bert_forward.1} parent=1 // pred_fallthru
      _
    // Predicated region
    $region46: #{custom_bert_forward.1} parent=1 // pred_check
      _
    $region47: #{custom_bert_forward.1} parent=1 // pred_check_branch
      %3813 = sbr.rel (0) target = $region49
    $region48: #{custom_bert_forward.1} parent=1 // pred_region
      %3814 = dma.done [#allocation3], 256
    $region49: #{custom_bert_forward.1} parent=1 // pred_fallthru
      _
    // Predicated region
    $region50: #{custom_bert_forward.1} parent=1 // pred_check
      _
    $region51: #{custom_bert_forward.1} parent=1 // pred_check_branch
      %3816 = sbr.rel (0) target = $region53
    $region52: #{custom_bert_forward.1} parent=1 // pred_region
      %3817 = dma.done [#allocation5], 32
    $region53: #{custom_bert_forward.1} parent=1 // pred_fallthru
      _
    %3818 = vsyncpa [#allocation3], 1
    %3819 = vsyncpa [#allocation5], 1

</llo_original>
